<compile_context>
chip_gen: v5e
topology: v5e:2x2
jax: 0.10.0
libtpu: 0.0.40
codegen_flags: <defaults>
</compile_context>

<pallas_src>
import functools

import jax
import jax.numpy as jnp
from jax.experimental import pallas as pl
from jax.experimental.pallas import tpu as pltpu

LANE = 128  # TPU lane width; H, I, O are all zero-padded to this.


def rnn_kernel(slab_ref, out_ref, *, S, Bp, offs):
    x_off, wih_off, whh_off, b_off, wo_off, bo_off = offs

    # Static row-slices of the packed slab (all offsets are sublane-aligned).
    X = slab_ref[x_off:x_off + S * Bp, :]          # (S*Bp, 128)   data, zero-padded
    Wih = slab_ref[wih_off:wih_off + LANE, :]      # (128, 128)    rows>=I, cols>=H zero
    Whh = slab_ref[whh_off:whh_off + LANE, :]      # (128, 128)    rows/cols>=H zero
    b = slab_ref[b_off:b_off + 1, :]               # (1, 128)      b_i+b_h, cols>=H zero
    Wout = slab_ref[wo_off:wo_off + LANE, :]       # (128, 128)    rows>=H, cols>=O zero
    bout = slab_ref[bo_off:bo_off + 1, :]          # (1, 128)      cols>=O zero

    dot = functools.partial(
        jnp.dot,
        preferred_element_type=jnp.float32,
        precision=jax.lax.Precision.HIGHEST,
    )

    # Hoisted input projection for ALL steps: one matmul + one bias add,
    # entirely off the serial h-dependency chain.
    pre = dot(X, Wih) + b                          # (S*Bp, 128)

    # Fully unrolled serial recurrence; h lives in vregs (no VMEM carry).
    # Padded lanes/rows stay identically zero / are discarded in the wrapper.
    h = jnp.zeros((Bp, LANE), jnp.float32)
    for t in range(S):
        h = jnp.tanh(pre[t * Bp:(t + 1) * Bp, :] + dot(h, Whh))

    # Fused final Linear; dense (Bp, 128) tile store.
    out_ref[...] = (dot(h, Wout) + bout).astype(out_ref.dtype)


def simple_rnn_forward(data, W_ih, W_hh, b_i, b_h, W_out, b_out):
    """data: (S, B, I) float32. Returns (B, O) float32."""
    S, B, I = data.shape
    H = W_ih.shape[1]
    O = W_out.shape[1]
    assert I <= LANE and H <= LANE and O <= LANE and B <= 8

    Bp = 8  # pad batch to one full sublane tile; extra rows are discarded.

    def r8(n):  # round rows up to a multiple of 8 sublanes
        return -(-n // 8) * 8

    # Packed slab layout (all segments sublane-aligned).
    x_off = 0
    wih_off = x_off + r8(S * Bp)
    whh_off = wih_off + LANE
    b_off = whh_off + LANE
    wo_off = b_off + r8(1)
    bo_off = wo_off + LANE
    total_rows = bo_off + r8(1)

    slab = jnp.zeros((total_rows, LANE), jnp.float32)

    xp = jnp.zeros((S, Bp, LANE), jnp.float32).at[:, :B, :I].set(data)
    slab = slab.at[x_off:x_off + S * Bp, :].set(xp.reshape(S * Bp, LANE))
    slab = slab.at[wih_off:wih_off + I, :H].set(W_ih)
    slab = slab.at[whh_off:whh_off + H, :H].set(W_hh)
    slab = slab.at[b_off, :H].set(b_i + b_h)        # fold the two RNN biases
    slab = slab.at[wo_off:wo_off + H, :O].set(W_out)
    slab = slab.at[bo_off, :O].set(b_out)

    kern = functools.partial(
        rnn_kernel,
        S=S,
        Bp=Bp,
        offs=(x_off, wih_off, whh_off, b_off, wo_off, bo_off),
    )

    slab_bytes = total_rows * LANE * 4
    out_bytes = Bp * LANE * 4
    flops = 2 * (S * Bp) * LANE * LANE        # input projection
    flops += S * 2 * Bp * LANE * LANE         # recurrence
    flops += 2 * Bp * LANE * LANE             # output projection

    out_pad = pl.pallas_call(
        kern,
        out_shape=jax.ShapeDtypeStruct((Bp, LANE), jnp.float32),
        in_specs=[pl.BlockSpec(memory_space=pltpu.MemorySpace.VMEM)],
        out_specs=pl.BlockSpec(memory_space=pltpu.MemorySpace.VMEM),
        cost_estimate=pl.CostEstimate(
            flops=flops,
            transcendentals=S * Bp * LANE,
            bytes_accessed=slab_bytes + out_bytes,
        ),
    )(slab)

    return out_pad[:B, :O]


def reference_forward(data, W_ih, W_hh, b_i, b_h, W_out, b_out):
    S, B, _ = data.shape
    H = W_ih.shape[1]
    hi = jax.lax.Precision.HIGHEST
    h = jnp.zeros((B, H), jnp.float32)
    for s in range(S):
        h = jnp.tanh(
            jnp.dot(data[s], W_ih, precision=hi)
            + b_i
            + jnp.dot(h, W_hh, precision=hi)
            + b_h
        )
    return jnp.dot(h, W_out, precision=hi) + b_out


if __name__ == "__main__":
    # Small shapes consistent with the module.
    SEQ, BATCH = 8, 2
    INPUT_SIZE, HIDDEN_SIZE, OUTPUT_SIZE = 4, 32, 8

    key = jax.random.PRNGKey(0)
    k_data, k_wih, k_whh, k_bi, k_bh, k_wo, k_bo = jax.random.split(key, 7)

    data = jax.random.normal(k_data, (SEQ, BATCH, INPUT_SIZE), jnp.float32)

    # Parameters (deterministic synthetic init, mirroring the PyTorch shapes):
    #   W_ih: (input, hidden), W_hh: (hidden, hidden), b_i/b_h: (hidden,)
    #   Linear: weight (out, hidden) -> pre-transposed to (hidden, out), bias (out,)
    W_ih = jax.random.normal(k_wih, (INPUT_SIZE, HIDDEN_SIZE), jnp.float32)
    W_hh = jax.random.normal(k_whh, (HIDDEN_SIZE, HIDDEN_SIZE), jnp.float32)
    b_i = jax.random.normal(k_bi, (HIDDEN_SIZE,), jnp.float32)
    b_h = jax.random.normal(k_bh, (HIDDEN_SIZE,), jnp.float32)
    W_lin = jax.random.normal(k_wo, (OUTPUT_SIZE, HIDDEN_SIZE), jnp.float32) * 0.1
    b_lin = jax.random.normal(k_bo, (OUTPUT_SIZE,), jnp.float32) * 0.1
    W_out = W_lin.T  # (hidden, out) so the kernel does h @ W_out + b_out

    out = simple_rnn_forward(data, W_ih, W_hh, b_i, b_h, W_out, b_lin)
    out = jax.block_until_ready(out)

    ref = reference_forward(data, W_ih, W_hh, b_i, b_h, W_out, b_lin)
    assert out.shape == (BATCH, OUTPUT_SIZE)
    assert jnp.allclose(out, ref, atol=1e-4, rtol=1e-4), "mismatch vs reference"

    print("KERNEL_OK")
</pallas_src>

<mosaic_0001>
module attributes {stable_mosaic.version = 11 : i64} {
  func.func @rnn_kernel(%arg0: memref<464x128xf32, #tpu.memory_space<vmem>>, %arg1: memref<8x128xf32, #tpu.memory_space<vmem>>) attributes {dimension_semantics = [], scalar_prefetch = 0 : i64, scratch_operands = 0 : i64, tpu.core_type = #tpu.core_type<tc>} {
    %c0 = arith.constant 0 : index
    %c0_0 = arith.constant 0 : index
    %0 = vector.load %arg0[%c0, %c0_0] : memref<464x128xf32, #tpu.memory_space<vmem>>, vector<64x128xf32>
    %c64 = arith.constant 64 : index
    %c0_1 = arith.constant 0 : index
    %1 = vector.load %arg0[%c64, %c0_1] : memref<464x128xf32, #tpu.memory_space<vmem>>, vector<128x128xf32>
    %c192 = arith.constant 192 : index
    %c0_2 = arith.constant 0 : index
    %2 = vector.load %arg0[%c192, %c0_2] : memref<464x128xf32, #tpu.memory_space<vmem>>, vector<128x128xf32>
    %c320 = arith.constant 320 : index
    %c0_3 = arith.constant 0 : index
    %3 = vector.load %arg0[%c320, %c0_3] : memref<464x128xf32, #tpu.memory_space<vmem>>, vector<1x128xf32>
    %c328 = arith.constant 328 : index
    %c0_4 = arith.constant 0 : index
    %4 = vector.load %arg0[%c328, %c0_4] : memref<464x128xf32, #tpu.memory_space<vmem>>, vector<128x128xf32>
    %c456 = arith.constant 456 : index
    %c0_5 = arith.constant 0 : index
    %5 = vector.load %arg0[%c456, %c0_5] : memref<464x128xf32, #tpu.memory_space<vmem>>, vector<1x128xf32>
    %cst = arith.constant dense<0.000000e+00> : vector<64x128xf32>
    %6 = tpu.matmul %0, %1, %cst {dimension_numbers = #tpu.dot_dimension_numbers<[1], [0], [0], [1], [0, 0, 1, 1], [], []>, precision = #tpu.contract_precision<fp32>} : vector<64x128xf32>, vector<128x128xf32>, vector<64x128xf32> -> vector<64x128xf32>
    %7 = vector.broadcast %3 : vector<1x128xf32> to vector<64x128xf32>
    %8 = arith.addf %6, %7 : vector<64x128xf32>
    %cst_6 = arith.constant 0.000000e+00 : f32
    %9 = vector.broadcast %cst_6 : f32 to vector<8x128xf32>
    %10 = vector.extract_strided_slice %8 {offsets = [0, 0], sizes = [8, 128], strides = [1, 1]} : vector<64x128xf32> to vector<8x128xf32>
    %cst_7 = arith.constant dense<0.000000e+00> : vector<8x128xf32>
    %11 = tpu.matmul %9, %2, %cst_7 {dimension_numbers = #tpu.dot_dimension_numbers<[1], [0], [0], [1], [0, 0, 1, 1], [], []>, precision = #tpu.contract_precision<fp32>} : vector<8x128xf32>, vector<128x128xf32>, vector<8x128xf32> -> vector<8x128xf32>
    %12 = arith.addf %10, %11 : vector<8x128xf32>
    %13 = math.tanh %12 : vector<8x128xf32>
    %14 = vector.extract_strided_slice %8 {offsets = [8, 0], sizes = [8, 128], strides = [1, 1]} : vector<64x128xf32> to vector<8x128xf32>
    %cst_8 = arith.constant dense<0.000000e+00> : vector<8x128xf32>
    %15 = tpu.matmul %13, %2, %cst_8 {dimension_numbers = #tpu.dot_dimension_numbers<[1], [0], [0], [1], [0, 0, 1, 1], [], []>, precision = #tpu.contract_precision<fp32>} : vector<8x128xf32>, vector<128x128xf32>, vector<8x128xf32> -> vector<8x128xf32>
    %16 = arith.addf %14, %15 : vector<8x128xf32>
    %17 = math.tanh %16 : vector<8x128xf32>
    %18 = vector.extract_strided_slice %8 {offsets = [16, 0], sizes = [8, 128], strides = [1, 1]} : vector<64x128xf32> to vector<8x128xf32>
    %cst_9 = arith.constant dense<0.000000e+00> : vector<8x128xf32>
    %19 = tpu.matmul %17, %2, %cst_9 {dimension_numbers = #tpu.dot_dimension_numbers<[1], [0], [0], [1], [0, 0, 1, 1], [], []>, precision = #tpu.contract_precision<fp32>} : vector<8x128xf32>, vector<128x128xf32>, vector<8x128xf32> -> vector<8x128xf32>
    %20 = arith.addf %18, %19 : vector<8x128xf32>
    %21 = math.tanh %20 : vector<8x128xf32>
    %22 = vector.extract_strided_slice %8 {offsets = [24, 0], sizes = [8, 128], strides = [1, 1]} : vector<64x128xf32> to vector<8x128xf32>
    %cst_10 = arith.constant dense<0.000000e+00> : vector<8x128xf32>
    %23 = tpu.matmul %21, %2, %cst_10 {dimension_numbers = #tpu.dot_dimension_numbers<[1], [0], [0], [1], [0, 0, 1, 1], [], []>, precision = #tpu.contract_precision<fp32>} : vector<8x128xf32>, vector<128x128xf32>, vector<8x128xf32> -> vector<8x128xf32>
    %24 = arith.addf %22, %23 : vector<8x128xf32>
    %25 = math.tanh %24 : vector<8x128xf32>
    %26 = vector.extract_strided_slice %8 {offsets = [32, 0], sizes = [8, 128], strides = [1, 1]} : vector<64x128xf32> to vector<8x128xf32>
    %cst_11 = arith.constant dense<0.000000e+00> : vector<8x128xf32>
    %27 = tpu.matmul %25, %2, %cst_11 {dimension_numbers = #tpu.dot_dimension_numbers<[1], [0], [0], [1], [0, 0, 1, 1], [], []>, precision = #tpu.contract_precision<fp32>} : vector<8x128xf32>, vector<128x128xf32>, vector<8x128xf32> -> vector<8x128xf32>
    %28 = arith.addf %26, %27 : vector<8x128xf32>
    %29 = math.tanh %28 : vector<8x128xf32>
    %30 = vector.extract_strided_slice %8 {offsets = [40, 0], sizes = [8, 128], strides = [1, 1]} : vector<64x128xf32> to vector<8x128xf32>
    %cst_12 = arith.constant dense<0.000000e+00> : vector<8x128xf32>
    %31 = tpu.matmul %29, %2, %cst_12 {dimension_numbers = #tpu.dot_dimension_numbers<[1], [0], [0], [1], [0, 0, 1, 1], [], []>, precision = #tpu.contract_precision<fp32>} : vector<8x128xf32>, vector<128x128xf32>, vector<8x128xf32> -> vector<8x128xf32>
    %32 = arith.addf %30, %31 : vector<8x128xf32>
    %33 = math.tanh %32 : vector<8x128xf32>
    %34 = vector.extract_strided_slice %8 {offsets = [48, 0], sizes = [8, 128], strides = [1, 1]} : vector<64x128xf32> to vector<8x128xf32>
    %cst_13 = arith.constant dense<0.000000e+00> : vector<8x128xf32>
    %35 = tpu.matmul %33, %2, %cst_13 {dimension_numbers = #tpu.dot_dimension_numbers<[1], [0], [0], [1], [0, 0, 1, 1], [], []>, precision = #tpu.contract_precision<fp32>} : vector<8x128xf32>, vector<128x128xf32>, vector<8x128xf32> -> vector<8x128xf32>
    %36 = arith.addf %34, %35 : vector<8x128xf32>
    %37 = math.tanh %36 : vector<8x128xf32>
    %38 = vector.extract_strided_slice %8 {offsets = [56, 0], sizes = [8, 128], strides = [1, 1]} : vector<64x128xf32> to vector<8x128xf32>
    %cst_14 = arith.constant dense<0.000000e+00> : vector<8x128xf32>
    %39 = tpu.matmul %37, %2, %cst_14 {dimension_numbers = #tpu.dot_dimension_numbers<[1], [0], [0], [1], [0, 0, 1, 1], [], []>, precision = #tpu.contract_precision<fp32>} : vector<8x128xf32>, vector<128x128xf32>, vector<8x128xf32> -> vector<8x128xf32>
    %40 = arith.addf %38, %39 : vector<8x128xf32>
    %41 = math.tanh %40 : vector<8x128xf32>
    %cst_15 = arith.constant dense<0.000000e+00> : vector<8x128xf32>
    %42 = tpu.matmul %41, %4, %cst_15 {dimension_numbers = #tpu.dot_dimension_numbers<[1], [0], [0], [1], [0, 0, 1, 1], [], []>, precision = #tpu.contract_precision<fp32>} : vector<8x128xf32>, vector<128x128xf32>, vector<8x128xf32> -> vector<8x128xf32>
    %43 = vector.broadcast %5 : vector<1x128xf32> to vector<8x128xf32>
    %44 = arith.addf %42, %43 : vector<8x128xf32>
    %c0_16 = arith.constant 0 : index
    %c0_17 = arith.constant 0 : index
    %45 = vector.load %arg1[%c0_16, %c0_17] : memref<8x128xf32, #tpu.memory_space<vmem>>, vector<8x128xf32>
    tpu.vector_store %arg1[%c0_16, %c0_17], %44 {strides = array<i32>} : memref<8x128xf32, #tpu.memory_space<vmem>>, vector<8x128xf32>,
    return
  }
}

</mosaic_0001>

<llo_original>
// kernel: tpu_custom_call.1
$region0: #{tpu_custom_call.1}
  #allocation0 [shape = 'u32[]', space=smem, size = 0x4, offset = 0x4, fixed_abs, tag = 'smem constant byte address 0x4 - core index']
  #allocation1 [shape = 'u32[72,128]{1,0:T(1,128)}', space=vmem, size = 0x9000, scoped, tag = 'internal scratch']
  %s0 = inlined_call_operand.hbm [shape: f32[464,128], index: 0, kind: input, shape index: {}]
  %s1 = inlined_call_operand.hbm [shape: f32[8,128], index: 1, kind: output, shape index: {}]
  %s2 = sld [smem:[#allocation0]]
  $region18: #{tpu_custom_call.1} parent=0
    _
  %s4 = ssub.s32 1, %s2
  %s5 = scalar_select 0, %s4, %s2
  $region1: #{tpu_custom_call.1} parent=0
    #allocation2 [shape = 'u8[237568]{0}', space=vmem, size = 0x3a000, scoped, tag = 'input window, operand 0, single buffered']
    #allocation3 [shape = 's32[1]{0}', space=sflag, size = 0x4, scoped, tag = 'scoped memory for tpu_custom_call.1']
    #allocation4 [shape = 's32[1]{0}', space=sflag, size = 0x4, scoped, tag = 'scoped memory for tpu_custom_call.1']
    #allocation5 [shape = 'u8[4096]{0}', space=vmem, size = 0x1000, scoped, tag = 'output window, operand 0, single buffered']
    %6 = vsyncpa [#allocation3], 0
    %7 = vsyncpa [#allocation4], 0
    // Predicated region
    $region2: #{tpu_custom_call.1} parent=1 // pred_check
      _
    $region3: #{tpu_custom_call.1} parent=1 // pred_check_branch
      %9 = sbr.rel (0) target = $region5
    $region4: #{tpu_custom_call.1} parent=1 // pred_region
      %11 = vsyncadd [#allocation3], 0
      %s12 = sshll.u32 %s0, 4
      %s13 = int_to_ptr.hbm [resolvable:$true] %s12
      %s14 = sshll.u32 [#allocation2], 4
      %s15 = int_to_ptr.vmem [resolvable:$true] %s14
      %20 = dma.hbm_to_vmem [thread:$0]  %s13, 7424, %s15, [#allocation3], 128, 128, 8
    $region5: #{tpu_custom_call.1} parent=1 // pred_fallthru
      _
    // Predicated region
    $region6: #{tpu_custom_call.1} parent=1 // pred_check
      _
    $region7: #{tpu_custom_call.1} parent=1 // pred_check_branch
      %22 = sbr.rel (0) target = $region9
    $region8: #{tpu_custom_call.1} parent=1 // pred_region
      %24 = dma.done [#allocation3], 7424
    $region9: #{tpu_custom_call.1} parent=1 // pred_fallthru
      _
    %v25 = vld [vmem:[#allocation2] sm:$0xff]
    %v26 = vld [vmem:[#allocation2 + $0x8] sm:$0xff]
    %v27 = vld [vmem:[#allocation2 + $0x10] sm:$0xff]
    %v28 = vld [vmem:[#allocation2 + $0x18] sm:$0xff]
    %v29 = vld [vmem:[#allocation2 + $0x20] sm:$0xff]
    %v30 = vld [vmem:[#allocation2 + $0x28] sm:$0xff]
    %v31 = vld [vmem:[#allocation2 + $0x30] sm:$0xff]
    %v32 = vld [vmem:[#allocation2 + $0x38] sm:$0xff]
    %v33 = vld [vmem:[#allocation2 + $0x40] sm:$0xff]
    %v34 = vld [vmem:[#allocation2 + $0x48] sm:$0xff]
    %v35 = vld [vmem:[#allocation2 + $0x50] sm:$0xff]
    %v36 = vld [vmem:[#allocation2 + $0x58] sm:$0xff]
    %v37 = vld [vmem:[#allocation2 + $0x60] sm:$0xff]
    %v38 = vld [vmem:[#allocation2 + $0x68] sm:$0xff]
    %v39 = vld [vmem:[#allocation2 + $0x70] sm:$0xff]
    %v40 = vld [vmem:[#allocation2 + $0x78] sm:$0xff]
    %v41 = vld [vmem:[#allocation2 + $0x80] sm:$0xff]
    %v42 = vld [vmem:[#allocation2 + $0x88] sm:$0xff]
    %v43 = vld [vmem:[#allocation2 + $0x90] sm:$0xff]
    %v44 = vld [vmem:[#allocation2 + $0x98] sm:$0xff]
    %v45 = vld [vmem:[#allocation2 + $0xa0] sm:$0xff]
    %v46 = vld [vmem:[#allocation2 + $0xa8] sm:$0xff]
    %v47 = vld [vmem:[#allocation2 + $0xb0] sm:$0xff]
    %v48 = vld [vmem:[#allocation2 + $0xb8] sm:$0xff]
    %v49 = vld [vmem:[#allocation2 + $0xc0] sm:$0xff]
    %v50 = vld [vmem:[#allocation2 + $0xc8] sm:$0xff]
    %v51 = vld [vmem:[#allocation2 + $0xd0] sm:$0xff]
    %v52 = vld [vmem:[#allocation2 + $0xd8] sm:$0xff]
    %v53 = vld [vmem:[#allocation2 + $0xe0] sm:$0xff]
    %v54 = vld [vmem:[#allocation2 + $0xe8] sm:$0xff]
    %v55 = vld [vmem:[#allocation2 + $0xf0] sm:$0xff]
    %v56 = vld [vmem:[#allocation2 + $0xf8] sm:$0xff]
    %v57 = vld [vmem:[#allocation2 + $0x100] sm:$0xff]
    %v58 = vld [vmem:[#allocation2 + $0x108] sm:$0xff]
    %v59 = vld [vmem:[#allocation2 + $0x110] sm:$0xff]
    %v60 = vld [vmem:[#allocation2 + $0x118] sm:$0xff]
    %v61 = vld [vmem:[#allocation2 + $0x120] sm:$0xff]
    %v62 = vld [vmem:[#allocation2 + $0x128] sm:$0xff]
    %v63 = vld [vmem:[#allocation2 + $0x130] sm:$0xff]
    %v64 = vld [vmem:[#allocation2 + $0x138] sm:$0xff]
    %v65 = vld [vmem:[#allocation2 + $0x140] sm:$0x1]
    %v66 = vld [vmem:[#allocation2 + $0x148] sm:$0xff]
    %v67 = vld [vmem:[#allocation2 + $0x150] sm:$0xff]
    %v68 = vld [vmem:[#allocation2 + $0x158] sm:$0xff]
    %v69 = vld [vmem:[#allocation2 + $0x160] sm:$0xff]
    %v70 = vld [vmem:[#allocation2 + $0x168] sm:$0xff]
    %v71 = vld [vmem:[#allocation2 + $0x170] sm:$0xff]
    %v72 = vld [vmem:[#allocation2 + $0x178] sm:$0xff]
    %v73 = vld [vmem:[#allocation2 + $0x180] sm:$0xff]
    %v74 = vld [vmem:[#allocation2 + $0x188] sm:$0xff]
    %v75 = vld [vmem:[#allocation2 + $0x190] sm:$0xff]
    %v76 = vld [vmem:[#allocation2 + $0x198] sm:$0xff]
    %v77 = vld [vmem:[#allocation2 + $0x1a0] sm:$0xff]
    %v78 = vld [vmem:[#allocation2 + $0x1a8] sm:$0xff]
    %v79 = vld [vmem:[#allocation2 + $0x1b0] sm:$0xff]
    %v80 = vld [vmem:[#allocation2 + $0x1b8] sm:$0xff]
    %v81 = vld [vmem:[#allocation2 + $0x1c0] sm:$0xff]
    %v82 = vld [vmem:[#allocation2 + $0x1c8] sm:$0x1]
    %v83 = vperm.slane %v65, 0
    %v84 = vand.u32 %v48, 4294901760
    %85 = vmatpush.msra.mxu0 %v84
    %v86 = vand.u32 %v47, 4294901760
    %87 = vmatpush.msra.mxu0 %v86
    %v88 = vand.u32 %v46, 4294901760
    %89 = vmatpush.msra.mxu0 %v88
    %v90 = vand.u32 %v45, 4294901760
    %91 = vmatpush.msra.mxu0 %v90
    %v92 = vand.u32 %v44, 4294901760
    %93 = vmatpush.msra.mxu0 %v92
    %v94 = vand.u32 %v43, 4294901760
    %95 = vmatpush.msra.mxu0 %v94
    %v96 = vand.u32 %v42, 4294901760
    %97 = vmatpush.msra.mxu0 %v96
    %v98 = vand.u32 %v41, 4294901760
    %99 = vmatpush.msra.mxu0 %v98
    %v100 = vand.u32 %v40, 4294901760
    %101 = vmatpush.msra.mxu0 %v100
    %v102 = vand.u32 %v39, 4294901760
    %103 = vmatpush.msra.mxu0 %v102
    %v104 = vand.u32 %v38, 4294901760
    %105 = vmatpush.msra.mxu0 %v104
    %v106 = vand.u32 %v37, 4294901760
    %107 = vmatpush.msra.mxu0 %v106
    %v108 = vand.u32 %v36, 4294901760
    %109 = vmatpush.msra.mxu0 %v108
    %v110 = vand.u32 %v35, 4294901760
    %111 = vmatpush.msra.mxu0 %v110
    %v112 = vand.u32 %v34, 4294901760
    %113 = vmatpush.msra.mxu0 %v112
    %v114 = vand.u32 %v33, 4294901760
    %115 = vmatpush.msra.mxu0 %v114
    %v116 = vand.u32 %v25, 4294901760
    %v117 = vsub.f32 %v25, %v116
    %v118 = vand.u32 %v117, 4294901760
    %v119 = vsub.f32 %v117, %v118
    %v120 = vand.u32 %v119, 4294901760
    %121 = vmatmul.f32.gmra.mxu0 %v120
    %v122 = vpop.f32.mrf.mxu0
    %v123 = vadd.f32 %v83, %v122
    %v124 = vand.u32 %v26, 4294901760
    %v125 = vsub.f32 %v26, %v124
    %v126 = vand.u32 %v125, 4294901760
    %v127 = vsub.f32 %v125, %v126
    %v128 = vand.u32 %v127, 4294901760
    %129 = vmatmul.f32.gmra.mxu0 %v128
    %v130 = vpop.f32.mrf.mxu0
    %v131 = vadd.f32 %v83, %v130
    %v132 = vand.u32 %v27, 4294901760
    %v133 = vsub.f32 %v27, %v132
    %v134 = vand.u32 %v133, 4294901760
    %v135 = vsub.f32 %v133, %v134
    %v136 = vand.u32 %v135, 4294901760
    %137 = vmatmul.f32.gmra.mxu0 %v136
    %v138 = vpop.f32.mrf.mxu0
    %v139 = vadd.f32 %v83, %v138
    %v140 = vand.u32 %v28, 4294901760
    %v141 = vsub.f32 %v28, %v140
    %v142 = vand.u32 %v141, 4294901760
    %v143 = vsub.f32 %v141, %v142
    %v144 = vand.u32 %v143, 4294901760
    %145 = vmatmul.f32.gmra.mxu0 %v144
    %v146 = vpop.f32.mrf.mxu0
    %v147 = vadd.f32 %v83, %v146
    %v148 = vand.u32 %v29, 4294901760
    %v149 = vsub.f32 %v29, %v148
    %v150 = vand.u32 %v149, 4294901760
    %v151 = vsub.f32 %v149, %v150
    %v152 = vand.u32 %v151, 4294901760
    %153 = vmatmul.f32.gmra.mxu0 %v152
    %v154 = vpop.f32.mrf.mxu0
    %v155 = vadd.f32 %v83, %v154
    %v156 = vand.u32 %v30, 4294901760
    %v157 = vsub.f32 %v30, %v156
    %v158 = vand.u32 %v157, 4294901760
    %v159 = vsub.f32 %v157, %v158
    %v160 = vand.u32 %v159, 4294901760
    %161 = vmatmul.f32.gmra.mxu0 %v160
    %v162 = vpop.f32.mrf.mxu0
    %v163 = vadd.f32 %v83, %v162
    %v164 = vand.u32 %v31, 4294901760
    %v165 = vsub.f32 %v31, %v164
    %v166 = vand.u32 %v165, 4294901760
    %v167 = vsub.f32 %v165, %v166
    %v168 = vand.u32 %v167, 4294901760
    %169 = vmatmul.f32.gmra.mxu0 %v168
    %v170 = vpop.f32.mrf.mxu0
    %v171 = vadd.f32 %v83, %v170
    %v172 = vand.u32 %v32, 4294901760
    %v173 = vsub.f32 %v32, %v172
    %v174 = vand.u32 %v173, 4294901760
    %v175 = vsub.f32 %v173, %v174
    %v176 = vand.u32 %v175, 4294901760
    %177 = vmatmul.f32.gmra.mxu0 %v176
    %v178 = vpop.f32.mrf.mxu0
    %v179 = vadd.f32 %v83, %v178
    %180 = vdwg.mxu0
    %v181 = vand.u32 %v48, 4294901760
    %v182 = vsub.f32 %v48, %v181
    %v183 = vand.u32 %v182, 4294901760
    %v184 = vsub.f32 %v182, %v183
    %v185 = vand.u32 %v184, 4294901760
    %186 = vmatpush.msra.mxu0 %v185
    %v187 = vand.u32 %v47, 4294901760
    %v188 = vsub.f32 %v47, %v187
    %v189 = vand.u32 %v188, 4294901760
    %v190 = vsub.f32 %v188, %v189
    %v191 = vand.u32 %v190, 4294901760
    %192 = vmatpush.msra.mxu0 %v191
    %v193 = vand.u32 %v46, 4294901760
    %v194 = vsub.f32 %v46, %v193
    %v195 = vand.u32 %v194, 4294901760
    %v196 = vsub.f32 %v194, %v195
    %v197 = vand.u32 %v196, 4294901760
    %198 = vmatpush.msra.mxu0 %v197
    %v199 = vand.u32 %v45, 4294901760
    %v200 = vsub.f32 %v45, %v199
    %v201 = vand.u32 %v200, 4294901760
    %v202 = vsub.f32 %v200, %v201
    %v203 = vand.u32 %v202, 4294901760
    %204 = vmatpush.msra.mxu0 %v203
    %v205 = vand.u32 %v44, 4294901760
    %v206 = vsub.f32 %v44, %v205
    %v207 = vand.u32 %v206, 4294901760
    %v208 = vsub.f32 %v206, %v207
    %v209 = vand.u32 %v208, 4294901760
    %210 = vmatpush.msra.mxu0 %v209
    %v211 = vand.u32 %v43, 4294901760
    %v212 = vsub.f32 %v43, %v211
    %v213 = vand.u32 %v212, 4294901760
    %v214 = vsub.f32 %v212, %v213
    %v215 = vand.u32 %v214, 4294901760
    %216 = vmatpush.msra.mxu0 %v215
    %v217 = vand.u32 %v42, 4294901760
    %v218 = vsub.f32 %v42, %v217
    %v219 = vand.u32 %v218, 4294901760
    %v220 = vsub.f32 %v218, %v219
    %v221 = vand.u32 %v220, 4294901760
    %222 = vmatpush.msra.mxu0 %v221
    %v223 = vand.u32 %v41, 4294901760
    %v224 = vsub.f32 %v41, %v223
    %v225 = vand.u32 %v224, 4294901760
    %v226 = vsub.f32 %v224, %v225
    %v227 = vand.u32 %v226, 4294901760
    %228 = vmatpush.msra.mxu0 %v227
    %v229 = vand.u32 %v40, 4294901760
    %v230 = vsub.f32 %v40, %v229
    %v231 = vand.u32 %v230, 4294901760
    %v232 = vsub.f32 %v230, %v231
    %v233 = vand.u32 %v232, 4294901760
    %234 = vmatpush.msra.mxu0 %v233
    %v235 = vand.u32 %v39, 4294901760
    %v236 = vsub.f32 %v39, %v235
    %v237 = vand.u32 %v236, 4294901760
    %v238 = vsub.f32 %v236, %v237
    %v239 = vand.u32 %v238, 4294901760
    %240 = vmatpush.msra.mxu0 %v239
    %v241 = vand.u32 %v38, 4294901760
    %v242 = vsub.f32 %v38, %v241
    %v243 = vand.u32 %v242, 4294901760
    %v244 = vsub.f32 %v242, %v243
    %v245 = vand.u32 %v244, 4294901760
    %246 = vmatpush.msra.mxu0 %v245
    %v247 = vand.u32 %v37, 4294901760
    %v248 = vsub.f32 %v37, %v247
    %v249 = vand.u32 %v248, 4294901760
    %v250 = vsub.f32 %v248, %v249
    %v251 = vand.u32 %v250, 4294901760
    %252 = vmatpush.msra.mxu0 %v251
    %v253 = vand.u32 %v36, 4294901760
    %v254 = vsub.f32 %v36, %v253
    %v255 = vand.u32 %v254, 4294901760
    %v256 = vsub.f32 %v254, %v255
    %v257 = vand.u32 %v256, 4294901760
    %258 = vmatpush.msra.mxu0 %v257
    %v259 = vand.u32 %v35, 4294901760
    %v260 = vsub.f32 %v35, %v259
    %v261 = vand.u32 %v260, 4294901760
    %v262 = vsub.f32 %v260, %v261
    %v263 = vand.u32 %v262, 4294901760
    %264 = vmatpush.msra.mxu0 %v263
    %v265 = vand.u32 %v34, 4294901760
    %v266 = vsub.f32 %v34, %v265
    %v267 = vand.u32 %v266, 4294901760
    %v268 = vsub.f32 %v266, %v267
    %v269 = vand.u32 %v268, 4294901760
    %270 = vmatpush.msra.mxu0 %v269
    %v271 = vand.u32 %v33, 4294901760
    %v272 = vsub.f32 %v33, %v271
    %v273 = vand.u32 %v272, 4294901760
    %v274 = vsub.f32 %v272, %v273
    %v275 = vand.u32 %v274, 4294901760
    %276 = vmatpush.msra.mxu0 %v275
    %v277 = vand.u32 %v25, 4294901760
    %278 = vmatmul.f32.gmra.mxu0 %v277
    %v279 = vpop.f32.mrf.mxu0
    %v280 = vadd.f32 %v123, %v279
    %v281 = vand.u32 %v26, 4294901760
    %282 = vmatmul.f32.gmra.mxu0 %v281
    %v283 = vpop.f32.mrf.mxu0
    %v284 = vadd.f32 %v131, %v283
    %v285 = vand.u32 %v27, 4294901760
    %286 = vmatmul.f32.gmra.mxu0 %v285
    %v287 = vpop.f32.mrf.mxu0
    %v288 = vadd.f32 %v139, %v287
    %v289 = vand.u32 %v28, 4294901760
    %290 = vmatmul.f32.gmra.mxu0 %v289
    %v291 = vpop.f32.mrf.mxu0
    %v292 = vadd.f32 %v147, %v291
    %v293 = vand.u32 %v29, 4294901760
    %294 = vmatmul.f32.gmra.mxu0 %v293
    %v295 = vpop.f32.mrf.mxu0
    %v296 = vadd.f32 %v155, %v295
    %v297 = vand.u32 %v30, 4294901760
    %298 = vmatmul.f32.gmra.mxu0 %v297
    %v299 = vpop.f32.mrf.mxu0
    %v300 = vadd.f32 %v163, %v299
    %v301 = vand.u32 %v31, 4294901760
    %302 = vmatmul.f32.gmra.mxu0 %v301
    %v303 = vpop.f32.mrf.mxu0
    %v304 = vadd.f32 %v171, %v303
    %v305 = vand.u32 %v32, 4294901760
    %306 = vmatmul.f32.gmra.mxu0 %v305
    %v307 = vpop.f32.mrf.mxu0
    %v308 = vadd.f32 %v179, %v307
    %309 = vdwg.mxu0
    %v310 = vand.u32 %v48, 4294901760
    %v311 = vsub.f32 %v48, %v310
    %312 = vmatpush.msra.mxu0 %v311
    %v313 = vand.u32 %v47, 4294901760
    %v314 = vsub.f32 %v47, %v313
    %315 = vmatpush.msra.mxu0 %v314
    %v316 = vand.u32 %v46, 4294901760
    %v317 = vsub.f32 %v46, %v316
    %318 = vmatpush.msra.mxu0 %v317
    %v319 = vand.u32 %v45, 4294901760
    %v320 = vsub.f32 %v45, %v319
    %321 = vmatpush.msra.mxu0 %v320
    %v322 = vand.u32 %v44, 4294901760
    %v323 = vsub.f32 %v44, %v322
    %324 = vmatpush.msra.mxu0 %v323
    %v325 = vand.u32 %v43, 4294901760
    %v326 = vsub.f32 %v43, %v325
    %327 = vmatpush.msra.mxu0 %v326
    %v328 = vand.u32 %v42, 4294901760
    %v329 = vsub.f32 %v42, %v328
    %330 = vmatpush.msra.mxu0 %v329
    %v331 = vand.u32 %v41, 4294901760
    %v332 = vsub.f32 %v41, %v331
    %333 = vmatpush.msra.mxu0 %v332
    %v334 = vand.u32 %v40, 4294901760
    %v335 = vsub.f32 %v40, %v334
    %336 = vmatpush.msra.mxu0 %v335
    %v337 = vand.u32 %v39, 4294901760
    %v338 = vsub.f32 %v39, %v337
    %339 = vmatpush.msra.mxu0 %v338
    %v340 = vand.u32 %v38, 4294901760
    %v341 = vsub.f32 %v38, %v340
    %342 = vmatpush.msra.mxu0 %v341
    %v343 = vand.u32 %v37, 4294901760
    %v344 = vsub.f32 %v37, %v343
    %345 = vmatpush.msra.mxu0 %v344
    %v346 = vand.u32 %v36, 4294901760
    %v347 = vsub.f32 %v36, %v346
    %348 = vmatpush.msra.mxu0 %v347
    %v349 = vand.u32 %v35, 4294901760
    %v350 = vsub.f32 %v35, %v349
    %351 = vmatpush.msra.mxu0 %v350
    %v352 = vand.u32 %v34, 4294901760
    %v353 = vsub.f32 %v34, %v352
    %354 = vmatpush.msra.mxu0 %v353
    %v355 = vand.u32 %v33, 4294901760
    %v356 = vsub.f32 %v33, %v355
    %357 = vmatpush.msra.mxu0 %v356
    %v358 = vand.u32 %v25, 4294901760
    %v359 = vsub.f32 %v25, %v358
    %360 = vmatmul.f32.gmra.mxu0 %v359
    %v361 = vpop.f32.mrf.mxu0
    %v362 = vadd.f32 %v280, %v361
    %v363 = vand.u32 %v26, 4294901760
    %v364 = vsub.f32 %v26, %v363
    %365 = vmatmul.f32.gmra.mxu0 %v364
    %v366 = vpop.f32.mrf.mxu0
    %v367 = vadd.f32 %v284, %v366
    %v368 = vand.u32 %v27, 4294901760
    %v369 = vsub.f32 %v27, %v368
    %370 = vmatmul.f32.gmra.mxu0 %v369
    %v371 = vpop.f32.mrf.mxu0
    %v372 = vadd.f32 %v288, %v371
    %v373 = vand.u32 %v28, 4294901760
    %v374 = vsub.f32 %v28, %v373
    %375 = vmatmul.f32.gmra.mxu0 %v374
    %v376 = vpop.f32.mrf.mxu0
    %v377 = vadd.f32 %v292, %v376
    %v378 = vand.u32 %v29, 4294901760
    %v379 = vsub.f32 %v29, %v378
    %380 = vmatmul.f32.gmra.mxu0 %v379
    %v381 = vpop.f32.mrf.mxu0
    %v382 = vadd.f32 %v296, %v381
    %v383 = vand.u32 %v30, 4294901760
    %v384 = vsub.f32 %v30, %v383
    %385 = vmatmul.f32.gmra.mxu0 %v384
    %v386 = vpop.f32.mrf.mxu0
    %v387 = vadd.f32 %v300, %v386
    %v388 = vand.u32 %v31, 4294901760
    %v389 = vsub.f32 %v31, %v388
    %390 = vmatmul.f32.gmra.mxu0 %v389
    %v391 = vpop.f32.mrf.mxu0
    %v392 = vadd.f32 %v304, %v391
    %v393 = vand.u32 %v32, 4294901760
    %v394 = vsub.f32 %v32, %v393
    %395 = vmatmul.f32.gmra.mxu0 %v394
    %v396 = vpop.f32.mrf.mxu0
    %v397 = vadd.f32 %v308, %v396
    %398 = vdwg.mxu0
    %v399 = vand.u32 %v48, 4294901760
    %400 = vmatpush.msra.mxu0 %v399
    %v401 = vand.u32 %v47, 4294901760
    %402 = vmatpush.msra.mxu0 %v401
    %v403 = vand.u32 %v46, 4294901760
    %404 = vmatpush.msra.mxu0 %v403
    %v405 = vand.u32 %v45, 4294901760
    %406 = vmatpush.msra.mxu0 %v405
    %v407 = vand.u32 %v44, 4294901760
    %408 = vmatpush.msra.mxu0 %v407
    %v409 = vand.u32 %v43, 4294901760
    %410 = vmatpush.msra.mxu0 %v409
    %v411 = vand.u32 %v42, 4294901760
    %412 = vmatpush.msra.mxu0 %v411
    %v413 = vand.u32 %v41, 4294901760
    %414 = vmatpush.msra.mxu0 %v413
    %v415 = vand.u32 %v40, 4294901760
    %416 = vmatpush.msra.mxu0 %v415
    %v417 = vand.u32 %v39, 4294901760
    %418 = vmatpush.msra.mxu0 %v417
    %v419 = vand.u32 %v38, 4294901760
    %420 = vmatpush.msra.mxu0 %v419
    %v421 = vand.u32 %v37, 4294901760
    %422 = vmatpush.msra.mxu0 %v421
    %v423 = vand.u32 %v36, 4294901760
    %424 = vmatpush.msra.mxu0 %v423
    %v425 = vand.u32 %v35, 4294901760
    %426 = vmatpush.msra.mxu0 %v425
    %v427 = vand.u32 %v34, 4294901760
    %428 = vmatpush.msra.mxu0 %v427
    %v429 = vand.u32 %v33, 4294901760
    %430 = vmatpush.msra.mxu0 %v429
    %v431 = vand.u32 %v25, 4294901760
    %v432 = vsub.f32 %v25, %v431
    %v433 = vand.u32 %v432, 4294901760
    %434 = vmatmul.f32.gmra.mxu0 %v433
    %v435 = vpop.f32.mrf.mxu0
    %v436 = vadd.f32 %v362, %v435
    %v437 = vand.u32 %v26, 4294901760
    %v438 = vsub.f32 %v26, %v437
    %v439 = vand.u32 %v438, 4294901760
    %440 = vmatmul.f32.gmra.mxu0 %v439
    %v441 = vpop.f32.mrf.mxu0
    %v442 = vadd.f32 %v367, %v441
    %v443 = vand.u32 %v27, 4294901760
    %v444 = vsub.f32 %v27, %v443
    %v445 = vand.u32 %v444, 4294901760
    %446 = vmatmul.f32.gmra.mxu0 %v445
    %v447 = vpop.f32.mrf.mxu0
    %v448 = vadd.f32 %v372, %v447
    %v449 = vand.u32 %v28, 4294901760
    %v450 = vsub.f32 %v28, %v449
    %v451 = vand.u32 %v450, 4294901760
    %452 = vmatmul.f32.gmra.mxu0 %v451
    %v453 = vpop.f32.mrf.mxu0
    %v454 = vadd.f32 %v377, %v453
    %v455 = vand.u32 %v29, 4294901760
    %v456 = vsub.f32 %v29, %v455
    %v457 = vand.u32 %v456, 4294901760
    %458 = vmatmul.f32.gmra.mxu0 %v457
    %v459 = vpop.f32.mrf.mxu0
    %v460 = vadd.f32 %v382, %v459
    %v461 = vand.u32 %v30, 4294901760
    %v462 = vsub.f32 %v30, %v461
    %v463 = vand.u32 %v462, 4294901760
    %464 = vmatmul.f32.gmra.mxu0 %v463
    %v465 = vpop.f32.mrf.mxu0
    %v466 = vadd.f32 %v387, %v465
    %v467 = vand.u32 %v31, 4294901760
    %v468 = vsub.f32 %v31, %v467
    %v469 = vand.u32 %v468, 4294901760
    %470 = vmatmul.f32.gmra.mxu0 %v469
    %v471 = vpop.f32.mrf.mxu0
    %v472 = vadd.f32 %v392, %v471
    %v473 = vand.u32 %v32, 4294901760
    %v474 = vsub.f32 %v32, %v473
    %v475 = vand.u32 %v474, 4294901760
    %476 = vmatmul.f32.gmra.mxu0 %v475
    %v477 = vpop.f32.mrf.mxu0
    %v478 = vadd.f32 %v397, %v477
    %479 = vdwg.mxu0
    %v480 = vand.u32 %v48, 4294901760
    %v481 = vsub.f32 %v48, %v480
    %v482 = vand.u32 %v481, 4294901760
    %483 = vmatpush.msra.mxu0 %v482
    %v484 = vand.u32 %v47, 4294901760
    %v485 = vsub.f32 %v47, %v484
    %v486 = vand.u32 %v485, 4294901760
    %487 = vmatpush.msra.mxu0 %v486
    %v488 = vand.u32 %v46, 4294901760
    %v489 = vsub.f32 %v46, %v488
    %v490 = vand.u32 %v489, 4294901760
    %491 = vmatpush.msra.mxu0 %v490
    %v492 = vand.u32 %v45, 4294901760
    %v493 = vsub.f32 %v45, %v492
    %v494 = vand.u32 %v493, 4294901760
    %495 = vmatpush.msra.mxu0 %v494
    %v496 = vand.u32 %v44, 4294901760
    %v497 = vsub.f32 %v44, %v496
    %v498 = vand.u32 %v497, 4294901760
    %499 = vmatpush.msra.mxu0 %v498
    %v500 = vand.u32 %v43, 4294901760
    %v501 = vsub.f32 %v43, %v500
    %v502 = vand.u32 %v501, 4294901760
    %503 = vmatpush.msra.mxu0 %v502
    %v504 = vand.u32 %v42, 4294901760
    %v505 = vsub.f32 %v42, %v504
    %v506 = vand.u32 %v505, 4294901760
    %507 = vmatpush.msra.mxu0 %v506
    %v508 = vand.u32 %v41, 4294901760
    %v509 = vsub.f32 %v41, %v508
    %v510 = vand.u32 %v509, 4294901760
    %511 = vmatpush.msra.mxu0 %v510
    %v512 = vand.u32 %v40, 4294901760
    %v513 = vsub.f32 %v40, %v512
    %v514 = vand.u32 %v513, 4294901760
    %515 = vmatpush.msra.mxu0 %v514
    %v516 = vand.u32 %v39, 4294901760
    %v517 = vsub.f32 %v39, %v516
    %v518 = vand.u32 %v517, 4294901760
    %519 = vmatpush.msra.mxu0 %v518
    %v520 = vand.u32 %v38, 4294901760
    %v521 = vsub.f32 %v38, %v520
    %v522 = vand.u32 %v521, 4294901760
    %523 = vmatpush.msra.mxu0 %v522
    %v524 = vand.u32 %v37, 4294901760
    %v525 = vsub.f32 %v37, %v524
    %v526 = vand.u32 %v525, 4294901760
    %527 = vmatpush.msra.mxu0 %v526
    %v528 = vand.u32 %v36, 4294901760
    %v529 = vsub.f32 %v36, %v528
    %v530 = vand.u32 %v529, 4294901760
    %531 = vmatpush.msra.mxu0 %v530
    %v532 = vand.u32 %v35, 4294901760
    %v533 = vsub.f32 %v35, %v532
    %v534 = vand.u32 %v533, 4294901760
    %535 = vmatpush.msra.mxu0 %v534
    %v536 = vand.u32 %v34, 4294901760
    %v537 = vsub.f32 %v34, %v536
    %v538 = vand.u32 %v537, 4294901760
    %539 = vmatpush.msra.mxu0 %v538
    %v540 = vand.u32 %v33, 4294901760
    %v541 = vsub.f32 %v33, %v540
    %v542 = vand.u32 %v541, 4294901760
    %543 = vmatpush.msra.mxu0 %v542
    %v544 = vand.u32 %v25, 4294901760
    %545 = vmatmul.f32.gmra.mxu0 %v544
    %v546 = vpop.f32.mrf.mxu0
    %v547 = vadd.f32 %v436, %v546
    %v548 = vand.u32 %v26, 4294901760
    %549 = vmatmul.f32.gmra.mxu0 %v548
    %v550 = vpop.f32.mrf.mxu0
    %v551 = vadd.f32 %v442, %v550
    %v552 = vand.u32 %v27, 4294901760
    %553 = vmatmul.f32.gmra.mxu0 %v552
    %v554 = vpop.f32.mrf.mxu0
    %v555 = vadd.f32 %v448, %v554
    %v556 = vand.u32 %v28, 4294901760
    %557 = vmatmul.f32.gmra.mxu0 %v556
    %v558 = vpop.f32.mrf.mxu0
    %v559 = vadd.f32 %v454, %v558
    %v560 = vand.u32 %v29, 4294901760
    %561 = vmatmul.f32.gmra.mxu0 %v560
    %v562 = vpop.f32.mrf.mxu0
    %v563 = vadd.f32 %v460, %v562
    %v564 = vand.u32 %v30, 4294901760
    %565 = vmatmul.f32.gmra.mxu0 %v564
    %v566 = vpop.f32.mrf.mxu0
    %v567 = vadd.f32 %v466, %v566
    %v568 = vand.u32 %v31, 4294901760
    %569 = vmatmul.f32.gmra.mxu0 %v568
    %v570 = vpop.f32.mrf.mxu0
    %v571 = vadd.f32 %v472, %v570
    %v572 = vand.u32 %v32, 4294901760
    %573 = vmatmul.f32.gmra.mxu0 %v572
    %v574 = vpop.f32.mrf.mxu0
    %v575 = vadd.f32 %v478, %v574
    %576 = vdwg.mxu0
    %v577 = vand.u32 %v48, 4294901760
    %578 = vmatpush.msra.mxu0 %v577
    %v579 = vand.u32 %v47, 4294901760
    %580 = vmatpush.msra.mxu0 %v579
    %v581 = vand.u32 %v46, 4294901760
    %582 = vmatpush.msra.mxu0 %v581
    %v583 = vand.u32 %v45, 4294901760
    %584 = vmatpush.msra.mxu0 %v583
    %v585 = vand.u32 %v44, 4294901760
    %586 = vmatpush.msra.mxu0 %v585
    %v587 = vand.u32 %v43, 4294901760
    %588 = vmatpush.msra.mxu0 %v587
    %v589 = vand.u32 %v42, 4294901760
    %590 = vmatpush.msra.mxu0 %v589
    %v591 = vand.u32 %v41, 4294901760
    %592 = vmatpush.msra.mxu0 %v591
    %v593 = vand.u32 %v40, 4294901760
    %594 = vmatpush.msra.mxu0 %v593
    %v595 = vand.u32 %v39, 4294901760
    %596 = vmatpush.msra.mxu0 %v595
    %v597 = vand.u32 %v38, 4294901760
    %598 = vmatpush.msra.mxu0 %v597
    %v599 = vand.u32 %v37, 4294901760
    %600 = vmatpush.msra.mxu0 %v599
    %v601 = vand.u32 %v36, 4294901760
    %602 = vmatpush.msra.mxu0 %v601
    %v603 = vand.u32 %v35, 4294901760
    %604 = vmatpush.msra.mxu0 %v603
    %v605 = vand.u32 %v34, 4294901760
    %606 = vmatpush.msra.mxu0 %v605
    %v607 = vand.u32 %v33, 4294901760
    %608 = vmatpush.msra.mxu0 %v607
    %v609 = vand.u32 %v25, 4294901760
    %610 = vmatmul.f32.gmra.mxu0 %v609
    %v611 = vpop.f32.mrf.mxu0
    %v612 = vadd.f32 %v547, %v611
    %v613 = vand.u32 %v26, 4294901760
    %614 = vmatmul.f32.gmra.mxu0 %v613
    %v615 = vpop.f32.mrf.mxu0
    %v616 = vadd.f32 %v551, %v615
    %v617 = vand.u32 %v27, 4294901760
    %618 = vmatmul.f32.gmra.mxu0 %v617
    %v619 = vpop.f32.mrf.mxu0
    %v620 = vadd.f32 %v555, %v619
    %v621 = vand.u32 %v28, 4294901760
    %622 = vmatmul.f32.gmra.mxu0 %v621
    %v623 = vpop.f32.mrf.mxu0
    %v624 = vadd.f32 %v559, %v623
    %v625 = vand.u32 %v29, 4294901760
    %626 = vmatmul.f32.gmra.mxu0 %v625
    %v627 = vpop.f32.mrf.mxu0
    %v628 = vadd.f32 %v563, %v627
    %v629 = vand.u32 %v30, 4294901760
    %630 = vmatmul.f32.gmra.mxu0 %v629
    %v631 = vpop.f32.mrf.mxu0
    %v632 = vadd.f32 %v567, %v631
    %v633 = vand.u32 %v31, 4294901760
    %634 = vmatmul.f32.gmra.mxu0 %v633
    %v635 = vpop.f32.mrf.mxu0
    %v636 = vadd.f32 %v571, %v635
    %v637 = vand.u32 %v32, 4294901760
    %638 = vmatmul.f32.gmra.mxu0 %v637
    %v639 = vpop.f32.mrf.mxu0
    %v640 = vadd.f32 %v575, %v639
    %641 = vdwg.mxu0
    %v642 = vand.u32 %v64, 4294901760
    %643 = vmatpush.msra.mxu0 %v642
    %v644 = vand.u32 %v63, 4294901760
    %645 = vmatpush.msra.mxu0 %v644
    %v646 = vand.u32 %v62, 4294901760
    %647 = vmatpush.msra.mxu0 %v646
    %v648 = vand.u32 %v61, 4294901760
    %649 = vmatpush.msra.mxu0 %v648
    %v650 = vand.u32 %v60, 4294901760
    %651 = vmatpush.msra.mxu0 %v650
    %v652 = vand.u32 %v59, 4294901760
    %653 = vmatpush.msra.mxu0 %v652
    %v654 = vand.u32 %v58, 4294901760
    %655 = vmatpush.msra.mxu0 %v654
    %v656 = vand.u32 %v57, 4294901760
    %657 = vmatpush.msra.mxu0 %v656
    %v658 = vand.u32 %v56, 4294901760
    %659 = vmatpush.msra.mxu0 %v658
    %v660 = vand.u32 %v55, 4294901760
    %661 = vmatpush.msra.mxu0 %v660
    %v662 = vand.u32 %v54, 4294901760
    %663 = vmatpush.msra.mxu0 %v662
    %v664 = vand.u32 %v53, 4294901760
    %665 = vmatpush.msra.mxu0 %v664
    %v666 = vand.u32 %v52, 4294901760
    %667 = vmatpush.msra.mxu0 %v666
    %v668 = vand.u32 %v51, 4294901760
    %669 = vmatpush.msra.mxu0 %v668
    %v670 = vand.u32 %v50, 4294901760
    %671 = vmatpush.msra.mxu0 %v670
    %v672 = vand.u32 %v49, 4294901760
    %673 = vmatpush.msra.mxu0 %v672
    %674 = vmatmul.f32.gmra.mxu0 0.0
    %v675 = vpop.f32.mrf.mxu0
    %v676 = vadd.f32 0.0, %v675
    %677 = vdwg.mxu0
    %v678 = vand.u32 %v64, 4294901760
    %v679 = vsub.f32 %v64, %v678
    %v680 = vand.u32 %v679, 4294901760
    %v681 = vsub.f32 %v679, %v680
    %v682 = vand.u32 %v681, 4294901760
    %683 = vmatpush.msra.mxu0 %v682
    %v684 = vand.u32 %v63, 4294901760
    %v685 = vsub.f32 %v63, %v684
    %v686 = vand.u32 %v685, 4294901760
    %v687 = vsub.f32 %v685, %v686
    %v688 = vand.u32 %v687, 4294901760
    %689 = vmatpush.msra.mxu0 %v688
    %v690 = vand.u32 %v62, 4294901760
    %v691 = vsub.f32 %v62, %v690
    %v692 = vand.u32 %v691, 4294901760
    %v693 = vsub.f32 %v691, %v692
    %v694 = vand.u32 %v693, 4294901760
    %695 = vmatpush.msra.mxu0 %v694
    %v696 = vand.u32 %v61, 4294901760
    %v697 = vsub.f32 %v61, %v696
    %v698 = vand.u32 %v697, 4294901760
    %v699 = vsub.f32 %v697, %v698
    %v700 = vand.u32 %v699, 4294901760
    %701 = vmatpush.msra.mxu0 %v700
    %v702 = vand.u32 %v60, 4294901760
    %v703 = vsub.f32 %v60, %v702
    %v704 = vand.u32 %v703, 4294901760
    %v705 = vsub.f32 %v703, %v704
    %v706 = vand.u32 %v705, 4294901760
    %707 = vmatpush.msra.mxu0 %v706
    %v708 = vand.u32 %v59, 4294901760
    %v709 = vsub.f32 %v59, %v708
    %v710 = vand.u32 %v709, 4294901760
    %v711 = vsub.f32 %v709, %v710
    %v712 = vand.u32 %v711, 4294901760
    %713 = vmatpush.msra.mxu0 %v712
    %v714 = vand.u32 %v58, 4294901760
    %v715 = vsub.f32 %v58, %v714
    %v716 = vand.u32 %v715, 4294901760
    %v717 = vsub.f32 %v715, %v716
    %v718 = vand.u32 %v717, 4294901760
    %719 = vmatpush.msra.mxu0 %v718
    %v720 = vand.u32 %v57, 4294901760
    %v721 = vsub.f32 %v57, %v720
    %v722 = vand.u32 %v721, 4294901760
    %v723 = vsub.f32 %v721, %v722
    %v724 = vand.u32 %v723, 4294901760
    %725 = vmatpush.msra.mxu0 %v724
    %v726 = vand.u32 %v56, 4294901760
    %v727 = vsub.f32 %v56, %v726
    %v728 = vand.u32 %v727, 4294901760
    %v729 = vsub.f32 %v727, %v728
    %v730 = vand.u32 %v729, 4294901760
    %731 = vmatpush.msra.mxu0 %v730
    %v732 = vand.u32 %v55, 4294901760
    %v733 = vsub.f32 %v55, %v732
    %v734 = vand.u32 %v733, 4294901760
    %v735 = vsub.f32 %v733, %v734
    %v736 = vand.u32 %v735, 4294901760
    %737 = vmatpush.msra.mxu0 %v736
    %v738 = vand.u32 %v54, 4294901760
    %v739 = vsub.f32 %v54, %v738
    %v740 = vand.u32 %v739, 4294901760
    %v741 = vsub.f32 %v739, %v740
    %v742 = vand.u32 %v741, 4294901760
    %743 = vmatpush.msra.mxu0 %v742
    %v744 = vand.u32 %v53, 4294901760
    %v745 = vsub.f32 %v53, %v744
    %v746 = vand.u32 %v745, 4294901760
    %v747 = vsub.f32 %v745, %v746
    %v748 = vand.u32 %v747, 4294901760
    %749 = vmatpush.msra.mxu0 %v748
    %v750 = vand.u32 %v52, 4294901760
    %v751 = vsub.f32 %v52, %v750
    %v752 = vand.u32 %v751, 4294901760
    %v753 = vsub.f32 %v751, %v752
    %v754 = vand.u32 %v753, 4294901760
    %755 = vmatpush.msra.mxu0 %v754
    %v756 = vand.u32 %v51, 4294901760
    %v757 = vsub.f32 %v51, %v756
    %v758 = vand.u32 %v757, 4294901760
    %v759 = vsub.f32 %v757, %v758
    %v760 = vand.u32 %v759, 4294901760
    %761 = vmatpush.msra.mxu0 %v760
    %v762 = vand.u32 %v50, 4294901760
    %v763 = vsub.f32 %v50, %v762
    %v764 = vand.u32 %v763, 4294901760
    %v765 = vsub.f32 %v763, %v764
    %v766 = vand.u32 %v765, 4294901760
    %767 = vmatpush.msra.mxu0 %v766
    %v768 = vand.u32 %v49, 4294901760
    %v769 = vsub.f32 %v49, %v768
    %v770 = vand.u32 %v769, 4294901760
    %v771 = vsub.f32 %v769, %v770
    %v772 = vand.u32 %v771, 4294901760
    %773 = vmatpush.msra.mxu0 %v772
    %774 = vmatmul.f32.gmra.mxu0 0.0
    %v775 = vpop.f32.mrf.mxu0
    %v776 = vadd.f32 %v676, %v775
    %777 = vdwg.mxu0
    %v778 = vand.u32 %v64, 4294901760
    %v779 = vsub.f32 %v64, %v778
    %780 = vmatpush.msra.mxu0 %v779
    %v781 = vand.u32 %v63, 4294901760
    %v782 = vsub.f32 %v63, %v781
    %783 = vmatpush.msra.mxu0 %v782
    %v784 = vand.u32 %v62, 4294901760
    %v785 = vsub.f32 %v62, %v784
    %786 = vmatpush.msra.mxu0 %v785
    %v787 = vand.u32 %v61, 4294901760
    %v788 = vsub.f32 %v61, %v787
    %789 = vmatpush.msra.mxu0 %v788
    %v790 = vand.u32 %v60, 4294901760
    %v791 = vsub.f32 %v60, %v790
    %792 = vmatpush.msra.mxu0 %v791
    %v793 = vand.u32 %v59, 4294901760
    %v794 = vsub.f32 %v59, %v793
    %795 = vmatpush.msra.mxu0 %v794
    %v796 = vand.u32 %v58, 4294901760
    %v797 = vsub.f32 %v58, %v796
    %798 = vmatpush.msra.mxu0 %v797
    %v799 = vand.u32 %v57, 4294901760
    %v800 = vsub.f32 %v57, %v799
    %801 = vmatpush.msra.mxu0 %v800
    %v802 = vand.u32 %v56, 4294901760
    %v803 = vsub.f32 %v56, %v802
    %804 = vmatpush.msra.mxu0 %v803
    %v805 = vand.u32 %v55, 4294901760
    %v806 = vsub.f32 %v55, %v805
    %807 = vmatpush.msra.mxu0 %v806
    %v808 = vand.u32 %v54, 4294901760
    %v809 = vsub.f32 %v54, %v808
    %810 = vmatpush.msra.mxu0 %v809
    %v811 = vand.u32 %v53, 4294901760
    %v812 = vsub.f32 %v53, %v811
    %813 = vmatpush.msra.mxu0 %v812
    %v814 = vand.u32 %v52, 4294901760
    %v815 = vsub.f32 %v52, %v814
    %816 = vmatpush.msra.mxu0 %v815
    %v817 = vand.u32 %v51, 4294901760
    %v818 = vsub.f32 %v51, %v817
    %819 = vmatpush.msra.mxu0 %v818
    %v820 = vand.u32 %v50, 4294901760
    %v821 = vsub.f32 %v50, %v820
    %822 = vmatpush.msra.mxu0 %v821
    %v823 = vand.u32 %v49, 4294901760
    %v824 = vsub.f32 %v49, %v823
    %825 = vmatpush.msra.mxu0 %v824
    %826 = vmatmul.f32.gmra.mxu0 0.0
    %v827 = vpop.f32.mrf.mxu0
    %v828 = vadd.f32 %v776, %v827
    %829 = vdwg.mxu0
    %v830 = vand.u32 %v64, 4294901760
    %831 = vmatpush.msra.mxu0 %v830
    %v832 = vand.u32 %v63, 4294901760
    %833 = vmatpush.msra.mxu0 %v832
    %v834 = vand.u32 %v62, 4294901760
    %835 = vmatpush.msra.mxu0 %v834
    %v836 = vand.u32 %v61, 4294901760
    %837 = vmatpush.msra.mxu0 %v836
    %v838 = vand.u32 %v60, 4294901760
    %839 = vmatpush.msra.mxu0 %v838
    %v840 = vand.u32 %v59, 4294901760
    %841 = vmatpush.msra.mxu0 %v840
    %v842 = vand.u32 %v58, 4294901760
    %843 = vmatpush.msra.mxu0 %v842
    %v844 = vand.u32 %v57, 4294901760
    %845 = vmatpush.msra.mxu0 %v844
    %v846 = vand.u32 %v56, 4294901760
    %847 = vmatpush.msra.mxu0 %v846
    %v848 = vand.u32 %v55, 4294901760
    %849 = vmatpush.msra.mxu0 %v848
    %v850 = vand.u32 %v54, 4294901760
    %851 = vmatpush.msra.mxu0 %v850
    %v852 = vand.u32 %v53, 4294901760
    %853 = vmatpush.msra.mxu0 %v852
    %v854 = vand.u32 %v52, 4294901760
    %855 = vmatpush.msra.mxu0 %v854
    %v856 = vand.u32 %v51, 4294901760
    %857 = vmatpush.msra.mxu0 %v856
    %v858 = vand.u32 %v50, 4294901760
    %859 = vmatpush.msra.mxu0 %v858
    %v860 = vand.u32 %v49, 4294901760
    %861 = vmatpush.msra.mxu0 %v860
    %862 = vmatmul.f32.gmra.mxu0 0.0
    %v863 = vpop.f32.mrf.mxu0
    %v864 = vadd.f32 %v828, %v863
    %865 = vdwg.mxu0
    %v866 = vand.u32 %v64, 4294901760
    %v867 = vsub.f32 %v64, %v866
    %v868 = vand.u32 %v867, 4294901760
    %869 = vmatpush.msra.mxu0 %v868
    %v870 = vand.u32 %v63, 4294901760
    %v871 = vsub.f32 %v63, %v870
    %v872 = vand.u32 %v871, 4294901760
    %873 = vmatpush.msra.mxu0 %v872
    %v874 = vand.u32 %v62, 4294901760
    %v875 = vsub.f32 %v62, %v874
    %v876 = vand.u32 %v875, 4294901760
    %877 = vmatpush.msra.mxu0 %v876
    %v878 = vand.u32 %v61, 4294901760
    %v879 = vsub.f32 %v61, %v878
    %v880 = vand.u32 %v879, 4294901760
    %881 = vmatpush.msra.mxu0 %v880
    %v882 = vand.u32 %v60, 4294901760
    %v883 = vsub.f32 %v60, %v882
    %v884 = vand.u32 %v883, 4294901760
    %885 = vmatpush.msra.mxu0 %v884
    %v886 = vand.u32 %v59, 4294901760
    %v887 = vsub.f32 %v59, %v886
    %v888 = vand.u32 %v887, 4294901760
    %889 = vmatpush.msra.mxu0 %v888
    %v890 = vand.u32 %v58, 4294901760
    %v891 = vsub.f32 %v58, %v890
    %v892 = vand.u32 %v891, 4294901760
    %893 = vmatpush.msra.mxu0 %v892
    %v894 = vand.u32 %v57, 4294901760
    %v895 = vsub.f32 %v57, %v894
    %v896 = vand.u32 %v895, 4294901760
    %897 = vmatpush.msra.mxu0 %v896
    %v898 = vand.u32 %v56, 4294901760
    %v899 = vsub.f32 %v56, %v898
    %v900 = vand.u32 %v899, 4294901760
    %901 = vmatpush.msra.mxu0 %v900
    %v902 = vand.u32 %v55, 4294901760
    %v903 = vsub.f32 %v55, %v902
    %v904 = vand.u32 %v903, 4294901760
    %905 = vmatpush.msra.mxu0 %v904
    %v906 = vand.u32 %v54, 4294901760
    %v907 = vsub.f32 %v54, %v906
    %v908 = vand.u32 %v907, 4294901760
    %909 = vmatpush.msra.mxu0 %v908
    %v910 = vand.u32 %v53, 4294901760
    %v911 = vsub.f32 %v53, %v910
    %v912 = vand.u32 %v911, 4294901760
    %913 = vmatpush.msra.mxu0 %v912
    %v914 = vand.u32 %v52, 4294901760
    %v915 = vsub.f32 %v52, %v914
    %v916 = vand.u32 %v915, 4294901760
    %917 = vmatpush.msra.mxu0 %v916
    %v918 = vand.u32 %v51, 4294901760
    %v919 = vsub.f32 %v51, %v918
    %v920 = vand.u32 %v919, 4294901760
    %921 = vmatpush.msra.mxu0 %v920
    %v922 = vand.u32 %v50, 4294901760
    %v923 = vsub.f32 %v50, %v922
    %v924 = vand.u32 %v923, 4294901760
    %925 = vmatpush.msra.mxu0 %v924
    %v926 = vand.u32 %v49, 4294901760
    %v927 = vsub.f32 %v49, %v926
    %v928 = vand.u32 %v927, 4294901760
    %929 = vmatpush.msra.mxu0 %v928
    %930 = vmatmul.f32.gmra.mxu0 0.0
    %v931 = vpop.f32.mrf.mxu0
    %v932 = vadd.f32 %v864, %v931
    %933 = vdwg.mxu0
    %v934 = vand.u32 %v64, 4294901760
    %935 = vmatpush.msra.mxu0 %v934
    %v936 = vand.u32 %v63, 4294901760
    %937 = vmatpush.msra.mxu0 %v936
    %v938 = vand.u32 %v62, 4294901760
    %939 = vmatpush.msra.mxu0 %v938
    %v940 = vand.u32 %v61, 4294901760
    %941 = vmatpush.msra.mxu0 %v940
    %v942 = vand.u32 %v60, 4294901760
    %943 = vmatpush.msra.mxu0 %v942
    %v944 = vand.u32 %v59, 4294901760
    %945 = vmatpush.msra.mxu0 %v944
    %v946 = vand.u32 %v58, 4294901760
    %947 = vmatpush.msra.mxu0 %v946
    %v948 = vand.u32 %v57, 4294901760
    %949 = vmatpush.msra.mxu0 %v948
    %v950 = vand.u32 %v56, 4294901760
    %951 = vmatpush.msra.mxu0 %v950
    %v952 = vand.u32 %v55, 4294901760
    %953 = vmatpush.msra.mxu0 %v952
    %v954 = vand.u32 %v54, 4294901760
    %955 = vmatpush.msra.mxu0 %v954
    %v956 = vand.u32 %v53, 4294901760
    %957 = vmatpush.msra.mxu0 %v956
    %v958 = vand.u32 %v52, 4294901760
    %959 = vmatpush.msra.mxu0 %v958
    %v960 = vand.u32 %v51, 4294901760
    %961 = vmatpush.msra.mxu0 %v960
    %v962 = vand.u32 %v50, 4294901760
    %963 = vmatpush.msra.mxu0 %v962
    %v964 = vand.u32 %v49, 4294901760
    %965 = vmatpush.msra.mxu0 %v964
    %966 = vmatmul.f32.gmra.mxu0 0.0
    %v967 = vpop.f32.mrf.mxu0
    %v968 = vadd.f32 %v932, %v967
    %969 = vdwg.mxu0
    %v970 = vadd.f32 %v612, %v968
    %v971 = vtanh.pop %v970
    %v972 = vand.u32 %v64, 4294901760
    %973 = vmatpush.msra.mxu0 %v972
    %v974 = vand.u32 %v63, 4294901760
    %975 = vmatpush.msra.mxu0 %v974
    %v976 = vand.u32 %v62, 4294901760
    %977 = vmatpush.msra.mxu0 %v976
    %v978 = vand.u32 %v61, 4294901760
    %979 = vmatpush.msra.mxu0 %v978
    %v980 = vand.u32 %v60, 4294901760
    %981 = vmatpush.msra.mxu0 %v980
    %v982 = vand.u32 %v59, 4294901760
    %983 = vmatpush.msra.mxu0 %v982
    %v984 = vand.u32 %v58, 4294901760
    %985 = vmatpush.msra.mxu0 %v984
    %v986 = vand.u32 %v57, 4294901760
    %987 = vmatpush.msra.mxu0 %v986
    %v988 = vand.u32 %v56, 4294901760
    %989 = vmatpush.msra.mxu0 %v988
    %v990 = vand.u32 %v55, 4294901760
    %991 = vmatpush.msra.mxu0 %v990
    %v992 = vand.u32 %v54, 4294901760
    %993 = vmatpush.msra.mxu0 %v992
    %v994 = vand.u32 %v53, 4294901760
    %995 = vmatpush.msra.mxu0 %v994
    %v996 = vand.u32 %v52, 4294901760
    %997 = vmatpush.msra.mxu0 %v996
    %v998 = vand.u32 %v51, 4294901760
    %999 = vmatpush.msra.mxu0 %v998
    %v1000 = vand.u32 %v50, 4294901760
    %1001 = vmatpush.msra.mxu0 %v1000
    %v1002 = vand.u32 %v49, 4294901760
    %1003 = vmatpush.msra.mxu0 %v1002
    %v1004 = vand.u32 %v971, 4294901760
    %v1005 = vsub.f32 %v971, %v1004
    %v1006 = vand.u32 %v1005, 4294901760
    %v1007 = vsub.f32 %v1005, %v1006
    %v1008 = vand.u32 %v1007, 4294901760
    %1009 = vmatmul.f32.gmra.mxu0 %v1008
    %v1010 = vpop.f32.mrf.mxu0
    %v1011 = vadd.f32 0.0, %v1010
    %1012 = vdwg.mxu0
    %v1013 = vand.u32 %v64, 4294901760
    %v1014 = vsub.f32 %v64, %v1013
    %v1015 = vand.u32 %v1014, 4294901760
    %v1016 = vsub.f32 %v1014, %v1015
    %v1017 = vand.u32 %v1016, 4294901760
    %1018 = vmatpush.msra.mxu0 %v1017
    %v1019 = vand.u32 %v63, 4294901760
    %v1020 = vsub.f32 %v63, %v1019
    %v1021 = vand.u32 %v1020, 4294901760
    %v1022 = vsub.f32 %v1020, %v1021
    %v1023 = vand.u32 %v1022, 4294901760
    %1024 = vmatpush.msra.mxu0 %v1023
    %v1025 = vand.u32 %v62, 4294901760
    %v1026 = vsub.f32 %v62, %v1025
    %v1027 = vand.u32 %v1026, 4294901760
    %v1028 = vsub.f32 %v1026, %v1027
    %v1029 = vand.u32 %v1028, 4294901760
    %1030 = vmatpush.msra.mxu0 %v1029
    %v1031 = vand.u32 %v61, 4294901760
    %v1032 = vsub.f32 %v61, %v1031
    %v1033 = vand.u32 %v1032, 4294901760
    %v1034 = vsub.f32 %v1032, %v1033
    %v1035 = vand.u32 %v1034, 4294901760
    %1036 = vmatpush.msra.mxu0 %v1035
    %v1037 = vand.u32 %v60, 4294901760
    %v1038 = vsub.f32 %v60, %v1037
    %v1039 = vand.u32 %v1038, 4294901760
    %v1040 = vsub.f32 %v1038, %v1039
    %v1041 = vand.u32 %v1040, 4294901760
    %1042 = vmatpush.msra.mxu0 %v1041
    %v1043 = vand.u32 %v59, 4294901760
    %v1044 = vsub.f32 %v59, %v1043
    %v1045 = vand.u32 %v1044, 4294901760
    %v1046 = vsub.f32 %v1044, %v1045
    %v1047 = vand.u32 %v1046, 4294901760
    %1048 = vmatpush.msra.mxu0 %v1047
    %v1049 = vand.u32 %v58, 4294901760
    %v1050 = vsub.f32 %v58, %v1049
    %v1051 = vand.u32 %v1050, 4294901760
    %v1052 = vsub.f32 %v1050, %v1051
    %v1053 = vand.u32 %v1052, 4294901760
    %1054 = vmatpush.msra.mxu0 %v1053
    %v1055 = vand.u32 %v57, 4294901760
    %v1056 = vsub.f32 %v57, %v1055
    %v1057 = vand.u32 %v1056, 4294901760
    %v1058 = vsub.f32 %v1056, %v1057
    %v1059 = vand.u32 %v1058, 4294901760
    %1060 = vmatpush.msra.mxu0 %v1059
    %v1061 = vand.u32 %v56, 4294901760
    %v1062 = vsub.f32 %v56, %v1061
    %v1063 = vand.u32 %v1062, 4294901760
    %v1064 = vsub.f32 %v1062, %v1063
    %v1065 = vand.u32 %v1064, 4294901760
    %1066 = vmatpush.msra.mxu0 %v1065
    %v1067 = vand.u32 %v55, 4294901760
    %v1068 = vsub.f32 %v55, %v1067
    %v1069 = vand.u32 %v1068, 4294901760
    %v1070 = vsub.f32 %v1068, %v1069
    %v1071 = vand.u32 %v1070, 4294901760
    %1072 = vmatpush.msra.mxu0 %v1071
    %v1073 = vand.u32 %v54, 4294901760
    %v1074 = vsub.f32 %v54, %v1073
    %v1075 = vand.u32 %v1074, 4294901760
    %v1076 = vsub.f32 %v1074, %v1075
    %v1077 = vand.u32 %v1076, 4294901760
    %1078 = vmatpush.msra.mxu0 %v1077
    %v1079 = vand.u32 %v53, 4294901760
    %v1080 = vsub.f32 %v53, %v1079
    %v1081 = vand.u32 %v1080, 4294901760
    %v1082 = vsub.f32 %v1080, %v1081
    %v1083 = vand.u32 %v1082, 4294901760
    %1084 = vmatpush.msra.mxu0 %v1083
    %v1085 = vand.u32 %v52, 4294901760
    %v1086 = vsub.f32 %v52, %v1085
    %v1087 = vand.u32 %v1086, 4294901760
    %v1088 = vsub.f32 %v1086, %v1087
    %v1089 = vand.u32 %v1088, 4294901760
    %1090 = vmatpush.msra.mxu0 %v1089
    %v1091 = vand.u32 %v51, 4294901760
    %v1092 = vsub.f32 %v51, %v1091
    %v1093 = vand.u32 %v1092, 4294901760
    %v1094 = vsub.f32 %v1092, %v1093
    %v1095 = vand.u32 %v1094, 4294901760
    %1096 = vmatpush.msra.mxu0 %v1095
    %v1097 = vand.u32 %v50, 4294901760
    %v1098 = vsub.f32 %v50, %v1097
    %v1099 = vand.u32 %v1098, 4294901760
    %v1100 = vsub.f32 %v1098, %v1099
    %v1101 = vand.u32 %v1100, 4294901760
    %1102 = vmatpush.msra.mxu0 %v1101
    %v1103 = vand.u32 %v49, 4294901760
    %v1104 = vsub.f32 %v49, %v1103
    %v1105 = vand.u32 %v1104, 4294901760
    %v1106 = vsub.f32 %v1104, %v1105
    %v1107 = vand.u32 %v1106, 4294901760
    %1108 = vmatpush.msra.mxu0 %v1107
    %v1109 = vand.u32 %v971, 4294901760
    %1110 = vmatmul.f32.gmra.mxu0 %v1109
    %v1111 = vpop.f32.mrf.mxu0
    %v1112 = vadd.f32 %v1011, %v1111
    %1113 = vdwg.mxu0
    %v1114 = vand.u32 %v64, 4294901760
    %v1115 = vsub.f32 %v64, %v1114
    %1116 = vmatpush.msra.mxu0 %v1115
    %v1117 = vand.u32 %v63, 4294901760
    %v1118 = vsub.f32 %v63, %v1117
    %1119 = vmatpush.msra.mxu0 %v1118
    %v1120 = vand.u32 %v62, 4294901760
    %v1121 = vsub.f32 %v62, %v1120
    %1122 = vmatpush.msra.mxu0 %v1121
    %v1123 = vand.u32 %v61, 4294901760
    %v1124 = vsub.f32 %v61, %v1123
    %1125 = vmatpush.msra.mxu0 %v1124
    %v1126 = vand.u32 %v60, 4294901760
    %v1127 = vsub.f32 %v60, %v1126
    %1128 = vmatpush.msra.mxu0 %v1127
    %v1129 = vand.u32 %v59, 4294901760
    %v1130 = vsub.f32 %v59, %v1129
    %1131 = vmatpush.msra.mxu0 %v1130
    %v1132 = vand.u32 %v58, 4294901760
    %v1133 = vsub.f32 %v58, %v1132
    %1134 = vmatpush.msra.mxu0 %v1133
    %v1135 = vand.u32 %v57, 4294901760
    %v1136 = vsub.f32 %v57, %v1135
    %1137 = vmatpush.msra.mxu0 %v1136
    %v1138 = vand.u32 %v56, 4294901760
    %v1139 = vsub.f32 %v56, %v1138
    %1140 = vmatpush.msra.mxu0 %v1139
    %v1141 = vand.u32 %v55, 4294901760
    %v1142 = vsub.f32 %v55, %v1141
    %1143 = vmatpush.msra.mxu0 %v1142
    %v1144 = vand.u32 %v54, 4294901760
    %v1145 = vsub.f32 %v54, %v1144
    %1146 = vmatpush.msra.mxu0 %v1145
    %v1147 = vand.u32 %v53, 4294901760
    %v1148 = vsub.f32 %v53, %v1147
    %1149 = vmatpush.msra.mxu0 %v1148
    %v1150 = vand.u32 %v52, 4294901760
    %v1151 = vsub.f32 %v52, %v1150
    %1152 = vmatpush.msra.mxu0 %v1151
    %v1153 = vand.u32 %v51, 4294901760
    %v1154 = vsub.f32 %v51, %v1153
    %1155 = vmatpush.msra.mxu0 %v1154
    %v1156 = vand.u32 %v50, 4294901760
    %v1157 = vsub.f32 %v50, %v1156
    %1158 = vmatpush.msra.mxu0 %v1157
    %v1159 = vand.u32 %v49, 4294901760
    %v1160 = vsub.f32 %v49, %v1159
    %1161 = vmatpush.msra.mxu0 %v1160
    %v1162 = vand.u32 %v971, 4294901760
    %v1163 = vsub.f32 %v971, %v1162
    %1164 = vmatmul.f32.gmra.mxu0 %v1163
    %v1165 = vpop.f32.mrf.mxu0
    %v1166 = vadd.f32 %v1112, %v1165
    %1167 = vdwg.mxu0
    %v1168 = vand.u32 %v64, 4294901760
    %1169 = vmatpush.msra.mxu0 %v1168
    %v1170 = vand.u32 %v63, 4294901760
    %1171 = vmatpush.msra.mxu0 %v1170
    %v1172 = vand.u32 %v62, 4294901760
    %1173 = vmatpush.msra.mxu0 %v1172
    %v1174 = vand.u32 %v61, 4294901760
    %1175 = vmatpush.msra.mxu0 %v1174
    %v1176 = vand.u32 %v60, 4294901760
    %1177 = vmatpush.msra.mxu0 %v1176
    %v1178 = vand.u32 %v59, 4294901760
    %1179 = vmatpush.msra.mxu0 %v1178
    %v1180 = vand.u32 %v58, 4294901760
    %1181 = vmatpush.msra.mxu0 %v1180
    %v1182 = vand.u32 %v57, 4294901760
    %1183 = vmatpush.msra.mxu0 %v1182
    %v1184 = vand.u32 %v56, 4294901760
    %1185 = vmatpush.msra.mxu0 %v1184
    %v1186 = vand.u32 %v55, 4294901760
    %1187 = vmatpush.msra.mxu0 %v1186
    %v1188 = vand.u32 %v54, 4294901760
    %1189 = vmatpush.msra.mxu0 %v1188
    %v1190 = vand.u32 %v53, 4294901760
    %1191 = vmatpush.msra.mxu0 %v1190
    %v1192 = vand.u32 %v52, 4294901760
    %1193 = vmatpush.msra.mxu0 %v1192
    %v1194 = vand.u32 %v51, 4294901760
    %1195 = vmatpush.msra.mxu0 %v1194
    %v1196 = vand.u32 %v50, 4294901760
    %1197 = vmatpush.msra.mxu0 %v1196
    %v1198 = vand.u32 %v49, 4294901760
    %1199 = vmatpush.msra.mxu0 %v1198
    %v1200 = vand.u32 %v971, 4294901760
    %v1201 = vsub.f32 %v971, %v1200
    %v1202 = vand.u32 %v1201, 4294901760
    %1203 = vmatmul.f32.gmra.mxu0 %v1202
    %v1204 = vpop.f32.mrf.mxu0
    %v1205 = vadd.f32 %v1166, %v1204
    %1206 = vdwg.mxu0
    %v1207 = vand.u32 %v64, 4294901760
    %v1208 = vsub.f32 %v64, %v1207
    %v1209 = vand.u32 %v1208, 4294901760
    %1210 = vmatpush.msra.mxu0 %v1209
    %v1211 = vand.u32 %v63, 4294901760
    %v1212 = vsub.f32 %v63, %v1211
    %v1213 = vand.u32 %v1212, 4294901760
    %1214 = vmatpush.msra.mxu0 %v1213
    %v1215 = vand.u32 %v62, 4294901760
    %v1216 = vsub.f32 %v62, %v1215
    %v1217 = vand.u32 %v1216, 4294901760
    %1218 = vmatpush.msra.mxu0 %v1217
    %v1219 = vand.u32 %v61, 4294901760
    %v1220 = vsub.f32 %v61, %v1219
    %v1221 = vand.u32 %v1220, 4294901760
    %1222 = vmatpush.msra.mxu0 %v1221
    %v1223 = vand.u32 %v60, 4294901760
    %v1224 = vsub.f32 %v60, %v1223
    %v1225 = vand.u32 %v1224, 4294901760
    %1226 = vmatpush.msra.mxu0 %v1225
    %v1227 = vand.u32 %v59, 4294901760
    %v1228 = vsub.f32 %v59, %v1227
    %v1229 = vand.u32 %v1228, 4294901760
    %1230 = vmatpush.msra.mxu0 %v1229
    %v1231 = vand.u32 %v58, 4294901760
    %v1232 = vsub.f32 %v58, %v1231
    %v1233 = vand.u32 %v1232, 4294901760
    %1234 = vmatpush.msra.mxu0 %v1233
    %v1235 = vand.u32 %v57, 4294901760
    %v1236 = vsub.f32 %v57, %v1235
    %v1237 = vand.u32 %v1236, 4294901760
    %1238 = vmatpush.msra.mxu0 %v1237
    %v1239 = vand.u32 %v56, 4294901760
    %v1240 = vsub.f32 %v56, %v1239
    %v1241 = vand.u32 %v1240, 4294901760
    %1242 = vmatpush.msra.mxu0 %v1241
    %v1243 = vand.u32 %v55, 4294901760
    %v1244 = vsub.f32 %v55, %v1243
    %v1245 = vand.u32 %v1244, 4294901760
    %1246 = vmatpush.msra.mxu0 %v1245
    %v1247 = vand.u32 %v54, 4294901760
    %v1248 = vsub.f32 %v54, %v1247
    %v1249 = vand.u32 %v1248, 4294901760
    %1250 = vmatpush.msra.mxu0 %v1249
    %v1251 = vand.u32 %v53, 4294901760
    %v1252 = vsub.f32 %v53, %v1251
    %v1253 = vand.u32 %v1252, 4294901760
    %1254 = vmatpush.msra.mxu0 %v1253
    %v1255 = vand.u32 %v52, 4294901760
    %v1256 = vsub.f32 %v52, %v1255
    %v1257 = vand.u32 %v1256, 4294901760
    %1258 = vmatpush.msra.mxu0 %v1257
    %v1259 = vand.u32 %v51, 4294901760
    %v1260 = vsub.f32 %v51, %v1259
    %v1261 = vand.u32 %v1260, 4294901760
    %1262 = vmatpush.msra.mxu0 %v1261
    %v1263 = vand.u32 %v50, 4294901760
    %v1264 = vsub.f32 %v50, %v1263
    %v1265 = vand.u32 %v1264, 4294901760
    %1266 = vmatpush.msra.mxu0 %v1265
    %v1267 = vand.u32 %v49, 4294901760
    %v1268 = vsub.f32 %v49, %v1267
    %v1269 = vand.u32 %v1268, 4294901760
    %1270 = vmatpush.msra.mxu0 %v1269
    %v1271 = vand.u32 %v971, 4294901760
    %1272 = vmatmul.f32.gmra.mxu0 %v1271
    %v1273 = vpop.f32.mrf.mxu0
    %v1274 = vadd.f32 %v1205, %v1273
    %1275 = vdwg.mxu0
    %v1276 = vand.u32 %v64, 4294901760
    %1277 = vmatpush.msra.mxu0 %v1276
    %v1278 = vand.u32 %v63, 4294901760
    %1279 = vmatpush.msra.mxu0 %v1278
    %v1280 = vand.u32 %v62, 4294901760
    %1281 = vmatpush.msra.mxu0 %v1280
    %v1282 = vand.u32 %v61, 4294901760
    %1283 = vmatpush.msra.mxu0 %v1282
    %v1284 = vand.u32 %v60, 4294901760
    %1285 = vmatpush.msra.mxu0 %v1284
    %v1286 = vand.u32 %v59, 4294901760
    %1287 = vmatpush.msra.mxu0 %v1286
    %v1288 = vand.u32 %v58, 4294901760
    %1289 = vmatpush.msra.mxu0 %v1288
    %v1290 = vand.u32 %v57, 4294901760
    %1291 = vmatpush.msra.mxu0 %v1290
    %v1292 = vand.u32 %v56, 4294901760
    %1293 = vmatpush.msra.mxu0 %v1292
    %v1294 = vand.u32 %v55, 4294901760
    %1295 = vmatpush.msra.mxu0 %v1294
    %v1296 = vand.u32 %v54, 4294901760
    %1297 = vmatpush.msra.mxu0 %v1296
    %v1298 = vand.u32 %v53, 4294901760
    %1299 = vmatpush.msra.mxu0 %v1298
    %v1300 = vand.u32 %v52, 4294901760
    %1301 = vmatpush.msra.mxu0 %v1300
    %v1302 = vand.u32 %v51, 4294901760
    %1303 = vmatpush.msra.mxu0 %v1302
    %v1304 = vand.u32 %v50, 4294901760
    %1305 = vmatpush.msra.mxu0 %v1304
    %v1306 = vand.u32 %v49, 4294901760
    %1307 = vmatpush.msra.mxu0 %v1306
    %v1308 = vand.u32 %v971, 4294901760
    %1309 = vmatmul.f32.gmra.mxu0 %v1308
    %v1310 = vpop.f32.mrf.mxu0
    %v1311 = vadd.f32 %v1274, %v1310
    %1312 = vdwg.mxu0
    %v1313 = vadd.f32 %v616, %v1311
    %v1314 = vtanh.pop %v1313
    %v1315 = vand.u32 %v64, 4294901760
    %1316 = vmatpush.msra.mxu0 %v1315
    %v1317 = vand.u32 %v63, 4294901760
    %1318 = vmatpush.msra.mxu0 %v1317
    %v1319 = vand.u32 %v62, 4294901760
    %1320 = vmatpush.msra.mxu0 %v1319
    %v1321 = vand.u32 %v61, 4294901760
    %1322 = vmatpush.msra.mxu0 %v1321
    %v1323 = vand.u32 %v60, 4294901760
    %1324 = vmatpush.msra.mxu0 %v1323
    %v1325 = vand.u32 %v59, 4294901760
    %1326 = vmatpush.msra.mxu0 %v1325
    %v1327 = vand.u32 %v58, 4294901760
    %1328 = vmatpush.msra.mxu0 %v1327
    %v1329 = vand.u32 %v57, 4294901760
    %1330 = vmatpush.msra.mxu0 %v1329
    %v1331 = vand.u32 %v56, 4294901760
    %1332 = vmatpush.msra.mxu0 %v1331
    %v1333 = vand.u32 %v55, 4294901760
    %1334 = vmatpush.msra.mxu0 %v1333
    %v1335 = vand.u32 %v54, 4294901760
    %1336 = vmatpush.msra.mxu0 %v1335
    %v1337 = vand.u32 %v53, 4294901760
    %1338 = vmatpush.msra.mxu0 %v1337
    %v1339 = vand.u32 %v52, 4294901760
    %1340 = vmatpush.msra.mxu0 %v1339
    %v1341 = vand.u32 %v51, 4294901760
    %1342 = vmatpush.msra.mxu0 %v1341
    %v1343 = vand.u32 %v50, 4294901760
    %1344 = vmatpush.msra.mxu0 %v1343
    %v1345 = vand.u32 %v49, 4294901760
    %1346 = vmatpush.msra.mxu0 %v1345
    %v1347 = vand.u32 %v1314, 4294901760
    %v1348 = vsub.f32 %v1314, %v1347
    %v1349 = vand.u32 %v1348, 4294901760
    %v1350 = vsub.f32 %v1348, %v1349
    %v1351 = vand.u32 %v1350, 4294901760
    %1352 = vmatmul.f32.gmra.mxu0 %v1351
    %v1353 = vpop.f32.mrf.mxu0
    %v1354 = vadd.f32 0.0, %v1353
    %1355 = vdwg.mxu0
    %v1356 = vand.u32 %v64, 4294901760
    %v1357 = vsub.f32 %v64, %v1356
    %v1358 = vand.u32 %v1357, 4294901760
    %v1359 = vsub.f32 %v1357, %v1358
    %v1360 = vand.u32 %v1359, 4294901760
    %1361 = vmatpush.msra.mxu0 %v1360
    %v1362 = vand.u32 %v63, 4294901760
    %v1363 = vsub.f32 %v63, %v1362
    %v1364 = vand.u32 %v1363, 4294901760
    %v1365 = vsub.f32 %v1363, %v1364
    %v1366 = vand.u32 %v1365, 4294901760
    %1367 = vmatpush.msra.mxu0 %v1366
    %v1368 = vand.u32 %v62, 4294901760
    %v1369 = vsub.f32 %v62, %v1368
    %v1370 = vand.u32 %v1369, 4294901760
    %v1371 = vsub.f32 %v1369, %v1370
    %v1372 = vand.u32 %v1371, 4294901760
    %1373 = vmatpush.msra.mxu0 %v1372
    %v1374 = vand.u32 %v61, 4294901760
    %v1375 = vsub.f32 %v61, %v1374
    %v1376 = vand.u32 %v1375, 4294901760
    %v1377 = vsub.f32 %v1375, %v1376
    %v1378 = vand.u32 %v1377, 4294901760
    %1379 = vmatpush.msra.mxu0 %v1378
    %v1380 = vand.u32 %v60, 4294901760
    %v1381 = vsub.f32 %v60, %v1380
    %v1382 = vand.u32 %v1381, 4294901760
    %v1383 = vsub.f32 %v1381, %v1382
    %v1384 = vand.u32 %v1383, 4294901760
    %1385 = vmatpush.msra.mxu0 %v1384
    %v1386 = vand.u32 %v59, 4294901760
    %v1387 = vsub.f32 %v59, %v1386
    %v1388 = vand.u32 %v1387, 4294901760
    %v1389 = vsub.f32 %v1387, %v1388
    %v1390 = vand.u32 %v1389, 4294901760
    %1391 = vmatpush.msra.mxu0 %v1390
    %v1392 = vand.u32 %v58, 4294901760
    %v1393 = vsub.f32 %v58, %v1392
    %v1394 = vand.u32 %v1393, 4294901760
    %v1395 = vsub.f32 %v1393, %v1394
    %v1396 = vand.u32 %v1395, 4294901760
    %1397 = vmatpush.msra.mxu0 %v1396
    %v1398 = vand.u32 %v57, 4294901760
    %v1399 = vsub.f32 %v57, %v1398
    %v1400 = vand.u32 %v1399, 4294901760
    %v1401 = vsub.f32 %v1399, %v1400
    %v1402 = vand.u32 %v1401, 4294901760
    %1403 = vmatpush.msra.mxu0 %v1402
    %v1404 = vand.u32 %v56, 4294901760
    %v1405 = vsub.f32 %v56, %v1404
    %v1406 = vand.u32 %v1405, 4294901760
    %v1407 = vsub.f32 %v1405, %v1406
    %v1408 = vand.u32 %v1407, 4294901760
    %1409 = vmatpush.msra.mxu0 %v1408
    %v1410 = vand.u32 %v55, 4294901760
    %v1411 = vsub.f32 %v55, %v1410
    %v1412 = vand.u32 %v1411, 4294901760
    %v1413 = vsub.f32 %v1411, %v1412
    %v1414 = vand.u32 %v1413, 4294901760
    %1415 = vmatpush.msra.mxu0 %v1414
    %v1416 = vand.u32 %v54, 4294901760
    %v1417 = vsub.f32 %v54, %v1416
    %v1418 = vand.u32 %v1417, 4294901760
    %v1419 = vsub.f32 %v1417, %v1418
    %v1420 = vand.u32 %v1419, 4294901760
    %1421 = vmatpush.msra.mxu0 %v1420
    %v1422 = vand.u32 %v53, 4294901760
    %v1423 = vsub.f32 %v53, %v1422
    %v1424 = vand.u32 %v1423, 4294901760
    %v1425 = vsub.f32 %v1423, %v1424
    %v1426 = vand.u32 %v1425, 4294901760
    %1427 = vmatpush.msra.mxu0 %v1426
    %v1428 = vand.u32 %v52, 4294901760
    %v1429 = vsub.f32 %v52, %v1428
    %v1430 = vand.u32 %v1429, 4294901760
    %v1431 = vsub.f32 %v1429, %v1430
    %v1432 = vand.u32 %v1431, 4294901760
    %1433 = vmatpush.msra.mxu0 %v1432
    %v1434 = vand.u32 %v51, 4294901760
    %v1435 = vsub.f32 %v51, %v1434
    %v1436 = vand.u32 %v1435, 4294901760
    %v1437 = vsub.f32 %v1435, %v1436
    %v1438 = vand.u32 %v1437, 4294901760
    %1439 = vmatpush.msra.mxu0 %v1438
    %v1440 = vand.u32 %v50, 4294901760
    %v1441 = vsub.f32 %v50, %v1440
    %v1442 = vand.u32 %v1441, 4294901760
    %v1443 = vsub.f32 %v1441, %v1442
    %v1444 = vand.u32 %v1443, 4294901760
    %1445 = vmatpush.msra.mxu0 %v1444
    %v1446 = vand.u32 %v49, 4294901760
    %v1447 = vsub.f32 %v49, %v1446
    %v1448 = vand.u32 %v1447, 4294901760
    %v1449 = vsub.f32 %v1447, %v1448
    %v1450 = vand.u32 %v1449, 4294901760
    %1451 = vmatpush.msra.mxu0 %v1450
    %v1452 = vand.u32 %v1314, 4294901760
    %1453 = vmatmul.f32.gmra.mxu0 %v1452
    %v1454 = vpop.f32.mrf.mxu0
    %v1455 = vadd.f32 %v1354, %v1454
    %1456 = vdwg.mxu0
    %v1457 = vand.u32 %v64, 4294901760
    %v1458 = vsub.f32 %v64, %v1457
    %1459 = vmatpush.msra.mxu0 %v1458
    %v1460 = vand.u32 %v63, 4294901760
    %v1461 = vsub.f32 %v63, %v1460
    %1462 = vmatpush.msra.mxu0 %v1461
    %v1463 = vand.u32 %v62, 4294901760
    %v1464 = vsub.f32 %v62, %v1463
    %1465 = vmatpush.msra.mxu0 %v1464
    %v1466 = vand.u32 %v61, 4294901760
    %v1467 = vsub.f32 %v61, %v1466
    %1468 = vmatpush.msra.mxu0 %v1467
    %v1469 = vand.u32 %v60, 4294901760
    %v1470 = vsub.f32 %v60, %v1469
    %1471 = vmatpush.msra.mxu0 %v1470
    %v1472 = vand.u32 %v59, 4294901760
    %v1473 = vsub.f32 %v59, %v1472
    %1474 = vmatpush.msra.mxu0 %v1473
    %v1475 = vand.u32 %v58, 4294901760
    %v1476 = vsub.f32 %v58, %v1475
    %1477 = vmatpush.msra.mxu0 %v1476
    %v1478 = vand.u32 %v57, 4294901760
    %v1479 = vsub.f32 %v57, %v1478
    %1480 = vmatpush.msra.mxu0 %v1479
    %v1481 = vand.u32 %v56, 4294901760
    %v1482 = vsub.f32 %v56, %v1481
    %1483 = vmatpush.msra.mxu0 %v1482
    %v1484 = vand.u32 %v55, 4294901760
    %v1485 = vsub.f32 %v55, %v1484
    %1486 = vmatpush.msra.mxu0 %v1485
    %v1487 = vand.u32 %v54, 4294901760
    %v1488 = vsub.f32 %v54, %v1487
    %1489 = vmatpush.msra.mxu0 %v1488
    %v1490 = vand.u32 %v53, 4294901760
    %v1491 = vsub.f32 %v53, %v1490
    %1492 = vmatpush.msra.mxu0 %v1491
    %v1493 = vand.u32 %v52, 4294901760
    %v1494 = vsub.f32 %v52, %v1493
    %1495 = vmatpush.msra.mxu0 %v1494
    %v1496 = vand.u32 %v51, 4294901760
    %v1497 = vsub.f32 %v51, %v1496
    %1498 = vmatpush.msra.mxu0 %v1497
    %v1499 = vand.u32 %v50, 4294901760
    %v1500 = vsub.f32 %v50, %v1499
    %1501 = vmatpush.msra.mxu0 %v1500
    %v1502 = vand.u32 %v49, 4294901760
    %v1503 = vsub.f32 %v49, %v1502
    %1504 = vmatpush.msra.mxu0 %v1503
    %v1505 = vand.u32 %v1314, 4294901760
    %v1506 = vsub.f32 %v1314, %v1505
    %1507 = vmatmul.f32.gmra.mxu0 %v1506
    %v1508 = vpop.f32.mrf.mxu0
    %v1509 = vadd.f32 %v1455, %v1508
    %1510 = vdwg.mxu0
    %v1511 = vand.u32 %v64, 4294901760
    %1512 = vmatpush.msra.mxu0 %v1511
    %v1513 = vand.u32 %v63, 4294901760
    %1514 = vmatpush.msra.mxu0 %v1513
    %v1515 = vand.u32 %v62, 4294901760
    %1516 = vmatpush.msra.mxu0 %v1515
    %v1517 = vand.u32 %v61, 4294901760
    %1518 = vmatpush.msra.mxu0 %v1517
    %v1519 = vand.u32 %v60, 4294901760
    %1520 = vmatpush.msra.mxu0 %v1519
    %v1521 = vand.u32 %v59, 4294901760
    %1522 = vmatpush.msra.mxu0 %v1521
    %v1523 = vand.u32 %v58, 4294901760
    %1524 = vmatpush.msra.mxu0 %v1523
    %v1525 = vand.u32 %v57, 4294901760
    %1526 = vmatpush.msra.mxu0 %v1525
    %v1527 = vand.u32 %v56, 4294901760
    %1528 = vmatpush.msra.mxu0 %v1527
    %v1529 = vand.u32 %v55, 4294901760
    %1530 = vmatpush.msra.mxu0 %v1529
    %v1531 = vand.u32 %v54, 4294901760
    %1532 = vmatpush.msra.mxu0 %v1531
    %v1533 = vand.u32 %v53, 4294901760
    %1534 = vmatpush.msra.mxu0 %v1533
    %v1535 = vand.u32 %v52, 4294901760
    %1536 = vmatpush.msra.mxu0 %v1535
    %v1537 = vand.u32 %v51, 4294901760
    %1538 = vmatpush.msra.mxu0 %v1537
    %v1539 = vand.u32 %v50, 4294901760
    %1540 = vmatpush.msra.mxu0 %v1539
    %v1541 = vand.u32 %v49, 4294901760
    %1542 = vmatpush.msra.mxu0 %v1541
    %v1543 = vand.u32 %v1314, 4294901760
    %v1544 = vsub.f32 %v1314, %v1543
    %v1545 = vand.u32 %v1544, 4294901760
    %1546 = vmatmul.f32.gmra.mxu0 %v1545
    %v1547 = vpop.f32.mrf.mxu0
    %v1548 = vadd.f32 %v1509, %v1547
    %1549 = vdwg.mxu0
    %v1550 = vand.u32 %v64, 4294901760
    %v1551 = vsub.f32 %v64, %v1550
    %v1552 = vand.u32 %v1551, 4294901760
    %1553 = vmatpush.msra.mxu0 %v1552
    %v1554 = vand.u32 %v63, 4294901760
    %v1555 = vsub.f32 %v63, %v1554
    %v1556 = vand.u32 %v1555, 4294901760
    %1557 = vmatpush.msra.mxu0 %v1556
    %v1558 = vand.u32 %v62, 4294901760
    %v1559 = vsub.f32 %v62, %v1558
    %v1560 = vand.u32 %v1559, 4294901760
    %1561 = vmatpush.msra.mxu0 %v1560
    %v1562 = vand.u32 %v61, 4294901760
    %v1563 = vsub.f32 %v61, %v1562
    %v1564 = vand.u32 %v1563, 4294901760
    %1565 = vmatpush.msra.mxu0 %v1564
    %v1566 = vand.u32 %v60, 4294901760
    %v1567 = vsub.f32 %v60, %v1566
    %v1568 = vand.u32 %v1567, 4294901760
    %1569 = vmatpush.msra.mxu0 %v1568
    %v1570 = vand.u32 %v59, 4294901760
    %v1571 = vsub.f32 %v59, %v1570
    %v1572 = vand.u32 %v1571, 4294901760
    %1573 = vmatpush.msra.mxu0 %v1572
    %v1574 = vand.u32 %v58, 4294901760
    %v1575 = vsub.f32 %v58, %v1574
    %v1576 = vand.u32 %v1575, 4294901760
    %1577 = vmatpush.msra.mxu0 %v1576
    %v1578 = vand.u32 %v57, 4294901760
    %v1579 = vsub.f32 %v57, %v1578
    %v1580 = vand.u32 %v1579, 4294901760
    %1581 = vmatpush.msra.mxu0 %v1580
    %v1582 = vand.u32 %v56, 4294901760
    %v1583 = vsub.f32 %v56, %v1582
    %v1584 = vand.u32 %v1583, 4294901760
    %1585 = vmatpush.msra.mxu0 %v1584
    %v1586 = vand.u32 %v55, 4294901760
    %v1587 = vsub.f32 %v55, %v1586
    %v1588 = vand.u32 %v1587, 4294901760
    %1589 = vmatpush.msra.mxu0 %v1588
    %v1590 = vand.u32 %v54, 4294901760
    %v1591 = vsub.f32 %v54, %v1590
    %v1592 = vand.u32 %v1591, 4294901760
    %1593 = vmatpush.msra.mxu0 %v1592
    %v1594 = vand.u32 %v53, 4294901760
    %v1595 = vsub.f32 %v53, %v1594
    %v1596 = vand.u32 %v1595, 4294901760
    %1597 = vmatpush.msra.mxu0 %v1596
    %v1598 = vand.u32 %v52, 4294901760
    %v1599 = vsub.f32 %v52, %v1598
    %v1600 = vand.u32 %v1599, 4294901760
    %1601 = vmatpush.msra.mxu0 %v1600
    %v1602 = vand.u32 %v51, 4294901760
    %v1603 = vsub.f32 %v51, %v1602
    %v1604 = vand.u32 %v1603, 4294901760
    %1605 = vmatpush.msra.mxu0 %v1604
    %v1606 = vand.u32 %v50, 4294901760
    %v1607 = vsub.f32 %v50, %v1606
    %v1608 = vand.u32 %v1607, 4294901760
    %1609 = vmatpush.msra.mxu0 %v1608
    %v1610 = vand.u32 %v49, 4294901760
    %v1611 = vsub.f32 %v49, %v1610
    %v1612 = vand.u32 %v1611, 4294901760
    %1613 = vmatpush.msra.mxu0 %v1612
    %v1614 = vand.u32 %v1314, 4294901760
    %1615 = vmatmul.f32.gmra.mxu0 %v1614
    %v1616 = vpop.f32.mrf.mxu0
    %v1617 = vadd.f32 %v1548, %v1616
    %1618 = vdwg.mxu0
    %v1619 = vand.u32 %v64, 4294901760
    %1620 = vmatpush.msra.mxu0 %v1619
    %v1621 = vand.u32 %v63, 4294901760
    %1622 = vmatpush.msra.mxu0 %v1621
    %v1623 = vand.u32 %v62, 4294901760
    %1624 = vmatpush.msra.mxu0 %v1623
    %v1625 = vand.u32 %v61, 4294901760
    %1626 = vmatpush.msra.mxu0 %v1625
    %v1627 = vand.u32 %v60, 4294901760
    %1628 = vmatpush.msra.mxu0 %v1627
    %v1629 = vand.u32 %v59, 4294901760
    %1630 = vmatpush.msra.mxu0 %v1629
    %v1631 = vand.u32 %v58, 4294901760
    %1632 = vmatpush.msra.mxu0 %v1631
    %v1633 = vand.u32 %v57, 4294901760
    %1634 = vmatpush.msra.mxu0 %v1633
    %v1635 = vand.u32 %v56, 4294901760
    %1636 = vmatpush.msra.mxu0 %v1635
    %v1637 = vand.u32 %v55, 4294901760
    %1638 = vmatpush.msra.mxu0 %v1637
    %v1639 = vand.u32 %v54, 4294901760
    %1640 = vmatpush.msra.mxu0 %v1639
    %v1641 = vand.u32 %v53, 4294901760
    %1642 = vmatpush.msra.mxu0 %v1641
    %v1643 = vand.u32 %v52, 4294901760
    %1644 = vmatpush.msra.mxu0 %v1643
    %v1645 = vand.u32 %v51, 4294901760
    %1646 = vmatpush.msra.mxu0 %v1645
    %v1647 = vand.u32 %v50, 4294901760
    %1648 = vmatpush.msra.mxu0 %v1647
    %v1649 = vand.u32 %v49, 4294901760
    %1650 = vmatpush.msra.mxu0 %v1649
    %v1651 = vand.u32 %v1314, 4294901760
    %1652 = vmatmul.f32.gmra.mxu0 %v1651
    %v1653 = vpop.f32.mrf.mxu0
    %v1654 = vadd.f32 %v1617, %v1653
    %1655 = vdwg.mxu0
    %v1656 = vadd.f32 %v620, %v1654
    %v1657 = vtanh.pop %v1656
    %v1658 = vand.u32 %v64, 4294901760
    %1659 = vmatpush.msra.mxu0 %v1658
    %v1660 = vand.u32 %v63, 4294901760
    %1661 = vmatpush.msra.mxu0 %v1660
    %v1662 = vand.u32 %v62, 4294901760
    %1663 = vmatpush.msra.mxu0 %v1662
    %v1664 = vand.u32 %v61, 4294901760
    %1665 = vmatpush.msra.mxu0 %v1664
    %v1666 = vand.u32 %v60, 4294901760
    %1667 = vmatpush.msra.mxu0 %v1666
    %v1668 = vand.u32 %v59, 4294901760
    %1669 = vmatpush.msra.mxu0 %v1668
    %v1670 = vand.u32 %v58, 4294901760
    %1671 = vmatpush.msra.mxu0 %v1670
    %v1672 = vand.u32 %v57, 4294901760
    %1673 = vmatpush.msra.mxu0 %v1672
    %v1674 = vand.u32 %v56, 4294901760
    %1675 = vmatpush.msra.mxu0 %v1674
    %v1676 = vand.u32 %v55, 4294901760
    %1677 = vmatpush.msra.mxu0 %v1676
    %v1678 = vand.u32 %v54, 4294901760
    %1679 = vmatpush.msra.mxu0 %v1678
    %v1680 = vand.u32 %v53, 4294901760
    %1681 = vmatpush.msra.mxu0 %v1680
    %v1682 = vand.u32 %v52, 4294901760
    %1683 = vmatpush.msra.mxu0 %v1682
    %v1684 = vand.u32 %v51, 4294901760
    %1685 = vmatpush.msra.mxu0 %v1684
    %v1686 = vand.u32 %v50, 4294901760
    %1687 = vmatpush.msra.mxu0 %v1686
    %v1688 = vand.u32 %v49, 4294901760
    %1689 = vmatpush.msra.mxu0 %v1688
    %v1690 = vand.u32 %v1657, 4294901760
    %v1691 = vsub.f32 %v1657, %v1690
    %v1692 = vand.u32 %v1691, 4294901760
    %v1693 = vsub.f32 %v1691, %v1692
    %v1694 = vand.u32 %v1693, 4294901760
    %1695 = vmatmul.f32.gmra.mxu0 %v1694
    %v1696 = vpop.f32.mrf.mxu0
    %v1697 = vadd.f32 0.0, %v1696
    %1698 = vdwg.mxu0
    %v1699 = vand.u32 %v64, 4294901760
    %v1700 = vsub.f32 %v64, %v1699
    %v1701 = vand.u32 %v1700, 4294901760
    %v1702 = vsub.f32 %v1700, %v1701
    %v1703 = vand.u32 %v1702, 4294901760
    %1704 = vmatpush.msra.mxu0 %v1703
    %v1705 = vand.u32 %v63, 4294901760
    %v1706 = vsub.f32 %v63, %v1705
    %v1707 = vand.u32 %v1706, 4294901760
    %v1708 = vsub.f32 %v1706, %v1707
    %v1709 = vand.u32 %v1708, 4294901760
    %1710 = vmatpush.msra.mxu0 %v1709
    %v1711 = vand.u32 %v62, 4294901760
    %v1712 = vsub.f32 %v62, %v1711
    %v1713 = vand.u32 %v1712, 4294901760
    %v1714 = vsub.f32 %v1712, %v1713
    %v1715 = vand.u32 %v1714, 4294901760
    %1716 = vmatpush.msra.mxu0 %v1715
    %v1717 = vand.u32 %v61, 4294901760
    %v1718 = vsub.f32 %v61, %v1717
    %v1719 = vand.u32 %v1718, 4294901760
    %v1720 = vsub.f32 %v1718, %v1719
    %v1721 = vand.u32 %v1720, 4294901760
    %1722 = vmatpush.msra.mxu0 %v1721
    %v1723 = vand.u32 %v60, 4294901760
    %v1724 = vsub.f32 %v60, %v1723
    %v1725 = vand.u32 %v1724, 4294901760
    %v1726 = vsub.f32 %v1724, %v1725
    %v1727 = vand.u32 %v1726, 4294901760
    %1728 = vmatpush.msra.mxu0 %v1727
    %v1729 = vand.u32 %v59, 4294901760
    %v1730 = vsub.f32 %v59, %v1729
    %v1731 = vand.u32 %v1730, 4294901760
    %v1732 = vsub.f32 %v1730, %v1731
    %v1733 = vand.u32 %v1732, 4294901760
    %1734 = vmatpush.msra.mxu0 %v1733
    %v1735 = vand.u32 %v58, 4294901760
    %v1736 = vsub.f32 %v58, %v1735
    %v1737 = vand.u32 %v1736, 4294901760
    %v1738 = vsub.f32 %v1736, %v1737
    %v1739 = vand.u32 %v1738, 4294901760
    %1740 = vmatpush.msra.mxu0 %v1739
    %v1741 = vand.u32 %v57, 4294901760
    %v1742 = vsub.f32 %v57, %v1741
    %v1743 = vand.u32 %v1742, 4294901760
    %v1744 = vsub.f32 %v1742, %v1743
    %v1745 = vand.u32 %v1744, 4294901760
    %1746 = vmatpush.msra.mxu0 %v1745
    %v1747 = vand.u32 %v56, 4294901760
    %v1748 = vsub.f32 %v56, %v1747
    %v1749 = vand.u32 %v1748, 4294901760
    %v1750 = vsub.f32 %v1748, %v1749
    %v1751 = vand.u32 %v1750, 4294901760
    %1752 = vmatpush.msra.mxu0 %v1751
    %v1753 = vand.u32 %v55, 4294901760
    %v1754 = vsub.f32 %v55, %v1753
    %v1755 = vand.u32 %v1754, 4294901760
    %v1756 = vsub.f32 %v1754, %v1755
    %v1757 = vand.u32 %v1756, 4294901760
    %1758 = vmatpush.msra.mxu0 %v1757
    %v1759 = vand.u32 %v54, 4294901760
    %v1760 = vsub.f32 %v54, %v1759
    %v1761 = vand.u32 %v1760, 4294901760
    %v1762 = vsub.f32 %v1760, %v1761
    %v1763 = vand.u32 %v1762, 4294901760
    %1764 = vmatpush.msra.mxu0 %v1763
    %v1765 = vand.u32 %v53, 4294901760
    %v1766 = vsub.f32 %v53, %v1765
    %v1767 = vand.u32 %v1766, 4294901760
    %v1768 = vsub.f32 %v1766, %v1767
    %v1769 = vand.u32 %v1768, 4294901760
    %1770 = vmatpush.msra.mxu0 %v1769
    %v1771 = vand.u32 %v52, 4294901760
    %v1772 = vsub.f32 %v52, %v1771
    %v1773 = vand.u32 %v1772, 4294901760
    %v1774 = vsub.f32 %v1772, %v1773
    %v1775 = vand.u32 %v1774, 4294901760
    %1776 = vmatpush.msra.mxu0 %v1775
    %v1777 = vand.u32 %v51, 4294901760
    %v1778 = vsub.f32 %v51, %v1777
    %v1779 = vand.u32 %v1778, 4294901760
    %v1780 = vsub.f32 %v1778, %v1779
    %v1781 = vand.u32 %v1780, 4294901760
    %1782 = vmatpush.msra.mxu0 %v1781
    %v1783 = vand.u32 %v50, 4294901760
    %v1784 = vsub.f32 %v50, %v1783
    %v1785 = vand.u32 %v1784, 4294901760
    %v1786 = vsub.f32 %v1784, %v1785
    %v1787 = vand.u32 %v1786, 4294901760
    %1788 = vmatpush.msra.mxu0 %v1787
    %v1789 = vand.u32 %v49, 4294901760
    %v1790 = vsub.f32 %v49, %v1789
    %v1791 = vand.u32 %v1790, 4294901760
    %v1792 = vsub.f32 %v1790, %v1791
    %v1793 = vand.u32 %v1792, 4294901760
    %1794 = vmatpush.msra.mxu0 %v1793
    %v1795 = vand.u32 %v1657, 4294901760
    %1796 = vmatmul.f32.gmra.mxu0 %v1795
    %v1797 = vpop.f32.mrf.mxu0
    %v1798 = vadd.f32 %v1697, %v1797
    %1799 = vdwg.mxu0
    %v1800 = vand.u32 %v64, 4294901760
    %v1801 = vsub.f32 %v64, %v1800
    %1802 = vmatpush.msra.mxu0 %v1801
    %v1803 = vand.u32 %v63, 4294901760
    %v1804 = vsub.f32 %v63, %v1803
    %1805 = vmatpush.msra.mxu0 %v1804
    %v1806 = vand.u32 %v62, 4294901760
    %v1807 = vsub.f32 %v62, %v1806
    %1808 = vmatpush.msra.mxu0 %v1807
    %v1809 = vand.u32 %v61, 4294901760
    %v1810 = vsub.f32 %v61, %v1809
    %1811 = vmatpush.msra.mxu0 %v1810
    %v1812 = vand.u32 %v60, 4294901760
    %v1813 = vsub.f32 %v60, %v1812
    %1814 = vmatpush.msra.mxu0 %v1813
    %v1815 = vand.u32 %v59, 4294901760
    %v1816 = vsub.f32 %v59, %v1815
    %1817 = vmatpush.msra.mxu0 %v1816
    %v1818 = vand.u32 %v58, 4294901760
    %v1819 = vsub.f32 %v58, %v1818
    %1820 = vmatpush.msra.mxu0 %v1819
    %v1821 = vand.u32 %v57, 4294901760
    %v1822 = vsub.f32 %v57, %v1821
    %1823 = vmatpush.msra.mxu0 %v1822
    %v1824 = vand.u32 %v56, 4294901760
    %v1825 = vsub.f32 %v56, %v1824
    %1826 = vmatpush.msra.mxu0 %v1825
    %v1827 = vand.u32 %v55, 4294901760
    %v1828 = vsub.f32 %v55, %v1827
    %1829 = vmatpush.msra.mxu0 %v1828
    %v1830 = vand.u32 %v54, 4294901760
    %v1831 = vsub.f32 %v54, %v1830
    %1832 = vmatpush.msra.mxu0 %v1831
    %v1833 = vand.u32 %v53, 4294901760
    %v1834 = vsub.f32 %v53, %v1833
    %1835 = vmatpush.msra.mxu0 %v1834
    %v1836 = vand.u32 %v52, 4294901760
    %v1837 = vsub.f32 %v52, %v1836
    %1838 = vmatpush.msra.mxu0 %v1837
    %v1839 = vand.u32 %v51, 4294901760
    %v1840 = vsub.f32 %v51, %v1839
    %1841 = vmatpush.msra.mxu0 %v1840
    %v1842 = vand.u32 %v50, 4294901760
    %v1843 = vsub.f32 %v50, %v1842
    %1844 = vmatpush.msra.mxu0 %v1843
    %v1845 = vand.u32 %v49, 4294901760
    %v1846 = vsub.f32 %v49, %v1845
    %1847 = vmatpush.msra.mxu0 %v1846
    %v1848 = vand.u32 %v1657, 4294901760
    %v1849 = vsub.f32 %v1657, %v1848
    %1850 = vmatmul.f32.gmra.mxu0 %v1849
    %v1851 = vpop.f32.mrf.mxu0
    %v1852 = vadd.f32 %v1798, %v1851
    %1853 = vdwg.mxu0
    %v1854 = vand.u32 %v64, 4294901760
    %1855 = vmatpush.msra.mxu0 %v1854
    %v1856 = vand.u32 %v63, 4294901760
    %1857 = vmatpush.msra.mxu0 %v1856
    %v1858 = vand.u32 %v62, 4294901760
    %1859 = vmatpush.msra.mxu0 %v1858
    %v1860 = vand.u32 %v61, 4294901760
    %1861 = vmatpush.msra.mxu0 %v1860
    %v1862 = vand.u32 %v60, 4294901760
    %1863 = vmatpush.msra.mxu0 %v1862
    %v1864 = vand.u32 %v59, 4294901760
    %1865 = vmatpush.msra.mxu0 %v1864
    %v1866 = vand.u32 %v58, 4294901760
    %1867 = vmatpush.msra.mxu0 %v1866
    %v1868 = vand.u32 %v57, 4294901760
    %1869 = vmatpush.msra.mxu0 %v1868
    %v1870 = vand.u32 %v56, 4294901760
    %1871 = vmatpush.msra.mxu0 %v1870
    %v1872 = vand.u32 %v55, 4294901760
    %1873 = vmatpush.msra.mxu0 %v1872
    %v1874 = vand.u32 %v54, 4294901760
    %1875 = vmatpush.msra.mxu0 %v1874
    %v1876 = vand.u32 %v53, 4294901760
    %1877 = vmatpush.msra.mxu0 %v1876
    %v1878 = vand.u32 %v52, 4294901760
    %1879 = vmatpush.msra.mxu0 %v1878
    %v1880 = vand.u32 %v51, 4294901760
    %1881 = vmatpush.msra.mxu0 %v1880
    %v1882 = vand.u32 %v50, 4294901760
    %1883 = vmatpush.msra.mxu0 %v1882
    %v1884 = vand.u32 %v49, 4294901760
    %1885 = vmatpush.msra.mxu0 %v1884
    %v1886 = vand.u32 %v1657, 4294901760
    %v1887 = vsub.f32 %v1657, %v1886
    %v1888 = vand.u32 %v1887, 4294901760
    %1889 = vmatmul.f32.gmra.mxu0 %v1888
    %v1890 = vpop.f32.mrf.mxu0
    %v1891 = vadd.f32 %v1852, %v1890
    %1892 = vdwg.mxu0
    %v1893 = vand.u32 %v64, 4294901760
    %v1894 = vsub.f32 %v64, %v1893
    %v1895 = vand.u32 %v1894, 4294901760
    %1896 = vmatpush.msra.mxu0 %v1895
    %v1897 = vand.u32 %v63, 4294901760
    %v1898 = vsub.f32 %v63, %v1897
    %v1899 = vand.u32 %v1898, 4294901760
    %1900 = vmatpush.msra.mxu0 %v1899
    %v1901 = vand.u32 %v62, 4294901760
    %v1902 = vsub.f32 %v62, %v1901
    %v1903 = vand.u32 %v1902, 4294901760
    %1904 = vmatpush.msra.mxu0 %v1903
    %v1905 = vand.u32 %v61, 4294901760
    %v1906 = vsub.f32 %v61, %v1905
    %v1907 = vand.u32 %v1906, 4294901760
    %1908 = vmatpush.msra.mxu0 %v1907
    %v1909 = vand.u32 %v60, 4294901760
    %v1910 = vsub.f32 %v60, %v1909
    %v1911 = vand.u32 %v1910, 4294901760
    %1912 = vmatpush.msra.mxu0 %v1911
    %v1913 = vand.u32 %v59, 4294901760
    %v1914 = vsub.f32 %v59, %v1913
    %v1915 = vand.u32 %v1914, 4294901760
    %1916 = vmatpush.msra.mxu0 %v1915
    %v1917 = vand.u32 %v58, 4294901760
    %v1918 = vsub.f32 %v58, %v1917
    %v1919 = vand.u32 %v1918, 4294901760
    %1920 = vmatpush.msra.mxu0 %v1919
    %v1921 = vand.u32 %v57, 4294901760
    %v1922 = vsub.f32 %v57, %v1921
    %v1923 = vand.u32 %v1922, 4294901760
    %1924 = vmatpush.msra.mxu0 %v1923
    %v1925 = vand.u32 %v56, 4294901760
    %v1926 = vsub.f32 %v56, %v1925
    %v1927 = vand.u32 %v1926, 4294901760
    %1928 = vmatpush.msra.mxu0 %v1927
    %v1929 = vand.u32 %v55, 4294901760
    %v1930 = vsub.f32 %v55, %v1929
    %v1931 = vand.u32 %v1930, 4294901760
    %1932 = vmatpush.msra.mxu0 %v1931
    %v1933 = vand.u32 %v54, 4294901760
    %v1934 = vsub.f32 %v54, %v1933
    %v1935 = vand.u32 %v1934, 4294901760
    %1936 = vmatpush.msra.mxu0 %v1935
    %v1937 = vand.u32 %v53, 4294901760
    %v1938 = vsub.f32 %v53, %v1937
    %v1939 = vand.u32 %v1938, 4294901760
    %1940 = vmatpush.msra.mxu0 %v1939
    %v1941 = vand.u32 %v52, 4294901760
    %v1942 = vsub.f32 %v52, %v1941
    %v1943 = vand.u32 %v1942, 4294901760
    %1944 = vmatpush.msra.mxu0 %v1943
    %v1945 = vand.u32 %v51, 4294901760
    %v1946 = vsub.f32 %v51, %v1945
    %v1947 = vand.u32 %v1946, 4294901760
    %1948 = vmatpush.msra.mxu0 %v1947
    %v1949 = vand.u32 %v50, 4294901760
    %v1950 = vsub.f32 %v50, %v1949
    %v1951 = vand.u32 %v1950, 4294901760
    %1952 = vmatpush.msra.mxu0 %v1951
    %v1953 = vand.u32 %v49, 4294901760
    %v1954 = vsub.f32 %v49, %v1953
    %v1955 = vand.u32 %v1954, 4294901760
    %1956 = vmatpush.msra.mxu0 %v1955
    %v1957 = vand.u32 %v1657, 4294901760
    %1958 = vmatmul.f32.gmra.mxu0 %v1957
    %v1959 = vpop.f32.mrf.mxu0
    %v1960 = vadd.f32 %v1891, %v1959
    %1961 = vdwg.mxu0
    %v1962 = vand.u32 %v64, 4294901760
    %1963 = vmatpush.msra.mxu0 %v1962
    %v1964 = vand.u32 %v63, 4294901760
    %1965 = vmatpush.msra.mxu0 %v1964
    %v1966 = vand.u32 %v62, 4294901760
    %1967 = vmatpush.msra.mxu0 %v1966
    %v1968 = vand.u32 %v61, 4294901760
    %1969 = vmatpush.msra.mxu0 %v1968
    %v1970 = vand.u32 %v60, 4294901760
    %1971 = vmatpush.msra.mxu0 %v1970
    %v1972 = vand.u32 %v59, 4294901760
    %1973 = vmatpush.msra.mxu0 %v1972
    %v1974 = vand.u32 %v58, 4294901760
    %1975 = vmatpush.msra.mxu0 %v1974
    %v1976 = vand.u32 %v57, 4294901760
    %1977 = vmatpush.msra.mxu0 %v1976
    %v1978 = vand.u32 %v56, 4294901760
    %1979 = vmatpush.msra.mxu0 %v1978
    %v1980 = vand.u32 %v55, 4294901760
    %1981 = vmatpush.msra.mxu0 %v1980
    %v1982 = vand.u32 %v54, 4294901760
    %1983 = vmatpush.msra.mxu0 %v1982
    %v1984 = vand.u32 %v53, 4294901760
    %1985 = vmatpush.msra.mxu0 %v1984
    %v1986 = vand.u32 %v52, 4294901760
    %1987 = vmatpush.msra.mxu0 %v1986
    %v1988 = vand.u32 %v51, 4294901760
    %1989 = vmatpush.msra.mxu0 %v1988
    %v1990 = vand.u32 %v50, 4294901760
    %1991 = vmatpush.msra.mxu0 %v1990
    %v1992 = vand.u32 %v49, 4294901760
    %1993 = vmatpush.msra.mxu0 %v1992
    %v1994 = vand.u32 %v1657, 4294901760
    %1995 = vmatmul.f32.gmra.mxu0 %v1994
    %v1996 = vpop.f32.mrf.mxu0
    %v1997 = vadd.f32 %v1960, %v1996
    %1998 = vdwg.mxu0
    %v1999 = vadd.f32 %v624, %v1997
    %v2000 = vtanh.pop %v1999
    %v2001 = vand.u32 %v64, 4294901760
    %2002 = vmatpush.msra.mxu0 %v2001
    %v2003 = vand.u32 %v63, 4294901760
    %2004 = vmatpush.msra.mxu0 %v2003
    %v2005 = vand.u32 %v62, 4294901760
    %2006 = vmatpush.msra.mxu0 %v2005
    %v2007 = vand.u32 %v61, 4294901760
    %2008 = vmatpush.msra.mxu0 %v2007
    %v2009 = vand.u32 %v60, 4294901760
    %2010 = vmatpush.msra.mxu0 %v2009
    %v2011 = vand.u32 %v59, 4294901760
    %2012 = vmatpush.msra.mxu0 %v2011
    %v2013 = vand.u32 %v58, 4294901760
    %2014 = vmatpush.msra.mxu0 %v2013
    %v2015 = vand.u32 %v57, 4294901760
    %2016 = vmatpush.msra.mxu0 %v2015
    %v2017 = vand.u32 %v56, 4294901760
    %2018 = vmatpush.msra.mxu0 %v2017
    %v2019 = vand.u32 %v55, 4294901760
    %2020 = vmatpush.msra.mxu0 %v2019
    %v2021 = vand.u32 %v54, 4294901760
    %2022 = vmatpush.msra.mxu0 %v2021
    %v2023 = vand.u32 %v53, 4294901760
    %2024 = vmatpush.msra.mxu0 %v2023
    %v2025 = vand.u32 %v52, 4294901760
    %2026 = vmatpush.msra.mxu0 %v2025
    %v2027 = vand.u32 %v51, 4294901760
    %2028 = vmatpush.msra.mxu0 %v2027
    %v2029 = vand.u32 %v50, 4294901760
    %2030 = vmatpush.msra.mxu0 %v2029
    %v2031 = vand.u32 %v49, 4294901760
    %2032 = vmatpush.msra.mxu0 %v2031
    %v2033 = vand.u32 %v2000, 4294901760
    %v2034 = vsub.f32 %v2000, %v2033
    %v2035 = vand.u32 %v2034, 4294901760
    %v2036 = vsub.f32 %v2034, %v2035
    %v2037 = vand.u32 %v2036, 4294901760
    %2038 = vmatmul.f32.gmra.mxu0 %v2037
    %v2039 = vpop.f32.mrf.mxu0
    %v2040 = vadd.f32 0.0, %v2039
    %2041 = vdwg.mxu0
    %v2042 = vand.u32 %v64, 4294901760
    %v2043 = vsub.f32 %v64, %v2042
    %v2044 = vand.u32 %v2043, 4294901760
    %v2045 = vsub.f32 %v2043, %v2044
    %v2046 = vand.u32 %v2045, 4294901760
    %2047 = vmatpush.msra.mxu0 %v2046
    %v2048 = vand.u32 %v63, 4294901760
    %v2049 = vsub.f32 %v63, %v2048
    %v2050 = vand.u32 %v2049, 4294901760
    %v2051 = vsub.f32 %v2049, %v2050
    %v2052 = vand.u32 %v2051, 4294901760
    %2053 = vmatpush.msra.mxu0 %v2052
    %v2054 = vand.u32 %v62, 4294901760
    %v2055 = vsub.f32 %v62, %v2054
    %v2056 = vand.u32 %v2055, 4294901760
    %v2057 = vsub.f32 %v2055, %v2056
    %v2058 = vand.u32 %v2057, 4294901760
    %2059 = vmatpush.msra.mxu0 %v2058
    %v2060 = vand.u32 %v61, 4294901760
    %v2061 = vsub.f32 %v61, %v2060
    %v2062 = vand.u32 %v2061, 4294901760
    %v2063 = vsub.f32 %v2061, %v2062
    %v2064 = vand.u32 %v2063, 4294901760
    %2065 = vmatpush.msra.mxu0 %v2064
    %v2066 = vand.u32 %v60, 4294901760
    %v2067 = vsub.f32 %v60, %v2066
    %v2068 = vand.u32 %v2067, 4294901760
    %v2069 = vsub.f32 %v2067, %v2068
    %v2070 = vand.u32 %v2069, 4294901760
    %2071 = vmatpush.msra.mxu0 %v2070
    %v2072 = vand.u32 %v59, 4294901760
    %v2073 = vsub.f32 %v59, %v2072
    %v2074 = vand.u32 %v2073, 4294901760
    %v2075 = vsub.f32 %v2073, %v2074
    %v2076 = vand.u32 %v2075, 4294901760
    %2077 = vmatpush.msra.mxu0 %v2076
    %v2078 = vand.u32 %v58, 4294901760
    %v2079 = vsub.f32 %v58, %v2078
    %v2080 = vand.u32 %v2079, 4294901760
    %v2081 = vsub.f32 %v2079, %v2080
    %v2082 = vand.u32 %v2081, 4294901760
    %2083 = vmatpush.msra.mxu0 %v2082
    %v2084 = vand.u32 %v57, 4294901760
    %v2085 = vsub.f32 %v57, %v2084
    %v2086 = vand.u32 %v2085, 4294901760
    %v2087 = vsub.f32 %v2085, %v2086
    %v2088 = vand.u32 %v2087, 4294901760
    %2089 = vmatpush.msra.mxu0 %v2088
    %v2090 = vand.u32 %v56, 4294901760
    %v2091 = vsub.f32 %v56, %v2090
    %v2092 = vand.u32 %v2091, 4294901760
    %v2093 = vsub.f32 %v2091, %v2092
    %v2094 = vand.u32 %v2093, 4294901760
    %2095 = vmatpush.msra.mxu0 %v2094
    %v2096 = vand.u32 %v55, 4294901760
    %v2097 = vsub.f32 %v55, %v2096
    %v2098 = vand.u32 %v2097, 4294901760
    %v2099 = vsub.f32 %v2097, %v2098
    %v2100 = vand.u32 %v2099, 4294901760
    %2101 = vmatpush.msra.mxu0 %v2100
    %v2102 = vand.u32 %v54, 4294901760
    %v2103 = vsub.f32 %v54, %v2102
    %v2104 = vand.u32 %v2103, 4294901760
    %v2105 = vsub.f32 %v2103, %v2104
    %v2106 = vand.u32 %v2105, 4294901760
    %2107 = vmatpush.msra.mxu0 %v2106
    %v2108 = vand.u32 %v53, 4294901760
    %v2109 = vsub.f32 %v53, %v2108
    %v2110 = vand.u32 %v2109, 4294901760
    %v2111 = vsub.f32 %v2109, %v2110
    %v2112 = vand.u32 %v2111, 4294901760
    %2113 = vmatpush.msra.mxu0 %v2112
    %v2114 = vand.u32 %v52, 4294901760
    %v2115 = vsub.f32 %v52, %v2114
    %v2116 = vand.u32 %v2115, 4294901760
    %v2117 = vsub.f32 %v2115, %v2116
    %v2118 = vand.u32 %v2117, 4294901760
    %2119 = vmatpush.msra.mxu0 %v2118
    %v2120 = vand.u32 %v51, 4294901760
    %v2121 = vsub.f32 %v51, %v2120
    %v2122 = vand.u32 %v2121, 4294901760
    %v2123 = vsub.f32 %v2121, %v2122
    %v2124 = vand.u32 %v2123, 4294901760
    %2125 = vmatpush.msra.mxu0 %v2124
    %v2126 = vand.u32 %v50, 4294901760
    %v2127 = vsub.f32 %v50, %v2126
    %v2128 = vand.u32 %v2127, 4294901760
    %v2129 = vsub.f32 %v2127, %v2128
    %v2130 = vand.u32 %v2129, 4294901760
    %2131 = vmatpush.msra.mxu0 %v2130
    %v2132 = vand.u32 %v49, 4294901760
    %v2133 = vsub.f32 %v49, %v2132
    %v2134 = vand.u32 %v2133, 4294901760
    %v2135 = vsub.f32 %v2133, %v2134
    %v2136 = vand.u32 %v2135, 4294901760
    %2137 = vmatpush.msra.mxu0 %v2136
    %v2138 = vand.u32 %v2000, 4294901760
    %2139 = vmatmul.f32.gmra.mxu0 %v2138
    %v2140 = vpop.f32.mrf.mxu0
    %v2141 = vadd.f32 %v2040, %v2140
    %2142 = vdwg.mxu0
    %v2143 = vand.u32 %v64, 4294901760
    %v2144 = vsub.f32 %v64, %v2143
    %2145 = vmatpush.msra.mxu0 %v2144
    %v2146 = vand.u32 %v63, 4294901760
    %v2147 = vsub.f32 %v63, %v2146
    %2148 = vmatpush.msra.mxu0 %v2147
    %v2149 = vand.u32 %v62, 4294901760
    %v2150 = vsub.f32 %v62, %v2149
    %2151 = vmatpush.msra.mxu0 %v2150
    %v2152 = vand.u32 %v61, 4294901760
    %v2153 = vsub.f32 %v61, %v2152
    %2154 = vmatpush.msra.mxu0 %v2153
    %v2155 = vand.u32 %v60, 4294901760
    %v2156 = vsub.f32 %v60, %v2155
    %2157 = vmatpush.msra.mxu0 %v2156
    %v2158 = vand.u32 %v59, 4294901760
    %v2159 = vsub.f32 %v59, %v2158
    %2160 = vmatpush.msra.mxu0 %v2159
    %v2161 = vand.u32 %v58, 4294901760
    %v2162 = vsub.f32 %v58, %v2161
    %2163 = vmatpush.msra.mxu0 %v2162
    %v2164 = vand.u32 %v57, 4294901760
    %v2165 = vsub.f32 %v57, %v2164
    %2166 = vmatpush.msra.mxu0 %v2165
    %v2167 = vand.u32 %v56, 4294901760
    %v2168 = vsub.f32 %v56, %v2167
    %2169 = vmatpush.msra.mxu0 %v2168
    %v2170 = vand.u32 %v55, 4294901760
    %v2171 = vsub.f32 %v55, %v2170
    %2172 = vmatpush.msra.mxu0 %v2171
    %v2173 = vand.u32 %v54, 4294901760
    %v2174 = vsub.f32 %v54, %v2173
    %2175 = vmatpush.msra.mxu0 %v2174
    %v2176 = vand.u32 %v53, 4294901760
    %v2177 = vsub.f32 %v53, %v2176
    %2178 = vmatpush.msra.mxu0 %v2177
    %v2179 = vand.u32 %v52, 4294901760
    %v2180 = vsub.f32 %v52, %v2179
    %2181 = vmatpush.msra.mxu0 %v2180
    %v2182 = vand.u32 %v51, 4294901760
    %v2183 = vsub.f32 %v51, %v2182
    %2184 = vmatpush.msra.mxu0 %v2183
    %v2185 = vand.u32 %v50, 4294901760
    %v2186 = vsub.f32 %v50, %v2185
    %2187 = vmatpush.msra.mxu0 %v2186
    %v2188 = vand.u32 %v49, 4294901760
    %v2189 = vsub.f32 %v49, %v2188
    %2190 = vmatpush.msra.mxu0 %v2189
    %v2191 = vand.u32 %v2000, 4294901760
    %v2192 = vsub.f32 %v2000, %v2191
    %2193 = vmatmul.f32.gmra.mxu0 %v2192
    %v2194 = vpop.f32.mrf.mxu0
    %v2195 = vadd.f32 %v2141, %v2194
    %2196 = vdwg.mxu0
    %v2197 = vand.u32 %v64, 4294901760
    %2198 = vmatpush.msra.mxu0 %v2197
    %v2199 = vand.u32 %v63, 4294901760
    %2200 = vmatpush.msra.mxu0 %v2199
    %v2201 = vand.u32 %v62, 4294901760
    %2202 = vmatpush.msra.mxu0 %v2201
    %v2203 = vand.u32 %v61, 4294901760
    %2204 = vmatpush.msra.mxu0 %v2203
    %v2205 = vand.u32 %v60, 4294901760
    %2206 = vmatpush.msra.mxu0 %v2205
    %v2207 = vand.u32 %v59, 4294901760
    %2208 = vmatpush.msra.mxu0 %v2207
    %v2209 = vand.u32 %v58, 4294901760
    %2210 = vmatpush.msra.mxu0 %v2209
    %v2211 = vand.u32 %v57, 4294901760
    %2212 = vmatpush.msra.mxu0 %v2211
    %v2213 = vand.u32 %v56, 4294901760
    %2214 = vmatpush.msra.mxu0 %v2213
    %v2215 = vand.u32 %v55, 4294901760
    %2216 = vmatpush.msra.mxu0 %v2215
    %v2217 = vand.u32 %v54, 4294901760
    %2218 = vmatpush.msra.mxu0 %v2217
    %v2219 = vand.u32 %v53, 4294901760
    %2220 = vmatpush.msra.mxu0 %v2219
    %v2221 = vand.u32 %v52, 4294901760
    %2222 = vmatpush.msra.mxu0 %v2221
    %v2223 = vand.u32 %v51, 4294901760
    %2224 = vmatpush.msra.mxu0 %v2223
    %v2225 = vand.u32 %v50, 4294901760
    %2226 = vmatpush.msra.mxu0 %v2225
    %v2227 = vand.u32 %v49, 4294901760
    %2228 = vmatpush.msra.mxu0 %v2227
    %v2229 = vand.u32 %v2000, 4294901760
    %v2230 = vsub.f32 %v2000, %v2229
    %v2231 = vand.u32 %v2230, 4294901760
    %2232 = vmatmul.f32.gmra.mxu0 %v2231
    %v2233 = vpop.f32.mrf.mxu0
    %v2234 = vadd.f32 %v2195, %v2233
    %2235 = vdwg.mxu0
    %v2236 = vand.u32 %v64, 4294901760
    %v2237 = vsub.f32 %v64, %v2236
    %v2238 = vand.u32 %v2237, 4294901760
    %2239 = vmatpush.msra.mxu0 %v2238
    %v2240 = vand.u32 %v63, 4294901760
    %v2241 = vsub.f32 %v63, %v2240
    %v2242 = vand.u32 %v2241, 4294901760
    %2243 = vmatpush.msra.mxu0 %v2242
    %v2244 = vand.u32 %v62, 4294901760
    %v2245 = vsub.f32 %v62, %v2244
    %v2246 = vand.u32 %v2245, 4294901760
    %2247 = vmatpush.msra.mxu0 %v2246
    %v2248 = vand.u32 %v61, 4294901760
    %v2249 = vsub.f32 %v61, %v2248
    %v2250 = vand.u32 %v2249, 4294901760
    %2251 = vmatpush.msra.mxu0 %v2250
    %v2252 = vand.u32 %v60, 4294901760
    %v2253 = vsub.f32 %v60, %v2252
    %v2254 = vand.u32 %v2253, 4294901760
    %2255 = vmatpush.msra.mxu0 %v2254
    %v2256 = vand.u32 %v59, 4294901760
    %v2257 = vsub.f32 %v59, %v2256
    %v2258 = vand.u32 %v2257, 4294901760
    %2259 = vmatpush.msra.mxu0 %v2258
    %v2260 = vand.u32 %v58, 4294901760
    %v2261 = vsub.f32 %v58, %v2260
    %v2262 = vand.u32 %v2261, 4294901760
    %2263 = vmatpush.msra.mxu0 %v2262
    %v2264 = vand.u32 %v57, 4294901760
    %v2265 = vsub.f32 %v57, %v2264
    %v2266 = vand.u32 %v2265, 4294901760
    %2267 = vmatpush.msra.mxu0 %v2266
    %v2268 = vand.u32 %v56, 4294901760
    %v2269 = vsub.f32 %v56, %v2268
    %v2270 = vand.u32 %v2269, 4294901760
    %2271 = vmatpush.msra.mxu0 %v2270
    %v2272 = vand.u32 %v55, 4294901760
    %v2273 = vsub.f32 %v55, %v2272
    %v2274 = vand.u32 %v2273, 4294901760
    %2275 = vmatpush.msra.mxu0 %v2274
    %v2276 = vand.u32 %v54, 4294901760
    %v2277 = vsub.f32 %v54, %v2276
    %v2278 = vand.u32 %v2277, 4294901760
    %2279 = vmatpush.msra.mxu0 %v2278
    %v2280 = vand.u32 %v53, 4294901760
    %v2281 = vsub.f32 %v53, %v2280
    %v2282 = vand.u32 %v2281, 4294901760
    %2283 = vmatpush.msra.mxu0 %v2282
    %v2284 = vand.u32 %v52, 4294901760
    %v2285 = vsub.f32 %v52, %v2284
    %v2286 = vand.u32 %v2285, 4294901760
    %2287 = vmatpush.msra.mxu0 %v2286
    %v2288 = vand.u32 %v51, 4294901760
    %v2289 = vsub.f32 %v51, %v2288
    %v2290 = vand.u32 %v2289, 4294901760
    %2291 = vmatpush.msra.mxu0 %v2290
    %v2292 = vand.u32 %v50, 4294901760
    %v2293 = vsub.f32 %v50, %v2292
    %v2294 = vand.u32 %v2293, 4294901760
    %2295 = vmatpush.msra.mxu0 %v2294
    %v2296 = vand.u32 %v49, 4294901760
    %v2297 = vsub.f32 %v49, %v2296
    %v2298 = vand.u32 %v2297, 4294901760
    %2299 = vmatpush.msra.mxu0 %v2298
    %v2300 = vand.u32 %v2000, 4294901760
    %2301 = vmatmul.f32.gmra.mxu0 %v2300
    %v2302 = vpop.f32.mrf.mxu0
    %v2303 = vadd.f32 %v2234, %v2302
    %2304 = vdwg.mxu0
    %v2305 = vand.u32 %v64, 4294901760
    %2306 = vmatpush.msra.mxu0 %v2305
    %v2307 = vand.u32 %v63, 4294901760
    %2308 = vmatpush.msra.mxu0 %v2307
    %v2309 = vand.u32 %v62, 4294901760
    %2310 = vmatpush.msra.mxu0 %v2309
    %v2311 = vand.u32 %v61, 4294901760
    %2312 = vmatpush.msra.mxu0 %v2311
    %v2313 = vand.u32 %v60, 4294901760
    %2314 = vmatpush.msra.mxu0 %v2313
    %v2315 = vand.u32 %v59, 4294901760
    %2316 = vmatpush.msra.mxu0 %v2315
    %v2317 = vand.u32 %v58, 4294901760
    %2318 = vmatpush.msra.mxu0 %v2317
    %v2319 = vand.u32 %v57, 4294901760
    %2320 = vmatpush.msra.mxu0 %v2319
    %v2321 = vand.u32 %v56, 4294901760
    %2322 = vmatpush.msra.mxu0 %v2321
    %v2323 = vand.u32 %v55, 4294901760
    %2324 = vmatpush.msra.mxu0 %v2323
    %v2325 = vand.u32 %v54, 4294901760
    %2326 = vmatpush.msra.mxu0 %v2325
    %v2327 = vand.u32 %v53, 4294901760
    %2328 = vmatpush.msra.mxu0 %v2327
    %v2329 = vand.u32 %v52, 4294901760
    %2330 = vmatpush.msra.mxu0 %v2329
    %v2331 = vand.u32 %v51, 4294901760
    %2332 = vmatpush.msra.mxu0 %v2331
    %v2333 = vand.u32 %v50, 4294901760
    %2334 = vmatpush.msra.mxu0 %v2333
    %v2335 = vand.u32 %v49, 4294901760
    %2336 = vmatpush.msra.mxu0 %v2335
    %v2337 = vand.u32 %v2000, 4294901760
    %2338 = vmatmul.f32.gmra.mxu0 %v2337
    %v2339 = vpop.f32.mrf.mxu0
    %v2340 = vadd.f32 %v2303, %v2339
    %2341 = vdwg.mxu0
    %v2342 = vadd.f32 %v628, %v2340
    %v2343 = vtanh.pop %v2342
    %v2344 = vand.u32 %v64, 4294901760
    %2345 = vmatpush.msra.mxu0 %v2344
    %v2346 = vand.u32 %v63, 4294901760
    %2347 = vmatpush.msra.mxu0 %v2346
    %v2348 = vand.u32 %v62, 4294901760
    %2349 = vmatpush.msra.mxu0 %v2348
    %v2350 = vand.u32 %v61, 4294901760
    %2351 = vmatpush.msra.mxu0 %v2350
    %v2352 = vand.u32 %v60, 4294901760
    %2353 = vmatpush.msra.mxu0 %v2352
    %v2354 = vand.u32 %v59, 4294901760
    %2355 = vmatpush.msra.mxu0 %v2354
    %v2356 = vand.u32 %v58, 4294901760
    %2357 = vmatpush.msra.mxu0 %v2356
    %v2358 = vand.u32 %v57, 4294901760
    %2359 = vmatpush.msra.mxu0 %v2358
    %v2360 = vand.u32 %v56, 4294901760
    %2361 = vmatpush.msra.mxu0 %v2360
    %v2362 = vand.u32 %v55, 4294901760
    %2363 = vmatpush.msra.mxu0 %v2362
    %v2364 = vand.u32 %v54, 4294901760
    %2365 = vmatpush.msra.mxu0 %v2364
    %v2366 = vand.u32 %v53, 4294901760
    %2367 = vmatpush.msra.mxu0 %v2366
    %v2368 = vand.u32 %v52, 4294901760
    %2369 = vmatpush.msra.mxu0 %v2368
    %v2370 = vand.u32 %v51, 4294901760
    %2371 = vmatpush.msra.mxu0 %v2370
    %v2372 = vand.u32 %v50, 4294901760
    %2373 = vmatpush.msra.mxu0 %v2372
    %v2374 = vand.u32 %v49, 4294901760
    %2375 = vmatpush.msra.mxu0 %v2374
    %v2376 = vand.u32 %v2343, 4294901760
    %v2377 = vsub.f32 %v2343, %v2376
    %v2378 = vand.u32 %v2377, 4294901760
    %v2379 = vsub.f32 %v2377, %v2378
    %v2380 = vand.u32 %v2379, 4294901760
    %2381 = vmatmul.f32.gmra.mxu0 %v2380
    %v2382 = vpop.f32.mrf.mxu0
    %v2383 = vadd.f32 0.0, %v2382
    %2384 = vdwg.mxu0
    %v2385 = vand.u32 %v64, 4294901760
    %v2386 = vsub.f32 %v64, %v2385
    %v2387 = vand.u32 %v2386, 4294901760
    %v2388 = vsub.f32 %v2386, %v2387
    %v2389 = vand.u32 %v2388, 4294901760
    %2390 = vmatpush.msra.mxu0 %v2389
    %v2391 = vand.u32 %v63, 4294901760
    %v2392 = vsub.f32 %v63, %v2391
    %v2393 = vand.u32 %v2392, 4294901760
    %v2394 = vsub.f32 %v2392, %v2393
    %v2395 = vand.u32 %v2394, 4294901760
    %2396 = vmatpush.msra.mxu0 %v2395
    %v2397 = vand.u32 %v62, 4294901760
    %v2398 = vsub.f32 %v62, %v2397
    %v2399 = vand.u32 %v2398, 4294901760
    %v2400 = vsub.f32 %v2398, %v2399
    %v2401 = vand.u32 %v2400, 4294901760
    %2402 = vmatpush.msra.mxu0 %v2401
    %v2403 = vand.u32 %v61, 4294901760
    %v2404 = vsub.f32 %v61, %v2403
    %v2405 = vand.u32 %v2404, 4294901760
    %v2406 = vsub.f32 %v2404, %v2405
    %v2407 = vand.u32 %v2406, 4294901760
    %2408 = vmatpush.msra.mxu0 %v2407
    %v2409 = vand.u32 %v60, 4294901760
    %v2410 = vsub.f32 %v60, %v2409
    %v2411 = vand.u32 %v2410, 4294901760
    %v2412 = vsub.f32 %v2410, %v2411
    %v2413 = vand.u32 %v2412, 4294901760
    %2414 = vmatpush.msra.mxu0 %v2413
    %v2415 = vand.u32 %v59, 4294901760
    %v2416 = vsub.f32 %v59, %v2415
    %v2417 = vand.u32 %v2416, 4294901760
    %v2418 = vsub.f32 %v2416, %v2417
    %v2419 = vand.u32 %v2418, 4294901760
    %2420 = vmatpush.msra.mxu0 %v2419
    %v2421 = vand.u32 %v58, 4294901760
    %v2422 = vsub.f32 %v58, %v2421
    %v2423 = vand.u32 %v2422, 4294901760
    %v2424 = vsub.f32 %v2422, %v2423
    %v2425 = vand.u32 %v2424, 4294901760
    %2426 = vmatpush.msra.mxu0 %v2425
    %v2427 = vand.u32 %v57, 4294901760
    %v2428 = vsub.f32 %v57, %v2427
    %v2429 = vand.u32 %v2428, 4294901760
    %v2430 = vsub.f32 %v2428, %v2429
    %v2431 = vand.u32 %v2430, 4294901760
    %2432 = vmatpush.msra.mxu0 %v2431
    %v2433 = vand.u32 %v56, 4294901760
    %v2434 = vsub.f32 %v56, %v2433
    %v2435 = vand.u32 %v2434, 4294901760
    %v2436 = vsub.f32 %v2434, %v2435
    %v2437 = vand.u32 %v2436, 4294901760
    %2438 = vmatpush.msra.mxu0 %v2437
    %v2439 = vand.u32 %v55, 4294901760
    %v2440 = vsub.f32 %v55, %v2439
    %v2441 = vand.u32 %v2440, 4294901760
    %v2442 = vsub.f32 %v2440, %v2441
    %v2443 = vand.u32 %v2442, 4294901760
    %2444 = vmatpush.msra.mxu0 %v2443
    %v2445 = vand.u32 %v54, 4294901760
    %v2446 = vsub.f32 %v54, %v2445
    %v2447 = vand.u32 %v2446, 4294901760
    %v2448 = vsub.f32 %v2446, %v2447
    %v2449 = vand.u32 %v2448, 4294901760
    %2450 = vmatpush.msra.mxu0 %v2449
    %v2451 = vand.u32 %v53, 4294901760
    %v2452 = vsub.f32 %v53, %v2451
    %v2453 = vand.u32 %v2452, 4294901760
    %v2454 = vsub.f32 %v2452, %v2453
    %v2455 = vand.u32 %v2454, 4294901760
    %2456 = vmatpush.msra.mxu0 %v2455
    %v2457 = vand.u32 %v52, 4294901760
    %v2458 = vsub.f32 %v52, %v2457
    %v2459 = vand.u32 %v2458, 4294901760
    %v2460 = vsub.f32 %v2458, %v2459
    %v2461 = vand.u32 %v2460, 4294901760
    %2462 = vmatpush.msra.mxu0 %v2461
    %v2463 = vand.u32 %v51, 4294901760
    %v2464 = vsub.f32 %v51, %v2463
    %v2465 = vand.u32 %v2464, 4294901760
    %v2466 = vsub.f32 %v2464, %v2465
    %v2467 = vand.u32 %v2466, 4294901760
    %2468 = vmatpush.msra.mxu0 %v2467
    %v2469 = vand.u32 %v50, 4294901760
    %v2470 = vsub.f32 %v50, %v2469
    %v2471 = vand.u32 %v2470, 4294901760
    %v2472 = vsub.f32 %v2470, %v2471
    %v2473 = vand.u32 %v2472, 4294901760
    %2474 = vmatpush.msra.mxu0 %v2473
    %v2475 = vand.u32 %v49, 4294901760
    %v2476 = vsub.f32 %v49, %v2475
    %v2477 = vand.u32 %v2476, 4294901760
    %v2478 = vsub.f32 %v2476, %v2477
    %v2479 = vand.u32 %v2478, 4294901760
    %2480 = vmatpush.msra.mxu0 %v2479
    %v2481 = vand.u32 %v2343, 4294901760
    %2482 = vmatmul.f32.gmra.mxu0 %v2481
    %v2483 = vpop.f32.mrf.mxu0
    %v2484 = vadd.f32 %v2383, %v2483
    %2485 = vdwg.mxu0
    %v2486 = vand.u32 %v64, 4294901760
    %v2487 = vsub.f32 %v64, %v2486
    %2488 = vmatpush.msra.mxu0 %v2487
    %v2489 = vand.u32 %v63, 4294901760
    %v2490 = vsub.f32 %v63, %v2489
    %2491 = vmatpush.msra.mxu0 %v2490
    %v2492 = vand.u32 %v62, 4294901760
    %v2493 = vsub.f32 %v62, %v2492
    %2494 = vmatpush.msra.mxu0 %v2493
    %v2495 = vand.u32 %v61, 4294901760
    %v2496 = vsub.f32 %v61, %v2495
    %2497 = vmatpush.msra.mxu0 %v2496
    %v2498 = vand.u32 %v60, 4294901760
    %v2499 = vsub.f32 %v60, %v2498
    %2500 = vmatpush.msra.mxu0 %v2499
    %v2501 = vand.u32 %v59, 4294901760
    %v2502 = vsub.f32 %v59, %v2501
    %2503 = vmatpush.msra.mxu0 %v2502
    %v2504 = vand.u32 %v58, 4294901760
    %v2505 = vsub.f32 %v58, %v2504
    %2506 = vmatpush.msra.mxu0 %v2505
    %v2507 = vand.u32 %v57, 4294901760
    %v2508 = vsub.f32 %v57, %v2507
    %2509 = vmatpush.msra.mxu0 %v2508
    %v2510 = vand.u32 %v56, 4294901760
    %v2511 = vsub.f32 %v56, %v2510
    %2512 = vmatpush.msra.mxu0 %v2511
    %v2513 = vand.u32 %v55, 4294901760
    %v2514 = vsub.f32 %v55, %v2513
    %2515 = vmatpush.msra.mxu0 %v2514
    %v2516 = vand.u32 %v54, 4294901760
    %v2517 = vsub.f32 %v54, %v2516
    %2518 = vmatpush.msra.mxu0 %v2517
    %v2519 = vand.u32 %v53, 4294901760
    %v2520 = vsub.f32 %v53, %v2519
    %2521 = vmatpush.msra.mxu0 %v2520
    %v2522 = vand.u32 %v52, 4294901760
    %v2523 = vsub.f32 %v52, %v2522
    %2524 = vmatpush.msra.mxu0 %v2523
    %v2525 = vand.u32 %v51, 4294901760
    %v2526 = vsub.f32 %v51, %v2525
    %2527 = vmatpush.msra.mxu0 %v2526
    %v2528 = vand.u32 %v50, 4294901760
    %v2529 = vsub.f32 %v50, %v2528
    %2530 = vmatpush.msra.mxu0 %v2529
    %v2531 = vand.u32 %v49, 4294901760
    %v2532 = vsub.f32 %v49, %v2531
    %2533 = vmatpush.msra.mxu0 %v2532
    %v2534 = vand.u32 %v2343, 4294901760
    %v2535 = vsub.f32 %v2343, %v2534
    %2536 = vmatmul.f32.gmra.mxu0 %v2535
    %v2537 = vpop.f32.mrf.mxu0
    %v2538 = vadd.f32 %v2484, %v2537
    %2539 = vdwg.mxu0
    %v2540 = vand.u32 %v64, 4294901760
    %2541 = vmatpush.msra.mxu0 %v2540
    %v2542 = vand.u32 %v63, 4294901760
    %2543 = vmatpush.msra.mxu0 %v2542
    %v2544 = vand.u32 %v62, 4294901760
    %2545 = vmatpush.msra.mxu0 %v2544
    %v2546 = vand.u32 %v61, 4294901760
    %2547 = vmatpush.msra.mxu0 %v2546
    %v2548 = vand.u32 %v60, 4294901760
    %2549 = vmatpush.msra.mxu0 %v2548
    %v2550 = vand.u32 %v59, 4294901760
    %2551 = vmatpush.msra.mxu0 %v2550
    %v2552 = vand.u32 %v58, 4294901760
    %2553 = vmatpush.msra.mxu0 %v2552
    %v2554 = vand.u32 %v57, 4294901760
    %2555 = vmatpush.msra.mxu0 %v2554
    %v2556 = vand.u32 %v56, 4294901760
    %2557 = vmatpush.msra.mxu0 %v2556
    %v2558 = vand.u32 %v55, 4294901760
    %2559 = vmatpush.msra.mxu0 %v2558
    %v2560 = vand.u32 %v54, 4294901760
    %2561 = vmatpush.msra.mxu0 %v2560
    %v2562 = vand.u32 %v53, 4294901760
    %2563 = vmatpush.msra.mxu0 %v2562
    %v2564 = vand.u32 %v52, 4294901760
    %2565 = vmatpush.msra.mxu0 %v2564
    %v2566 = vand.u32 %v51, 4294901760
    %2567 = vmatpush.msra.mxu0 %v2566
    %v2568 = vand.u32 %v50, 4294901760
    %2569 = vmatpush.msra.mxu0 %v2568
    %v2570 = vand.u32 %v49, 4294901760
    %2571 = vmatpush.msra.mxu0 %v2570
    %v2572 = vand.u32 %v2343, 4294901760
    %v2573 = vsub.f32 %v2343, %v2572
    %v2574 = vand.u32 %v2573, 4294901760
    %2575 = vmatmul.f32.gmra.mxu0 %v2574
    %v2576 = vpop.f32.mrf.mxu0
    %v2577 = vadd.f32 %v2538, %v2576
    %2578 = vdwg.mxu0
    %v2579 = vand.u32 %v64, 4294901760
    %v2580 = vsub.f32 %v64, %v2579
    %v2581 = vand.u32 %v2580, 4294901760
    %2582 = vmatpush.msra.mxu0 %v2581
    %v2583 = vand.u32 %v63, 4294901760
    %v2584 = vsub.f32 %v63, %v2583
    %v2585 = vand.u32 %v2584, 4294901760
    %2586 = vmatpush.msra.mxu0 %v2585
    %v2587 = vand.u32 %v62, 4294901760
    %v2588 = vsub.f32 %v62, %v2587
    %v2589 = vand.u32 %v2588, 4294901760
    %2590 = vmatpush.msra.mxu0 %v2589
    %v2591 = vand.u32 %v61, 4294901760
    %v2592 = vsub.f32 %v61, %v2591
    %v2593 = vand.u32 %v2592, 4294901760
    %2594 = vmatpush.msra.mxu0 %v2593
    %v2595 = vand.u32 %v60, 4294901760
    %v2596 = vsub.f32 %v60, %v2595
    %v2597 = vand.u32 %v2596, 4294901760
    %2598 = vmatpush.msra.mxu0 %v2597
    %v2599 = vand.u32 %v59, 4294901760
    %v2600 = vsub.f32 %v59, %v2599
    %v2601 = vand.u32 %v2600, 4294901760
    %2602 = vmatpush.msra.mxu0 %v2601
    %v2603 = vand.u32 %v58, 4294901760
    %v2604 = vsub.f32 %v58, %v2603
    %v2605 = vand.u32 %v2604, 4294901760
    %2606 = vmatpush.msra.mxu0 %v2605
    %v2607 = vand.u32 %v57, 4294901760
    %v2608 = vsub.f32 %v57, %v2607
    %v2609 = vand.u32 %v2608, 4294901760
    %2610 = vmatpush.msra.mxu0 %v2609
    %v2611 = vand.u32 %v56, 4294901760
    %v2612 = vsub.f32 %v56, %v2611
    %v2613 = vand.u32 %v2612, 4294901760
    %2614 = vmatpush.msra.mxu0 %v2613
    %v2615 = vand.u32 %v55, 4294901760
    %v2616 = vsub.f32 %v55, %v2615
    %v2617 = vand.u32 %v2616, 4294901760
    %2618 = vmatpush.msra.mxu0 %v2617
    %v2619 = vand.u32 %v54, 4294901760
    %v2620 = vsub.f32 %v54, %v2619
    %v2621 = vand.u32 %v2620, 4294901760
    %2622 = vmatpush.msra.mxu0 %v2621
    %v2623 = vand.u32 %v53, 4294901760
    %v2624 = vsub.f32 %v53, %v2623
    %v2625 = vand.u32 %v2624, 4294901760
    %2626 = vmatpush.msra.mxu0 %v2625
    %v2627 = vand.u32 %v52, 4294901760
    %v2628 = vsub.f32 %v52, %v2627
    %v2629 = vand.u32 %v2628, 4294901760
    %2630 = vmatpush.msra.mxu0 %v2629
    %v2631 = vand.u32 %v51, 4294901760
    %v2632 = vsub.f32 %v51, %v2631
    %v2633 = vand.u32 %v2632, 4294901760
    %2634 = vmatpush.msra.mxu0 %v2633
    %v2635 = vand.u32 %v50, 4294901760
    %v2636 = vsub.f32 %v50, %v2635
    %v2637 = vand.u32 %v2636, 4294901760
    %2638 = vmatpush.msra.mxu0 %v2637
    %v2639 = vand.u32 %v49, 4294901760
    %v2640 = vsub.f32 %v49, %v2639
    %v2641 = vand.u32 %v2640, 4294901760
    %2642 = vmatpush.msra.mxu0 %v2641
    %v2643 = vand.u32 %v2343, 4294901760
    %2644 = vmatmul.f32.gmra.mxu0 %v2643
    %v2645 = vpop.f32.mrf.mxu0
    %v2646 = vadd.f32 %v2577, %v2645
    %2647 = vdwg.mxu0
    %v2648 = vand.u32 %v64, 4294901760
    %2649 = vmatpush.msra.mxu0 %v2648
    %v2650 = vand.u32 %v63, 4294901760
    %2651 = vmatpush.msra.mxu0 %v2650
    %v2652 = vand.u32 %v62, 4294901760
    %2653 = vmatpush.msra.mxu0 %v2652
    %v2654 = vand.u32 %v61, 4294901760
    %2655 = vmatpush.msra.mxu0 %v2654
    %v2656 = vand.u32 %v60, 4294901760
    %2657 = vmatpush.msra.mxu0 %v2656
    %v2658 = vand.u32 %v59, 4294901760
    %2659 = vmatpush.msra.mxu0 %v2658
    %v2660 = vand.u32 %v58, 4294901760
    %2661 = vmatpush.msra.mxu0 %v2660
    %v2662 = vand.u32 %v57, 4294901760
    %2663 = vmatpush.msra.mxu0 %v2662
    %v2664 = vand.u32 %v56, 4294901760
    %2665 = vmatpush.msra.mxu0 %v2664
    %v2666 = vand.u32 %v55, 4294901760
    %2667 = vmatpush.msra.mxu0 %v2666
    %v2668 = vand.u32 %v54, 4294901760
    %2669 = vmatpush.msra.mxu0 %v2668
    %v2670 = vand.u32 %v53, 4294901760
    %2671 = vmatpush.msra.mxu0 %v2670
    %v2672 = vand.u32 %v52, 4294901760
    %2673 = vmatpush.msra.mxu0 %v2672
    %v2674 = vand.u32 %v51, 4294901760
    %2675 = vmatpush.msra.mxu0 %v2674
    %v2676 = vand.u32 %v50, 4294901760
    %2677 = vmatpush.msra.mxu0 %v2676
    %v2678 = vand.u32 %v49, 4294901760
    %2679 = vmatpush.msra.mxu0 %v2678
    %v2680 = vand.u32 %v2343, 4294901760
    %2681 = vmatmul.f32.gmra.mxu0 %v2680
    %v2682 = vpop.f32.mrf.mxu0
    %v2683 = vadd.f32 %v2646, %v2682
    %2684 = vdwg.mxu0
    %v2685 = vadd.f32 %v632, %v2683
    %v2686 = vtanh.pop %v2685
    %v2687 = vand.u32 %v64, 4294901760
    %2688 = vmatpush.msra.mxu0 %v2687
    %v2689 = vand.u32 %v63, 4294901760
    %2690 = vmatpush.msra.mxu0 %v2689
    %v2691 = vand.u32 %v62, 4294901760
    %2692 = vmatpush.msra.mxu0 %v2691
    %v2693 = vand.u32 %v61, 4294901760
    %2694 = vmatpush.msra.mxu0 %v2693
    %v2695 = vand.u32 %v60, 4294901760
    %2696 = vmatpush.msra.mxu0 %v2695
    %v2697 = vand.u32 %v59, 4294901760
    %2698 = vmatpush.msra.mxu0 %v2697
    %v2699 = vand.u32 %v58, 4294901760
    %2700 = vmatpush.msra.mxu0 %v2699
    %v2701 = vand.u32 %v57, 4294901760
    %2702 = vmatpush.msra.mxu0 %v2701
    %v2703 = vand.u32 %v56, 4294901760
    %2704 = vmatpush.msra.mxu0 %v2703
    %v2705 = vand.u32 %v55, 4294901760
    %2706 = vmatpush.msra.mxu0 %v2705
    %v2707 = vand.u32 %v54, 4294901760
    %2708 = vmatpush.msra.mxu0 %v2707
    %v2709 = vand.u32 %v53, 4294901760
    %2710 = vmatpush.msra.mxu0 %v2709
    %v2711 = vand.u32 %v52, 4294901760
    %2712 = vmatpush.msra.mxu0 %v2711
    %v2713 = vand.u32 %v51, 4294901760
    %2714 = vmatpush.msra.mxu0 %v2713
    %v2715 = vand.u32 %v50, 4294901760
    %2716 = vmatpush.msra.mxu0 %v2715
    %v2717 = vand.u32 %v49, 4294901760
    %2718 = vmatpush.msra.mxu0 %v2717
    %v2719 = vand.u32 %v2686, 4294901760
    %v2720 = vsub.f32 %v2686, %v2719
    %v2721 = vand.u32 %v2720, 4294901760
    %v2722 = vsub.f32 %v2720, %v2721
    %v2723 = vand.u32 %v2722, 4294901760
    %2724 = vmatmul.f32.gmra.mxu0 %v2723
    %v2725 = vpop.f32.mrf.mxu0
    %v2726 = vadd.f32 0.0, %v2725
    %2727 = vdwg.mxu0
    %v2728 = vand.u32 %v64, 4294901760
    %v2729 = vsub.f32 %v64, %v2728
    %v2730 = vand.u32 %v2729, 4294901760
    %v2731 = vsub.f32 %v2729, %v2730
    %v2732 = vand.u32 %v2731, 4294901760
    %2733 = vmatpush.msra.mxu0 %v2732
    %v2734 = vand.u32 %v63, 4294901760
    %v2735 = vsub.f32 %v63, %v2734
    %v2736 = vand.u32 %v2735, 4294901760
    %v2737 = vsub.f32 %v2735, %v2736
    %v2738 = vand.u32 %v2737, 4294901760
    %2739 = vmatpush.msra.mxu0 %v2738
    %v2740 = vand.u32 %v62, 4294901760
    %v2741 = vsub.f32 %v62, %v2740
    %v2742 = vand.u32 %v2741, 4294901760
    %v2743 = vsub.f32 %v2741, %v2742
    %v2744 = vand.u32 %v2743, 4294901760
    %2745 = vmatpush.msra.mxu0 %v2744
    %v2746 = vand.u32 %v61, 4294901760
    %v2747 = vsub.f32 %v61, %v2746
    %v2748 = vand.u32 %v2747, 4294901760
    %v2749 = vsub.f32 %v2747, %v2748
    %v2750 = vand.u32 %v2749, 4294901760
    %2751 = vmatpush.msra.mxu0 %v2750
    %v2752 = vand.u32 %v60, 4294901760
    %v2753 = vsub.f32 %v60, %v2752
    %v2754 = vand.u32 %v2753, 4294901760
    %v2755 = vsub.f32 %v2753, %v2754
    %v2756 = vand.u32 %v2755, 4294901760
    %2757 = vmatpush.msra.mxu0 %v2756
    %v2758 = vand.u32 %v59, 4294901760
    %v2759 = vsub.f32 %v59, %v2758
    %v2760 = vand.u32 %v2759, 4294901760
    %v2761 = vsub.f32 %v2759, %v2760
    %v2762 = vand.u32 %v2761, 4294901760
    %2763 = vmatpush.msra.mxu0 %v2762
    %v2764 = vand.u32 %v58, 4294901760
    %v2765 = vsub.f32 %v58, %v2764
    %v2766 = vand.u32 %v2765, 4294901760
    %v2767 = vsub.f32 %v2765, %v2766
    %v2768 = vand.u32 %v2767, 4294901760
    %2769 = vmatpush.msra.mxu0 %v2768
    %v2770 = vand.u32 %v57, 4294901760
    %v2771 = vsub.f32 %v57, %v2770
    %v2772 = vand.u32 %v2771, 4294901760
    %v2773 = vsub.f32 %v2771, %v2772
    %v2774 = vand.u32 %v2773, 4294901760
    %2775 = vmatpush.msra.mxu0 %v2774
    %v2776 = vand.u32 %v56, 4294901760
    %v2777 = vsub.f32 %v56, %v2776
    %v2778 = vand.u32 %v2777, 4294901760
    %v2779 = vsub.f32 %v2777, %v2778
    %v2780 = vand.u32 %v2779, 4294901760
    %2781 = vmatpush.msra.mxu0 %v2780
    %v2782 = vand.u32 %v55, 4294901760
    %v2783 = vsub.f32 %v55, %v2782
    %v2784 = vand.u32 %v2783, 4294901760
    %v2785 = vsub.f32 %v2783, %v2784
    %v2786 = vand.u32 %v2785, 4294901760
    %2787 = vmatpush.msra.mxu0 %v2786
    %v2788 = vand.u32 %v54, 4294901760
    %v2789 = vsub.f32 %v54, %v2788
    %v2790 = vand.u32 %v2789, 4294901760
    %v2791 = vsub.f32 %v2789, %v2790
    %v2792 = vand.u32 %v2791, 4294901760
    %2793 = vmatpush.msra.mxu0 %v2792
    %v2794 = vand.u32 %v53, 4294901760
    %v2795 = vsub.f32 %v53, %v2794
    %v2796 = vand.u32 %v2795, 4294901760
    %v2797 = vsub.f32 %v2795, %v2796
    %v2798 = vand.u32 %v2797, 4294901760
    %2799 = vmatpush.msra.mxu0 %v2798
    %v2800 = vand.u32 %v52, 4294901760
    %v2801 = vsub.f32 %v52, %v2800
    %v2802 = vand.u32 %v2801, 4294901760
    %v2803 = vsub.f32 %v2801, %v2802
    %v2804 = vand.u32 %v2803, 4294901760
    %2805 = vmatpush.msra.mxu0 %v2804
    %v2806 = vand.u32 %v51, 4294901760
    %v2807 = vsub.f32 %v51, %v2806
    %v2808 = vand.u32 %v2807, 4294901760
    %v2809 = vsub.f32 %v2807, %v2808
    %v2810 = vand.u32 %v2809, 4294901760
    %2811 = vmatpush.msra.mxu0 %v2810
    %v2812 = vand.u32 %v50, 4294901760
    %v2813 = vsub.f32 %v50, %v2812
    %v2814 = vand.u32 %v2813, 4294901760
    %v2815 = vsub.f32 %v2813, %v2814
    %v2816 = vand.u32 %v2815, 4294901760
    %2817 = vmatpush.msra.mxu0 %v2816
    %v2818 = vand.u32 %v49, 4294901760
    %v2819 = vsub.f32 %v49, %v2818
    %v2820 = vand.u32 %v2819, 4294901760
    %v2821 = vsub.f32 %v2819, %v2820
    %v2822 = vand.u32 %v2821, 4294901760
    %2823 = vmatpush.msra.mxu0 %v2822
    %v2824 = vand.u32 %v2686, 4294901760
    %2825 = vmatmul.f32.gmra.mxu0 %v2824
    %v2826 = vpop.f32.mrf.mxu0
    %v2827 = vadd.f32 %v2726, %v2826
    %2828 = vdwg.mxu0
    %v2829 = vand.u32 %v64, 4294901760
    %v2830 = vsub.f32 %v64, %v2829
    %2831 = vmatpush.msra.mxu0 %v2830
    %v2832 = vand.u32 %v63, 4294901760
    %v2833 = vsub.f32 %v63, %v2832
    %2834 = vmatpush.msra.mxu0 %v2833
    %v2835 = vand.u32 %v62, 4294901760
    %v2836 = vsub.f32 %v62, %v2835
    %2837 = vmatpush.msra.mxu0 %v2836
    %v2838 = vand.u32 %v61, 4294901760
    %v2839 = vsub.f32 %v61, %v2838
    %2840 = vmatpush.msra.mxu0 %v2839
    %v2841 = vand.u32 %v60, 4294901760
    %v2842 = vsub.f32 %v60, %v2841
    %2843 = vmatpush.msra.mxu0 %v2842
    %v2844 = vand.u32 %v59, 4294901760
    %v2845 = vsub.f32 %v59, %v2844
    %2846 = vmatpush.msra.mxu0 %v2845
    %v2847 = vand.u32 %v58, 4294901760
    %v2848 = vsub.f32 %v58, %v2847
    %2849 = vmatpush.msra.mxu0 %v2848
    %v2850 = vand.u32 %v57, 4294901760
    %v2851 = vsub.f32 %v57, %v2850
    %2852 = vmatpush.msra.mxu0 %v2851
    %v2853 = vand.u32 %v56, 4294901760
    %v2854 = vsub.f32 %v56, %v2853
    %2855 = vmatpush.msra.mxu0 %v2854
    %v2856 = vand.u32 %v55, 4294901760
    %v2857 = vsub.f32 %v55, %v2856
    %2858 = vmatpush.msra.mxu0 %v2857
    %v2859 = vand.u32 %v54, 4294901760
    %v2860 = vsub.f32 %v54, %v2859
    %2861 = vmatpush.msra.mxu0 %v2860
    %v2862 = vand.u32 %v53, 4294901760
    %v2863 = vsub.f32 %v53, %v2862
    %2864 = vmatpush.msra.mxu0 %v2863
    %v2865 = vand.u32 %v52, 4294901760
    %v2866 = vsub.f32 %v52, %v2865
    %2867 = vmatpush.msra.mxu0 %v2866
    %v2868 = vand.u32 %v51, 4294901760
    %v2869 = vsub.f32 %v51, %v2868
    %2870 = vmatpush.msra.mxu0 %v2869
    %v2871 = vand.u32 %v50, 4294901760
    %v2872 = vsub.f32 %v50, %v2871
    %2873 = vmatpush.msra.mxu0 %v2872
    %v2874 = vand.u32 %v49, 4294901760
    %v2875 = vsub.f32 %v49, %v2874
    %2876 = vmatpush.msra.mxu0 %v2875
    %v2877 = vand.u32 %v2686, 4294901760
    %v2878 = vsub.f32 %v2686, %v2877
    %2879 = vmatmul.f32.gmra.mxu0 %v2878
    %v2880 = vpop.f32.mrf.mxu0
    %v2881 = vadd.f32 %v2827, %v2880
    %2882 = vdwg.mxu0
    %v2883 = vand.u32 %v64, 4294901760
    %2884 = vmatpush.msra.mxu0 %v2883
    %v2885 = vand.u32 %v63, 4294901760
    %2886 = vmatpush.msra.mxu0 %v2885
    %v2887 = vand.u32 %v62, 4294901760
    %2888 = vmatpush.msra.mxu0 %v2887
    %v2889 = vand.u32 %v61, 4294901760
    %2890 = vmatpush.msra.mxu0 %v2889
    %v2891 = vand.u32 %v60, 4294901760
    %2892 = vmatpush.msra.mxu0 %v2891
    %v2893 = vand.u32 %v59, 4294901760
    %2894 = vmatpush.msra.mxu0 %v2893
    %v2895 = vand.u32 %v58, 4294901760
    %2896 = vmatpush.msra.mxu0 %v2895
    %v2897 = vand.u32 %v57, 4294901760
    %2898 = vmatpush.msra.mxu0 %v2897
    %v2899 = vand.u32 %v56, 4294901760
    %2900 = vmatpush.msra.mxu0 %v2899
    %v2901 = vand.u32 %v55, 4294901760
    %2902 = vmatpush.msra.mxu0 %v2901
    %v2903 = vand.u32 %v54, 4294901760
    %2904 = vmatpush.msra.mxu0 %v2903
    %v2905 = vand.u32 %v53, 4294901760
    %2906 = vmatpush.msra.mxu0 %v2905
    %v2907 = vand.u32 %v52, 4294901760
    %2908 = vmatpush.msra.mxu0 %v2907
    %v2909 = vand.u32 %v51, 4294901760
    %2910 = vmatpush.msra.mxu0 %v2909
    %v2911 = vand.u32 %v50, 4294901760
    %2912 = vmatpush.msra.mxu0 %v2911
    %v2913 = vand.u32 %v49, 4294901760
    %2914 = vmatpush.msra.mxu0 %v2913
    %v2915 = vand.u32 %v2686, 4294901760
    %v2916 = vsub.f32 %v2686, %v2915
    %v2917 = vand.u32 %v2916, 4294901760
    %2918 = vmatmul.f32.gmra.mxu0 %v2917
    %v2919 = vpop.f32.mrf.mxu0
    %v2920 = vadd.f32 %v2881, %v2919
    %2921 = vdwg.mxu0
    %v2922 = vand.u32 %v64, 4294901760
    %v2923 = vsub.f32 %v64, %v2922
    %v2924 = vand.u32 %v2923, 4294901760
    %2925 = vmatpush.msra.mxu0 %v2924
    %v2926 = vand.u32 %v63, 4294901760
    %v2927 = vsub.f32 %v63, %v2926
    %v2928 = vand.u32 %v2927, 4294901760
    %2929 = vmatpush.msra.mxu0 %v2928
    %v2930 = vand.u32 %v62, 4294901760
    %v2931 = vsub.f32 %v62, %v2930
    %v2932 = vand.u32 %v2931, 4294901760
    %2933 = vmatpush.msra.mxu0 %v2932
    %v2934 = vand.u32 %v61, 4294901760
    %v2935 = vsub.f32 %v61, %v2934
    %v2936 = vand.u32 %v2935, 4294901760
    %2937 = vmatpush.msra.mxu0 %v2936
    %v2938 = vand.u32 %v60, 4294901760
    %v2939 = vsub.f32 %v60, %v2938
    %v2940 = vand.u32 %v2939, 4294901760
    %2941 = vmatpush.msra.mxu0 %v2940
    %v2942 = vand.u32 %v59, 4294901760
    %v2943 = vsub.f32 %v59, %v2942
    %v2944 = vand.u32 %v2943, 4294901760
    %2945 = vmatpush.msra.mxu0 %v2944
    %v2946 = vand.u32 %v58, 4294901760
    %v2947 = vsub.f32 %v58, %v2946
    %v2948 = vand.u32 %v2947, 4294901760
    %2949 = vmatpush.msra.mxu0 %v2948
    %v2950 = vand.u32 %v57, 4294901760
    %v2951 = vsub.f32 %v57, %v2950
    %v2952 = vand.u32 %v2951, 4294901760
    %2953 = vmatpush.msra.mxu0 %v2952
    %v2954 = vand.u32 %v56, 4294901760
    %v2955 = vsub.f32 %v56, %v2954
    %v2956 = vand.u32 %v2955, 4294901760
    %2957 = vmatpush.msra.mxu0 %v2956
    %v2958 = vand.u32 %v55, 4294901760
    %v2959 = vsub.f32 %v55, %v2958
    %v2960 = vand.u32 %v2959, 4294901760
    %2961 = vmatpush.msra.mxu0 %v2960
    %v2962 = vand.u32 %v54, 4294901760
    %v2963 = vsub.f32 %v54, %v2962
    %v2964 = vand.u32 %v2963, 4294901760
    %2965 = vmatpush.msra.mxu0 %v2964
    %v2966 = vand.u32 %v53, 4294901760
    %v2967 = vsub.f32 %v53, %v2966
    %v2968 = vand.u32 %v2967, 4294901760
    %2969 = vmatpush.msra.mxu0 %v2968
    %v2970 = vand.u32 %v52, 4294901760
    %v2971 = vsub.f32 %v52, %v2970
    %v2972 = vand.u32 %v2971, 4294901760
    %2973 = vmatpush.msra.mxu0 %v2972
    %v2974 = vand.u32 %v51, 4294901760
    %v2975 = vsub.f32 %v51, %v2974
    %v2976 = vand.u32 %v2975, 4294901760
    %2977 = vmatpush.msra.mxu0 %v2976
    %v2978 = vand.u32 %v50, 4294901760
    %v2979 = vsub.f32 %v50, %v2978
    %v2980 = vand.u32 %v2979, 4294901760
    %2981 = vmatpush.msra.mxu0 %v2980
    %v2982 = vand.u32 %v49, 4294901760
    %v2983 = vsub.f32 %v49, %v2982
    %v2984 = vand.u32 %v2983, 4294901760
    %2985 = vmatpush.msra.mxu0 %v2984
    %v2986 = vand.u32 %v2686, 4294901760
    %2987 = vmatmul.f32.gmra.mxu0 %v2986
    %v2988 = vpop.f32.mrf.mxu0
    %v2989 = vadd.f32 %v2920, %v2988
    %2990 = vdwg.mxu0
    %v2991 = vand.u32 %v64, 4294901760
    %2992 = vmatpush.msra.mxu0 %v2991
    %v2993 = vand.u32 %v63, 4294901760
    %2994 = vmatpush.msra.mxu0 %v2993
    %v2995 = vand.u32 %v62, 4294901760
    %2996 = vmatpush.msra.mxu0 %v2995
    %v2997 = vand.u32 %v61, 4294901760
    %2998 = vmatpush.msra.mxu0 %v2997
    %v2999 = vand.u32 %v60, 4294901760
    %3000 = vmatpush.msra.mxu0 %v2999
    %v3001 = vand.u32 %v59, 4294901760
    %3002 = vmatpush.msra.mxu0 %v3001
    %v3003 = vand.u32 %v58, 4294901760
    %3004 = vmatpush.msra.mxu0 %v3003
    %v3005 = vand.u32 %v57, 4294901760
    %3006 = vmatpush.msra.mxu0 %v3005
    %v3007 = vand.u32 %v56, 4294901760
    %3008 = vmatpush.msra.mxu0 %v3007
    %v3009 = vand.u32 %v55, 4294901760
    %3010 = vmatpush.msra.mxu0 %v3009
    %v3011 = vand.u32 %v54, 4294901760
    %3012 = vmatpush.msra.mxu0 %v3011
    %v3013 = vand.u32 %v53, 4294901760
    %3014 = vmatpush.msra.mxu0 %v3013
    %v3015 = vand.u32 %v52, 4294901760
    %3016 = vmatpush.msra.mxu0 %v3015
    %v3017 = vand.u32 %v51, 4294901760
    %3018 = vmatpush.msra.mxu0 %v3017
    %v3019 = vand.u32 %v50, 4294901760
    %3020 = vmatpush.msra.mxu0 %v3019
    %v3021 = vand.u32 %v49, 4294901760
    %3022 = vmatpush.msra.mxu0 %v3021
    %v3023 = vand.u32 %v2686, 4294901760
    %3024 = vmatmul.f32.gmra.mxu0 %v3023
    %v3025 = vpop.f32.mrf.mxu0
    %v3026 = vadd.f32 %v2989, %v3025
    %3027 = vdwg.mxu0
    %v3028 = vadd.f32 %v636, %v3026
    %v3029 = vtanh.pop %v3028
    %v3030 = vand.u32 %v64, 4294901760
    %3031 = vmatpush.msra.mxu0 %v3030
    %v3032 = vand.u32 %v63, 4294901760
    %3033 = vmatpush.msra.mxu0 %v3032
    %v3034 = vand.u32 %v62, 4294901760
    %3035 = vmatpush.msra.mxu0 %v3034
    %v3036 = vand.u32 %v61, 4294901760
    %3037 = vmatpush.msra.mxu0 %v3036
    %v3038 = vand.u32 %v60, 4294901760
    %3039 = vmatpush.msra.mxu0 %v3038
    %v3040 = vand.u32 %v59, 4294901760
    %3041 = vmatpush.msra.mxu0 %v3040
    %v3042 = vand.u32 %v58, 4294901760
    %3043 = vmatpush.msra.mxu0 %v3042
    %v3044 = vand.u32 %v57, 4294901760
    %3045 = vmatpush.msra.mxu0 %v3044
    %v3046 = vand.u32 %v56, 4294901760
    %3047 = vmatpush.msra.mxu0 %v3046
    %v3048 = vand.u32 %v55, 4294901760
    %3049 = vmatpush.msra.mxu0 %v3048
    %v3050 = vand.u32 %v54, 4294901760
    %3051 = vmatpush.msra.mxu0 %v3050
    %v3052 = vand.u32 %v53, 4294901760
    %3053 = vmatpush.msra.mxu0 %v3052
    %v3054 = vand.u32 %v52, 4294901760
    %3055 = vmatpush.msra.mxu0 %v3054
    %v3056 = vand.u32 %v51, 4294901760
    %3057 = vmatpush.msra.mxu0 %v3056
    %v3058 = vand.u32 %v50, 4294901760
    %3059 = vmatpush.msra.mxu0 %v3058
    %v3060 = vand.u32 %v49, 4294901760
    %3061 = vmatpush.msra.mxu0 %v3060
    %v3062 = vand.u32 %v3029, 4294901760
    %v3063 = vsub.f32 %v3029, %v3062
    %v3064 = vand.u32 %v3063, 4294901760
    %v3065 = vsub.f32 %v3063, %v3064
    %v3066 = vand.u32 %v3065, 4294901760
    %3067 = vmatmul.f32.gmra.mxu0 %v3066
    %v3068 = vpop.f32.mrf.mxu0
    %v3069 = vadd.f32 0.0, %v3068
    %3070 = vdwg.mxu0
    %v3071 = vand.u32 %v64, 4294901760
    %v3072 = vsub.f32 %v64, %v3071
    %v3073 = vand.u32 %v3072, 4294901760
    %v3074 = vsub.f32 %v3072, %v3073
    %v3075 = vand.u32 %v3074, 4294901760
    %3076 = vmatpush.msra.mxu0 %v3075
    %v3077 = vand.u32 %v63, 4294901760
    %v3078 = vsub.f32 %v63, %v3077
    %v3079 = vand.u32 %v3078, 4294901760
    %v3080 = vsub.f32 %v3078, %v3079
    %v3081 = vand.u32 %v3080, 4294901760
    %3082 = vmatpush.msra.mxu0 %v3081
    %v3083 = vand.u32 %v62, 4294901760
    %v3084 = vsub.f32 %v62, %v3083
    %v3085 = vand.u32 %v3084, 4294901760
    %v3086 = vsub.f32 %v3084, %v3085
    %v3087 = vand.u32 %v3086, 4294901760
    %3088 = vmatpush.msra.mxu0 %v3087
    %v3089 = vand.u32 %v61, 4294901760
    %v3090 = vsub.f32 %v61, %v3089
    %v3091 = vand.u32 %v3090, 4294901760
    %v3092 = vsub.f32 %v3090, %v3091
    %v3093 = vand.u32 %v3092, 4294901760
    %3094 = vmatpush.msra.mxu0 %v3093
    %v3095 = vand.u32 %v60, 4294901760
    %v3096 = vsub.f32 %v60, %v3095
    %v3097 = vand.u32 %v3096, 4294901760
    %v3098 = vsub.f32 %v3096, %v3097
    %v3099 = vand.u32 %v3098, 4294901760
    %3100 = vmatpush.msra.mxu0 %v3099
    %v3101 = vand.u32 %v59, 4294901760
    %v3102 = vsub.f32 %v59, %v3101
    %v3103 = vand.u32 %v3102, 4294901760
    %v3104 = vsub.f32 %v3102, %v3103
    %v3105 = vand.u32 %v3104, 4294901760
    %3106 = vmatpush.msra.mxu0 %v3105
    %v3107 = vand.u32 %v58, 4294901760
    %v3108 = vsub.f32 %v58, %v3107
    %v3109 = vand.u32 %v3108, 4294901760
    %v3110 = vsub.f32 %v3108, %v3109
    %v3111 = vand.u32 %v3110, 4294901760
    %3112 = vmatpush.msra.mxu0 %v3111
    %v3113 = vand.u32 %v57, 4294901760
    %v3114 = vsub.f32 %v57, %v3113
    %v3115 = vand.u32 %v3114, 4294901760
    %v3116 = vsub.f32 %v3114, %v3115
    %v3117 = vand.u32 %v3116, 4294901760
    %3118 = vmatpush.msra.mxu0 %v3117
    %v3119 = vand.u32 %v56, 4294901760
    %v3120 = vsub.f32 %v56, %v3119
    %v3121 = vand.u32 %v3120, 4294901760
    %v3122 = vsub.f32 %v3120, %v3121
    %v3123 = vand.u32 %v3122, 4294901760
    %3124 = vmatpush.msra.mxu0 %v3123
    %v3125 = vand.u32 %v55, 4294901760
    %v3126 = vsub.f32 %v55, %v3125
    %v3127 = vand.u32 %v3126, 4294901760
    %v3128 = vsub.f32 %v3126, %v3127
    %v3129 = vand.u32 %v3128, 4294901760
    %3130 = vmatpush.msra.mxu0 %v3129
    %v3131 = vand.u32 %v54, 4294901760
    %v3132 = vsub.f32 %v54, %v3131
    %v3133 = vand.u32 %v3132, 4294901760
    %v3134 = vsub.f32 %v3132, %v3133
    %v3135 = vand.u32 %v3134, 4294901760
    %3136 = vmatpush.msra.mxu0 %v3135
    %v3137 = vand.u32 %v53, 4294901760
    %v3138 = vsub.f32 %v53, %v3137
    %v3139 = vand.u32 %v3138, 4294901760
    %v3140 = vsub.f32 %v3138, %v3139
    %v3141 = vand.u32 %v3140, 4294901760
    %3142 = vmatpush.msra.mxu0 %v3141
    %v3143 = vand.u32 %v52, 4294901760
    %v3144 = vsub.f32 %v52, %v3143
    %v3145 = vand.u32 %v3144, 4294901760
    %v3146 = vsub.f32 %v3144, %v3145
    %v3147 = vand.u32 %v3146, 4294901760
    %3148 = vmatpush.msra.mxu0 %v3147
    %v3149 = vand.u32 %v51, 4294901760
    %v3150 = vsub.f32 %v51, %v3149
    %v3151 = vand.u32 %v3150, 4294901760
    %v3152 = vsub.f32 %v3150, %v3151
    %v3153 = vand.u32 %v3152, 4294901760
    %3154 = vmatpush.msra.mxu0 %v3153
    %v3155 = vand.u32 %v50, 4294901760
    %v3156 = vsub.f32 %v50, %v3155
    %v3157 = vand.u32 %v3156, 4294901760
    %v3158 = vsub.f32 %v3156, %v3157
    %v3159 = vand.u32 %v3158, 4294901760
    %3160 = vmatpush.msra.mxu0 %v3159
    %v3161 = vand.u32 %v49, 4294901760
    %v3162 = vsub.f32 %v49, %v3161
    %v3163 = vand.u32 %v3162, 4294901760
    %v3164 = vsub.f32 %v3162, %v3163
    %v3165 = vand.u32 %v3164, 4294901760
    %3166 = vmatpush.msra.mxu0 %v3165
    %v3167 = vand.u32 %v3029, 4294901760
    %3168 = vmatmul.f32.gmra.mxu0 %v3167
    %v3169 = vpop.f32.mrf.mxu0
    %v3170 = vadd.f32 %v3069, %v3169
    %3171 = vdwg.mxu0
    %v3172 = vand.u32 %v64, 4294901760
    %v3173 = vsub.f32 %v64, %v3172
    %3174 = vmatpush.msra.mxu0 %v3173
    %v3175 = vand.u32 %v63, 4294901760
    %v3176 = vsub.f32 %v63, %v3175
    %3177 = vmatpush.msra.mxu0 %v3176
    %v3178 = vand.u32 %v62, 4294901760
    %v3179 = vsub.f32 %v62, %v3178
    %3180 = vmatpush.msra.mxu0 %v3179
    %v3181 = vand.u32 %v61, 4294901760
    %v3182 = vsub.f32 %v61, %v3181
    %3183 = vmatpush.msra.mxu0 %v3182
    %v3184 = vand.u32 %v60, 4294901760
    %v3185 = vsub.f32 %v60, %v3184
    %3186 = vmatpush.msra.mxu0 %v3185
    %v3187 = vand.u32 %v59, 4294901760
    %v3188 = vsub.f32 %v59, %v3187
    %3189 = vmatpush.msra.mxu0 %v3188
    %v3190 = vand.u32 %v58, 4294901760
    %v3191 = vsub.f32 %v58, %v3190
    %3192 = vmatpush.msra.mxu0 %v3191
    %v3193 = vand.u32 %v57, 4294901760
    %v3194 = vsub.f32 %v57, %v3193
    %3195 = vmatpush.msra.mxu0 %v3194
    %v3196 = vand.u32 %v56, 4294901760
    %v3197 = vsub.f32 %v56, %v3196
    %3198 = vmatpush.msra.mxu0 %v3197
    %v3199 = vand.u32 %v55, 4294901760
    %v3200 = vsub.f32 %v55, %v3199
    %3201 = vmatpush.msra.mxu0 %v3200
    %v3202 = vand.u32 %v54, 4294901760
    %v3203 = vsub.f32 %v54, %v3202
    %3204 = vmatpush.msra.mxu0 %v3203
    %v3205 = vand.u32 %v53, 4294901760
    %v3206 = vsub.f32 %v53, %v3205
    %3207 = vmatpush.msra.mxu0 %v3206
    %v3208 = vand.u32 %v52, 4294901760
    %v3209 = vsub.f32 %v52, %v3208
    %3210 = vmatpush.msra.mxu0 %v3209
    %v3211 = vand.u32 %v51, 4294901760
    %v3212 = vsub.f32 %v51, %v3211
    %3213 = vmatpush.msra.mxu0 %v3212
    %v3214 = vand.u32 %v50, 4294901760
    %v3215 = vsub.f32 %v50, %v3214
    %3216 = vmatpush.msra.mxu0 %v3215
    %v3217 = vand.u32 %v49, 4294901760
    %v3218 = vsub.f32 %v49, %v3217
    %3219 = vmatpush.msra.mxu0 %v3218
    %v3220 = vand.u32 %v3029, 4294901760
    %v3221 = vsub.f32 %v3029, %v3220
    %3222 = vmatmul.f32.gmra.mxu0 %v3221
    %v3223 = vpop.f32.mrf.mxu0
    %v3224 = vadd.f32 %v3170, %v3223
    %3225 = vdwg.mxu0
    %v3226 = vand.u32 %v64, 4294901760
    %3227 = vmatpush.msra.mxu0 %v3226
    %v3228 = vand.u32 %v63, 4294901760
    %3229 = vmatpush.msra.mxu0 %v3228
    %v3230 = vand.u32 %v62, 4294901760
    %3231 = vmatpush.msra.mxu0 %v3230
    %v3232 = vand.u32 %v61, 4294901760
    %3233 = vmatpush.msra.mxu0 %v3232
    %v3234 = vand.u32 %v60, 4294901760
    %3235 = vmatpush.msra.mxu0 %v3234
    %v3236 = vand.u32 %v59, 4294901760
    %3237 = vmatpush.msra.mxu0 %v3236
    %v3238 = vand.u32 %v58, 4294901760
    %3239 = vmatpush.msra.mxu0 %v3238
    %v3240 = vand.u32 %v57, 4294901760
    %3241 = vmatpush.msra.mxu0 %v3240
    %v3242 = vand.u32 %v56, 4294901760
    %3243 = vmatpush.msra.mxu0 %v3242
    %v3244 = vand.u32 %v55, 4294901760
    %3245 = vmatpush.msra.mxu0 %v3244
    %v3246 = vand.u32 %v54, 4294901760
    %3247 = vmatpush.msra.mxu0 %v3246
    %v3248 = vand.u32 %v53, 4294901760
    %3249 = vmatpush.msra.mxu0 %v3248
    %v3250 = vand.u32 %v52, 4294901760
    %3251 = vmatpush.msra.mxu0 %v3250
    %v3252 = vand.u32 %v51, 4294901760
    %3253 = vmatpush.msra.mxu0 %v3252
    %v3254 = vand.u32 %v50, 4294901760
    %3255 = vmatpush.msra.mxu0 %v3254
    %v3256 = vand.u32 %v49, 4294901760
    %3257 = vmatpush.msra.mxu0 %v3256
    %v3258 = vand.u32 %v3029, 4294901760
    %v3259 = vsub.f32 %v3029, %v3258
    %v3260 = vand.u32 %v3259, 4294901760
    %3261 = vmatmul.f32.gmra.mxu0 %v3260
    %v3262 = vpop.f32.mrf.mxu0
    %v3263 = vadd.f32 %v3224, %v3262
    %3264 = vdwg.mxu0
    %v3265 = vand.u32 %v64, 4294901760
    %v3266 = vsub.f32 %v64, %v3265
    %v3267 = vand.u32 %v3266, 4294901760
    %3268 = vmatpush.msra.mxu0 %v3267
    %v3269 = vand.u32 %v63, 4294901760
    %v3270 = vsub.f32 %v63, %v3269
    %v3271 = vand.u32 %v3270, 4294901760
    %3272 = vmatpush.msra.mxu0 %v3271
    %v3273 = vand.u32 %v62, 4294901760
    %v3274 = vsub.f32 %v62, %v3273
    %v3275 = vand.u32 %v3274, 4294901760
    %3276 = vmatpush.msra.mxu0 %v3275
    %v3277 = vand.u32 %v61, 4294901760
    %v3278 = vsub.f32 %v61, %v3277
    %v3279 = vand.u32 %v3278, 4294901760
    %3280 = vmatpush.msra.mxu0 %v3279
    %v3281 = vand.u32 %v60, 4294901760
    %v3282 = vsub.f32 %v60, %v3281
    %v3283 = vand.u32 %v3282, 4294901760
    %3284 = vmatpush.msra.mxu0 %v3283
    %v3285 = vand.u32 %v59, 4294901760
    %v3286 = vsub.f32 %v59, %v3285
    %v3287 = vand.u32 %v3286, 4294901760
    %3288 = vmatpush.msra.mxu0 %v3287
    %v3289 = vand.u32 %v58, 4294901760
    %v3290 = vsub.f32 %v58, %v3289
    %v3291 = vand.u32 %v3290, 4294901760
    %3292 = vmatpush.msra.mxu0 %v3291
    %v3293 = vand.u32 %v57, 4294901760
    %v3294 = vsub.f32 %v57, %v3293
    %v3295 = vand.u32 %v3294, 4294901760
    %3296 = vmatpush.msra.mxu0 %v3295
    %v3297 = vand.u32 %v56, 4294901760
    %v3298 = vsub.f32 %v56, %v3297
    %v3299 = vand.u32 %v3298, 4294901760
    %3300 = vmatpush.msra.mxu0 %v3299
    %v3301 = vand.u32 %v55, 4294901760
    %v3302 = vsub.f32 %v55, %v3301
    %v3303 = vand.u32 %v3302, 4294901760
    %3304 = vmatpush.msra.mxu0 %v3303
    %v3305 = vand.u32 %v54, 4294901760
    %v3306 = vsub.f32 %v54, %v3305
    %v3307 = vand.u32 %v3306, 4294901760
    %3308 = vmatpush.msra.mxu0 %v3307
    %v3309 = vand.u32 %v53, 4294901760
    %v3310 = vsub.f32 %v53, %v3309
    %v3311 = vand.u32 %v3310, 4294901760
    %3312 = vmatpush.msra.mxu0 %v3311
    %v3313 = vand.u32 %v52, 4294901760
    %v3314 = vsub.f32 %v52, %v3313
    %v3315 = vand.u32 %v3314, 4294901760
    %3316 = vmatpush.msra.mxu0 %v3315
    %v3317 = vand.u32 %v51, 4294901760
    %v3318 = vsub.f32 %v51, %v3317
    %v3319 = vand.u32 %v3318, 4294901760
    %3320 = vmatpush.msra.mxu0 %v3319
    %v3321 = vand.u32 %v50, 4294901760
    %v3322 = vsub.f32 %v50, %v3321
    %v3323 = vand.u32 %v3322, 4294901760
    %3324 = vmatpush.msra.mxu0 %v3323
    %v3325 = vand.u32 %v49, 4294901760
    %v3326 = vsub.f32 %v49, %v3325
    %v3327 = vand.u32 %v3326, 4294901760
    %3328 = vmatpush.msra.mxu0 %v3327
    %v3329 = vand.u32 %v3029, 4294901760
    %3330 = vmatmul.f32.gmra.mxu0 %v3329
    %v3331 = vpop.f32.mrf.mxu0
    %v3332 = vadd.f32 %v3263, %v3331
    %3333 = vdwg.mxu0
    %v3334 = vand.u32 %v64, 4294901760
    %3335 = vmatpush.msra.mxu0 %v3334
    %v3336 = vand.u32 %v63, 4294901760
    %3337 = vmatpush.msra.mxu0 %v3336
    %v3338 = vand.u32 %v62, 4294901760
    %3339 = vmatpush.msra.mxu0 %v3338
    %v3340 = vand.u32 %v61, 4294901760
    %3341 = vmatpush.msra.mxu0 %v3340
    %v3342 = vand.u32 %v60, 4294901760
    %3343 = vmatpush.msra.mxu0 %v3342
    %v3344 = vand.u32 %v59, 4294901760
    %3345 = vmatpush.msra.mxu0 %v3344
    %v3346 = vand.u32 %v58, 4294901760
    %3347 = vmatpush.msra.mxu0 %v3346
    %v3348 = vand.u32 %v57, 4294901760
    %3349 = vmatpush.msra.mxu0 %v3348
    %v3350 = vand.u32 %v56, 4294901760
    %3351 = vmatpush.msra.mxu0 %v3350
    %v3352 = vand.u32 %v55, 4294901760
    %3353 = vmatpush.msra.mxu0 %v3352
    %v3354 = vand.u32 %v54, 4294901760
    %3355 = vmatpush.msra.mxu0 %v3354
    %v3356 = vand.u32 %v53, 4294901760
    %3357 = vmatpush.msra.mxu0 %v3356
    %v3358 = vand.u32 %v52, 4294901760
    %3359 = vmatpush.msra.mxu0 %v3358
    %v3360 = vand.u32 %v51, 4294901760
    %3361 = vmatpush.msra.mxu0 %v3360
    %v3362 = vand.u32 %v50, 4294901760
    %3363 = vmatpush.msra.mxu0 %v3362
    %v3364 = vand.u32 %v49, 4294901760
    %3365 = vmatpush.msra.mxu0 %v3364
    %v3366 = vand.u32 %v3029, 4294901760
    %3367 = vmatmul.f32.gmra.mxu0 %v3366
    %v3368 = vpop.f32.mrf.mxu0
    %v3369 = vadd.f32 %v3332, %v3368
    %3370 = vdwg.mxu0
    %v3371 = vadd.f32 %v640, %v3369
    %v3372 = vtanh.pop %v3371
    %v3373 = vperm.slane %v82, 0
    %v3374 = vand.u32 %v81, 4294901760
    %3375 = vmatpush.msra.mxu0 %v3374
    %v3376 = vand.u32 %v80, 4294901760
    %3377 = vmatpush.msra.mxu0 %v3376
    %v3378 = vand.u32 %v79, 4294901760
    %3379 = vmatpush.msra.mxu0 %v3378
    %v3380 = vand.u32 %v78, 4294901760
    %3381 = vmatpush.msra.mxu0 %v3380
    %v3382 = vand.u32 %v77, 4294901760
    %3383 = vmatpush.msra.mxu0 %v3382
    %v3384 = vand.u32 %v76, 4294901760
    %3385 = vmatpush.msra.mxu0 %v3384
    %v3386 = vand.u32 %v75, 4294901760
    %3387 = vmatpush.msra.mxu0 %v3386
    %v3388 = vand.u32 %v74, 4294901760
    %3389 = vmatpush.msra.mxu0 %v3388
    %v3390 = vand.u32 %v73, 4294901760
    %3391 = vmatpush.msra.mxu0 %v3390
    %v3392 = vand.u32 %v72, 4294901760
    %3393 = vmatpush.msra.mxu0 %v3392
    %v3394 = vand.u32 %v71, 4294901760
    %3395 = vmatpush.msra.mxu0 %v3394
    %v3396 = vand.u32 %v70, 4294901760
    %3397 = vmatpush.msra.mxu0 %v3396
    %v3398 = vand.u32 %v69, 4294901760
    %3399 = vmatpush.msra.mxu0 %v3398
    %v3400 = vand.u32 %v68, 4294901760
    %3401 = vmatpush.msra.mxu0 %v3400
    %v3402 = vand.u32 %v67, 4294901760
    %3403 = vmatpush.msra.mxu0 %v3402
    %v3404 = vand.u32 %v66, 4294901760
    %3405 = vmatpush.msra.mxu0 %v3404
    %v3406 = vand.u32 %v3372, 4294901760
    %v3407 = vsub.f32 %v3372, %v3406
    %v3408 = vand.u32 %v3407, 4294901760
    %v3409 = vsub.f32 %v3407, %v3408
    %v3410 = vand.u32 %v3409, 4294901760
    %3411 = vmatmul.f32.gmra.mxu0 %v3410
    %v3412 = vpop.f32.mrf.mxu0
    %v3413 = vadd.f32 %v3373, %v3412
    %3414 = vdwg.mxu0
    %v3415 = vand.u32 %v81, 4294901760
    %v3416 = vsub.f32 %v81, %v3415
    %v3417 = vand.u32 %v3416, 4294901760
    %v3418 = vsub.f32 %v3416, %v3417
    %v3419 = vand.u32 %v3418, 4294901760
    %3420 = vmatpush.msra.mxu0 %v3419
    %v3421 = vand.u32 %v80, 4294901760
    %v3422 = vsub.f32 %v80, %v3421
    %v3423 = vand.u32 %v3422, 4294901760
    %v3424 = vsub.f32 %v3422, %v3423
    %v3425 = vand.u32 %v3424, 4294901760
    %3426 = vmatpush.msra.mxu0 %v3425
    %v3427 = vand.u32 %v79, 4294901760
    %v3428 = vsub.f32 %v79, %v3427
    %v3429 = vand.u32 %v3428, 4294901760
    %v3430 = vsub.f32 %v3428, %v3429
    %v3431 = vand.u32 %v3430, 4294901760
    %3432 = vmatpush.msra.mxu0 %v3431
    %v3433 = vand.u32 %v78, 4294901760
    %v3434 = vsub.f32 %v78, %v3433
    %v3435 = vand.u32 %v3434, 4294901760
    %v3436 = vsub.f32 %v3434, %v3435
    %v3437 = vand.u32 %v3436, 4294901760
    %3438 = vmatpush.msra.mxu0 %v3437
    %v3439 = vand.u32 %v77, 4294901760
    %v3440 = vsub.f32 %v77, %v3439
    %v3441 = vand.u32 %v3440, 4294901760
    %v3442 = vsub.f32 %v3440, %v3441
    %v3443 = vand.u32 %v3442, 4294901760
    %3444 = vmatpush.msra.mxu0 %v3443
    %v3445 = vand.u32 %v76, 4294901760
    %v3446 = vsub.f32 %v76, %v3445
    %v3447 = vand.u32 %v3446, 4294901760
    %v3448 = vsub.f32 %v3446, %v3447
    %v3449 = vand.u32 %v3448, 4294901760
    %3450 = vmatpush.msra.mxu0 %v3449
    %v3451 = vand.u32 %v75, 4294901760
    %v3452 = vsub.f32 %v75, %v3451
    %v3453 = vand.u32 %v3452, 4294901760
    %v3454 = vsub.f32 %v3452, %v3453
    %v3455 = vand.u32 %v3454, 4294901760
    %3456 = vmatpush.msra.mxu0 %v3455
    %v3457 = vand.u32 %v74, 4294901760
    %v3458 = vsub.f32 %v74, %v3457
    %v3459 = vand.u32 %v3458, 4294901760
    %v3460 = vsub.f32 %v3458, %v3459
    %v3461 = vand.u32 %v3460, 4294901760
    %3462 = vmatpush.msra.mxu0 %v3461
    %v3463 = vand.u32 %v73, 4294901760
    %v3464 = vsub.f32 %v73, %v3463
    %v3465 = vand.u32 %v3464, 4294901760
    %v3466 = vsub.f32 %v3464, %v3465
    %v3467 = vand.u32 %v3466, 4294901760
    %3468 = vmatpush.msra.mxu0 %v3467
    %v3469 = vand.u32 %v72, 4294901760
    %v3470 = vsub.f32 %v72, %v3469
    %v3471 = vand.u32 %v3470, 4294901760
    %v3472 = vsub.f32 %v3470, %v3471
    %v3473 = vand.u32 %v3472, 4294901760
    %3474 = vmatpush.msra.mxu0 %v3473
    %v3475 = vand.u32 %v71, 4294901760
    %v3476 = vsub.f32 %v71, %v3475
    %v3477 = vand.u32 %v3476, 4294901760
    %v3478 = vsub.f32 %v3476, %v3477
    %v3479 = vand.u32 %v3478, 4294901760
    %3480 = vmatpush.msra.mxu0 %v3479
    %v3481 = vand.u32 %v70, 4294901760
    %v3482 = vsub.f32 %v70, %v3481
    %v3483 = vand.u32 %v3482, 4294901760
    %v3484 = vsub.f32 %v3482, %v3483
    %v3485 = vand.u32 %v3484, 4294901760
    %3486 = vmatpush.msra.mxu0 %v3485
    %v3487 = vand.u32 %v69, 4294901760
    %v3488 = vsub.f32 %v69, %v3487
    %v3489 = vand.u32 %v3488, 4294901760
    %v3490 = vsub.f32 %v3488, %v3489
    %v3491 = vand.u32 %v3490, 4294901760
    %3492 = vmatpush.msra.mxu0 %v3491
    %v3493 = vand.u32 %v68, 4294901760
    %v3494 = vsub.f32 %v68, %v3493
    %v3495 = vand.u32 %v3494, 4294901760
    %v3496 = vsub.f32 %v3494, %v3495
    %v3497 = vand.u32 %v3496, 4294901760
    %3498 = vmatpush.msra.mxu0 %v3497
    %v3499 = vand.u32 %v67, 4294901760
    %v3500 = vsub.f32 %v67, %v3499
    %v3501 = vand.u32 %v3500, 4294901760
    %v3502 = vsub.f32 %v3500, %v3501
    %v3503 = vand.u32 %v3502, 4294901760
    %3504 = vmatpush.msra.mxu0 %v3503
    %v3505 = vand.u32 %v66, 4294901760
    %v3506 = vsub.f32 %v66, %v3505
    %v3507 = vand.u32 %v3506, 4294901760
    %v3508 = vsub.f32 %v3506, %v3507
    %v3509 = vand.u32 %v3508, 4294901760
    %3510 = vmatpush.msra.mxu0 %v3509
    %v3511 = vand.u32 %v3372, 4294901760
    %3512 = vmatmul.f32.gmra.mxu0 %v3511
    %v3513 = vpop.f32.mrf.mxu0
    %v3514 = vadd.f32 %v3413, %v3513
    %3515 = vdwg.mxu0
    %v3516 = vand.u32 %v81, 4294901760
    %v3517 = vsub.f32 %v81, %v3516
    %3518 = vmatpush.msra.mxu0 %v3517
    %v3519 = vand.u32 %v80, 4294901760
    %v3520 = vsub.f32 %v80, %v3519
    %3521 = vmatpush.msra.mxu0 %v3520
    %v3522 = vand.u32 %v79, 4294901760
    %v3523 = vsub.f32 %v79, %v3522
    %3524 = vmatpush.msra.mxu0 %v3523
    %v3525 = vand.u32 %v78, 4294901760
    %v3526 = vsub.f32 %v78, %v3525
    %3527 = vmatpush.msra.mxu0 %v3526
    %v3528 = vand.u32 %v77, 4294901760
    %v3529 = vsub.f32 %v77, %v3528
    %3530 = vmatpush.msra.mxu0 %v3529
    %v3531 = vand.u32 %v76, 4294901760
    %v3532 = vsub.f32 %v76, %v3531
    %3533 = vmatpush.msra.mxu0 %v3532
    %v3534 = vand.u32 %v75, 4294901760
    %v3535 = vsub.f32 %v75, %v3534
    %3536 = vmatpush.msra.mxu0 %v3535
    %v3537 = vand.u32 %v74, 4294901760
    %v3538 = vsub.f32 %v74, %v3537
    %3539 = vmatpush.msra.mxu0 %v3538
    %v3540 = vand.u32 %v73, 4294901760
    %v3541 = vsub.f32 %v73, %v3540
    %3542 = vmatpush.msra.mxu0 %v3541
    %v3543 = vand.u32 %v72, 4294901760
    %v3544 = vsub.f32 %v72, %v3543
    %3545 = vmatpush.msra.mxu0 %v3544
    %v3546 = vand.u32 %v71, 4294901760
    %v3547 = vsub.f32 %v71, %v3546
    %3548 = vmatpush.msra.mxu0 %v3547
    %v3549 = vand.u32 %v70, 4294901760
    %v3550 = vsub.f32 %v70, %v3549
    %3551 = vmatpush.msra.mxu0 %v3550
    %v3552 = vand.u32 %v69, 4294901760
    %v3553 = vsub.f32 %v69, %v3552
    %3554 = vmatpush.msra.mxu0 %v3553
    %v3555 = vand.u32 %v68, 4294901760
    %v3556 = vsub.f32 %v68, %v3555
    %3557 = vmatpush.msra.mxu0 %v3556
    %v3558 = vand.u32 %v67, 4294901760
    %v3559 = vsub.f32 %v67, %v3558
    %3560 = vmatpush.msra.mxu0 %v3559
    %v3561 = vand.u32 %v66, 4294901760
    %v3562 = vsub.f32 %v66, %v3561
    %3563 = vmatpush.msra.mxu0 %v3562
    %v3564 = vand.u32 %v3372, 4294901760
    %v3565 = vsub.f32 %v3372, %v3564
    %3566 = vmatmul.f32.gmra.mxu0 %v3565
    %v3567 = vpop.f32.mrf.mxu0
    %v3568 = vadd.f32 %v3514, %v3567
    %3569 = vdwg.mxu0
    %v3570 = vand.u32 %v81, 4294901760
    %3571 = vmatpush.msra.mxu0 %v3570
    %v3572 = vand.u32 %v80, 4294901760
    %3573 = vmatpush.msra.mxu0 %v3572
    %v3574 = vand.u32 %v79, 4294901760
    %3575 = vmatpush.msra.mxu0 %v3574
    %v3576 = vand.u32 %v78, 4294901760
    %3577 = vmatpush.msra.mxu0 %v3576
    %v3578 = vand.u32 %v77, 4294901760
    %3579 = vmatpush.msra.mxu0 %v3578
    %v3580 = vand.u32 %v76, 4294901760
    %3581 = vmatpush.msra.mxu0 %v3580
    %v3582 = vand.u32 %v75, 4294901760
    %3583 = vmatpush.msra.mxu0 %v3582
    %v3584 = vand.u32 %v74, 4294901760
    %3585 = vmatpush.msra.mxu0 %v3584
    %v3586 = vand.u32 %v73, 4294901760
    %3587 = vmatpush.msra.mxu0 %v3586
    %v3588 = vand.u32 %v72, 4294901760
    %3589 = vmatpush.msra.mxu0 %v3588
    %v3590 = vand.u32 %v71, 4294901760
    %3591 = vmatpush.msra.mxu0 %v3590
    %v3592 = vand.u32 %v70, 4294901760
    %3593 = vmatpush.msra.mxu0 %v3592
    %v3594 = vand.u32 %v69, 4294901760
    %3595 = vmatpush.msra.mxu0 %v3594
    %v3596 = vand.u32 %v68, 4294901760
    %3597 = vmatpush.msra.mxu0 %v3596
    %v3598 = vand.u32 %v67, 4294901760
    %3599 = vmatpush.msra.mxu0 %v3598
    %v3600 = vand.u32 %v66, 4294901760
    %3601 = vmatpush.msra.mxu0 %v3600
    %v3602 = vand.u32 %v3372, 4294901760
    %v3603 = vsub.f32 %v3372, %v3602
    %v3604 = vand.u32 %v3603, 4294901760
    %3605 = vmatmul.f32.gmra.mxu0 %v3604
    %v3606 = vpop.f32.mrf.mxu0
    %v3607 = vadd.f32 %v3568, %v3606
    %3608 = vdwg.mxu0
    %v3609 = vand.u32 %v81, 4294901760
    %v3610 = vsub.f32 %v81, %v3609
    %v3611 = vand.u32 %v3610, 4294901760
    %3612 = vmatpush.msra.mxu0 %v3611
    %v3613 = vand.u32 %v80, 4294901760
    %v3614 = vsub.f32 %v80, %v3613
    %v3615 = vand.u32 %v3614, 4294901760
    %3616 = vmatpush.msra.mxu0 %v3615
    %v3617 = vand.u32 %v79, 4294901760
    %v3618 = vsub.f32 %v79, %v3617
    %v3619 = vand.u32 %v3618, 4294901760
    %3620 = vmatpush.msra.mxu0 %v3619
    %v3621 = vand.u32 %v78, 4294901760
    %v3622 = vsub.f32 %v78, %v3621
    %v3623 = vand.u32 %v3622, 4294901760
    %3624 = vmatpush.msra.mxu0 %v3623
    %v3625 = vand.u32 %v77, 4294901760
    %v3626 = vsub.f32 %v77, %v3625
    %v3627 = vand.u32 %v3626, 4294901760
    %3628 = vmatpush.msra.mxu0 %v3627
    %v3629 = vand.u32 %v76, 4294901760
    %v3630 = vsub.f32 %v76, %v3629
    %v3631 = vand.u32 %v3630, 4294901760
    %3632 = vmatpush.msra.mxu0 %v3631
    %v3633 = vand.u32 %v75, 4294901760
    %v3634 = vsub.f32 %v75, %v3633
    %v3635 = vand.u32 %v3634, 4294901760
    %3636 = vmatpush.msra.mxu0 %v3635
    %v3637 = vand.u32 %v74, 4294901760
    %v3638 = vsub.f32 %v74, %v3637
    %v3639 = vand.u32 %v3638, 4294901760
    %3640 = vmatpush.msra.mxu0 %v3639
    %v3641 = vand.u32 %v73, 4294901760
    %v3642 = vsub.f32 %v73, %v3641
    %v3643 = vand.u32 %v3642, 4294901760
    %3644 = vmatpush.msra.mxu0 %v3643
    %v3645 = vand.u32 %v72, 4294901760
    %v3646 = vsub.f32 %v72, %v3645
    %v3647 = vand.u32 %v3646, 4294901760
    %3648 = vmatpush.msra.mxu0 %v3647
    %v3649 = vand.u32 %v71, 4294901760
    %v3650 = vsub.f32 %v71, %v3649
    %v3651 = vand.u32 %v3650, 4294901760
    %3652 = vmatpush.msra.mxu0 %v3651
    %v3653 = vand.u32 %v70, 4294901760
    %v3654 = vsub.f32 %v70, %v3653
    %v3655 = vand.u32 %v3654, 4294901760
    %3656 = vmatpush.msra.mxu0 %v3655
    %v3657 = vand.u32 %v69, 4294901760
    %v3658 = vsub.f32 %v69, %v3657
    %v3659 = vand.u32 %v3658, 4294901760
    %3660 = vmatpush.msra.mxu0 %v3659
    %v3661 = vand.u32 %v68, 4294901760
    %v3662 = vsub.f32 %v68, %v3661
    %v3663 = vand.u32 %v3662, 4294901760
    %3664 = vmatpush.msra.mxu0 %v3663
    %v3665 = vand.u32 %v67, 4294901760
    %v3666 = vsub.f32 %v67, %v3665
    %v3667 = vand.u32 %v3666, 4294901760
    %3668 = vmatpush.msra.mxu0 %v3667
    %v3669 = vand.u32 %v66, 4294901760
    %v3670 = vsub.f32 %v66, %v3669
    %v3671 = vand.u32 %v3670, 4294901760
    %3672 = vmatpush.msra.mxu0 %v3671
    %v3673 = vand.u32 %v3372, 4294901760
    %3674 = vmatmul.f32.gmra.mxu0 %v3673
    %v3675 = vpop.f32.mrf.mxu0
    %v3676 = vadd.f32 %v3607, %v3675
    %3677 = vdwg.mxu0
    %v3678 = vand.u32 %v81, 4294901760
    %3679 = vmatpush.msra.mxu0 %v3678
    %v3680 = vand.u32 %v80, 4294901760
    %3681 = vmatpush.msra.mxu0 %v3680
    %v3682 = vand.u32 %v79, 4294901760
    %3683 = vmatpush.msra.mxu0 %v3682
    %v3684 = vand.u32 %v78, 4294901760
    %3685 = vmatpush.msra.mxu0 %v3684
    %v3686 = vand.u32 %v77, 4294901760
    %3687 = vmatpush.msra.mxu0 %v3686
    %v3688 = vand.u32 %v76, 4294901760
    %3689 = vmatpush.msra.mxu0 %v3688
    %v3690 = vand.u32 %v75, 4294901760
    %3691 = vmatpush.msra.mxu0 %v3690
    %v3692 = vand.u32 %v74, 4294901760
    %3693 = vmatpush.msra.mxu0 %v3692
    %v3694 = vand.u32 %v73, 4294901760
    %3695 = vmatpush.msra.mxu0 %v3694
    %v3696 = vand.u32 %v72, 4294901760
    %3697 = vmatpush.msra.mxu0 %v3696
    %v3698 = vand.u32 %v71, 4294901760
    %3699 = vmatpush.msra.mxu0 %v3698
    %v3700 = vand.u32 %v70, 4294901760
    %3701 = vmatpush.msra.mxu0 %v3700
    %v3702 = vand.u32 %v69, 4294901760
    %3703 = vmatpush.msra.mxu0 %v3702
    %v3704 = vand.u32 %v68, 4294901760
    %3705 = vmatpush.msra.mxu0 %v3704
    %v3706 = vand.u32 %v67, 4294901760
    %3707 = vmatpush.msra.mxu0 %v3706
    %v3708 = vand.u32 %v66, 4294901760
    %3709 = vmatpush.msra.mxu0 %v3708
    %v3710 = vand.u32 %v3372, 4294901760
    %3711 = vmatmul.f32.gmra.mxu0 %v3710
    %v3712 = vpop.f32.mrf.mxu0
    %v3713 = vadd.f32 %v3676, %v3712
    %3714 = vdwg.mxu0
    %3715 = vst [vmem:[#allocation5] sm:$0xff] %v3713
    // Predicated region
    $region10: #{tpu_custom_call.1} parent=1 // pred_check
      _
    $region11: #{tpu_custom_call.1} parent=1 // pred_check_branch
      %3717 = sbr.rel (0) target = $region13
    $region12: #{tpu_custom_call.1} parent=1 // pred_region
      %3719 = vsyncadd [#allocation4], 0
      %s3721 = sshll.u32 [#allocation5], 4
      %s3722 = int_to_ptr.vmem [resolvable:$true] %s3721
      %s3723 = sshll.u32 %s1, 4
      %s3724 = int_to_ptr.hbm [resolvable:$true] %s3723
      %3726 = dma.vmem_to_hbm [thread:$0]  %s3722, 128, %s3724, [#allocation4]
    $region13: #{tpu_custom_call.1} parent=1 // pred_fallthru
      _
    // Predicated region
    $region14: #{tpu_custom_call.1} parent=1 // pred_check
      _
    $region15: #{tpu_custom_call.1} parent=1 // pred_check_branch
      %3728 = sbr.rel (0) target = $region17
    $region16: #{tpu_custom_call.1} parent=1 // pred_region
      %3730 = dma.done [#allocation4], 128
    $region17: #{tpu_custom_call.1} parent=1 // pred_fallthru
      _
    %3731 = vsyncpa [#allocation3], 1
    %3732 = vsyncpa [#allocation4], 1

</llo_original>
